<compile_context>
chip_gen: v6e
topology: v6e:2x2x1
jax: 0.10.0
libtpu: 0.0.40
codegen_flags: <defaults>
</compile_context>

<pallas_src>
import functools

import jax
import jax.numpy as jnp
from jax.experimental import pallas as pl
from jax.experimental.pallas import tpu as pltpu


def _round_up(x, m):
    return ((x + m - 1) // m) * m


def _pick_tile(dim, cap, base):
    return cap if dim >= cap else _round_up(dim, base)


_COMPILER_PARAMS = pltpu.CompilerParams(
    dimension_semantics=("parallel", "parallel", "arbitrary"),
    vmem_limit_bytes=48 * 1024 * 1024,   # safe on v5e/v6e (128 MiB) and v7x (64 MiB)
)


# ----------------------------------------------------------------------------
# Pallas kernels: tiled matmul + bias (+ residual) + ReLU, f32 VMEM accumulator
# ----------------------------------------------------------------------------
def _matmul_kernel(x_ref, w_ref, b_ref, o_ref, acc_ref, *, relu):
    k = pl.program_id(2)

    @pl.when(k == 0)
    def _init():
        acc_ref[...] = jnp.zeros_like(acc_ref)

    acc_ref[...] += jnp.dot(x_ref[...], w_ref[...],
                            preferred_element_type=jnp.float32)

    @pl.when(k == pl.num_programs(2) - 1)
    def _fini():
        out = acc_ref[...] + b_ref[...]
        if relu:
            out = jnp.maximum(out, 0.0)
        o_ref[...] = out.astype(o_ref.dtype)


def _matmul_res_kernel(x_ref, w_ref, b_ref, r_ref, o_ref, acc_ref, *, relu):
    k = pl.program_id(2)

    @pl.when(k == 0)
    def _init():
        acc_ref[...] = jnp.zeros_like(acc_ref)

    acc_ref[...] += jnp.dot(x_ref[...], w_ref[...],
                            preferred_element_type=jnp.float32)

    @pl.when(k == pl.num_programs(2) - 1)
    def _fini():
        out = acc_ref[...] + b_ref[...] + r_ref[...].astype(jnp.float32)
        if relu:
            out = jnp.maximum(out, 0.0)
        o_ref[...] = out.astype(o_ref.dtype)


def fused_matmul(x2d, w, bias, residual=None, relu=True, out_dtype=jnp.bfloat16,
                 tm_cap=512, tn_cap=256, tk_cap=512):
    """out = act(x2d @ w + bias [+ residual]) as a tiled Pallas TPU matmul.

    bf16 operands, f32 VMEM accumulator over the K grid axis, epilogue applied on
    the last K step only.  Operands are zero-padded to tile multiples so the lane
    dim is always >= 128 (lane-dense stores)."""
    M, K = x2d.shape
    Kw, N = w.shape
    assert Kw == K
    tm = _pick_tile(M, tm_cap, 8)
    tk = _pick_tile(K, tk_cap, 128)
    tn = _pick_tile(N, tn_cap, 128)
    Mp, Kp, Np = _round_up(M, tm), _round_up(K, tk), _round_up(N, tn)

    xb = jnp.pad(x2d.astype(jnp.bfloat16), ((0, Mp - M), (0, Kp - K)))
    wb = jnp.pad(w.astype(jnp.bfloat16), ((0, Kp - K), (0, Np - N)))
    bb = jnp.pad(bias.astype(jnp.float32).reshape(1, N), ((0, 0), (0, Np - N)))

    in_specs = [
        pl.BlockSpec((tm, tk), lambda i, j, k: (i, k)),
        pl.BlockSpec((tk, tn), lambda i, j, k: (k, j)),
        pl.BlockSpec((1, tn), lambda i, j, k: (0, j)),
    ]
    args = [xb, wb, bb]
    if residual is None:
        kernel = functools.partial(_matmul_kernel, relu=relu)
    else:
        rb = jnp.pad(residual.astype(jnp.bfloat16), ((0, Mp - M), (0, Np - N)))
        in_specs.append(pl.BlockSpec((tm, tn), lambda i, j, k: (i, j)))
        args.append(rb)
        kernel = functools.partial(_matmul_res_kernel, relu=relu)

    out = pl.pallas_call(
        kernel,
        out_shape=jax.ShapeDtypeStruct((Mp, Np), out_dtype),
        grid=(Mp // tm, Np // tn, Kp // tk),
        in_specs=in_specs,
        out_specs=pl.BlockSpec((tm, tn), lambda i, j, k: (i, j)),
        scratch_shapes=[pltpu.VMEM((tm, tn), jnp.float32)],
        compiler_params=_COMPILER_PARAMS,
    )(*args)
    return out[:M, :N]


# ----------------------------------------------------------------------------
# Pallas kernel: 3x3 conv (stride 1, pad 1) without HBM im2col
# ----------------------------------------------------------------------------
def _conv3x3_kernel(x_ref, w_ref, b_ref, o_ref, acc_ref,
                    *, relu, tap_offsets, tile_n, s_out):
    k = pl.program_id(2)

    @pl.when(k == 0)
    def _init():
        acc_ref[...] = jnp.zeros_like(acc_ref)

    for nn in range(tile_n):
        acc = acc_ref[nn]
        for t, off in enumerate(tap_offsets):
            acc = acc + jnp.dot(x_ref[nn, off:off + s_out, :], w_ref[t],
                                preferred_element_type=jnp.float32)
        acc_ref[nn] = acc

    @pl.when(k == pl.num_programs(2) - 1)
    def _fini():
        out = acc_ref[...] + b_ref[...][None]
        if relu:
            out = jnp.maximum(out, 0.0)
        o_ref[...] = out.astype(o_ref.dtype)


def conv3x3(x, w_taps, bias, relu=True, out_dtype=jnp.bfloat16,
            tn_cap=256, tk_cap=512, images_per_step=4):
    """3x3 conv (stride 1, pad 1, dil 1, groups 1) + bias + ReLU with no HBM im2col.

    The padded NHWC activation is flattened to (R, (H+3)*(W+2), C); each of the 9
    taps is a static row-shifted contiguous 2D slice, so the kernel accumulates 9
    matmuls per (image-tile, Cin-chunk) grid step.  The output uses a padded-width
    row layout (W+2 columns per row); the 2 garbage columns are dropped here."""
    R, H, W, C = x.shape
    Cout = w_taps.shape[-1]
    Wp = W + 2
    s_in = (H + 3) * Wp
    s_out = H * Wp

    tk = _pick_tile(C, tk_cap, 128)
    tn = _pick_tile(Cout, tn_cap, 128)
    Kp, Np = _round_up(C, tk), _round_up(Cout, tn)
    tile_n = min(images_per_step, R)
    Rp = _round_up(R, tile_n)

    xp = jnp.pad(x.astype(jnp.bfloat16),
                 ((0, Rp - R), (1, 2), (1, 1), (0, Kp - C)))
    x3 = xp.reshape(Rp, s_in, Kp)
    wt = jnp.pad(w_taps.astype(jnp.bfloat16),
                 ((0, 0), (0, Kp - C), (0, Np - Cout)))
    bb = jnp.pad(bias.astype(jnp.float32).reshape(1, Cout), ((0, 0), (0, Np - Cout)))

    tap_offsets = tuple(kh * Wp + kw for kh in range(3) for kw in range(3))
    kernel = functools.partial(_conv3x3_kernel, relu=relu, tap_offsets=tap_offsets,
                               tile_n=tile_n, s_out=s_out)
    out = pl.pallas_call(
        kernel,
        out_shape=jax.ShapeDtypeStruct((Rp, s_out, Np), out_dtype),
        grid=(Rp // tile_n, Np // tn, Kp // tk),
        in_specs=[
            pl.BlockSpec((tile_n, s_in, tk), lambda i, j, k: (i, 0, k)),
            pl.BlockSpec((9, tk, tn), lambda i, j, k: (0, k, j)),
            pl.BlockSpec((1, tn), lambda i, j, k: (0, j)),
        ],
        out_specs=pl.BlockSpec((tile_n, s_out, tn), lambda i, j, k: (i, 0, j)),
        scratch_shapes=[pltpu.VMEM((tile_n, s_out, tn), jnp.float32)],
        compiler_params=_COMPILER_PARAMS,
    )(x3, wt, bb)
    return out.reshape(Rp, H, Wp, Np)[:R, :, :W, :Cout]


# ----------------------------------------------------------------------------
# Conv wrappers / bottleneck (NHWC, bf16 activations)
# ----------------------------------------------------------------------------
def conv1x1(x, w, bias, relu=True, out_dtype=jnp.bfloat16):
    n, h, w_, c = x.shape
    out = fused_matmul(x.reshape(n * h * w_, c), w, bias, relu=relu,
                       out_dtype=out_dtype)
    return out.reshape(n, h, w_, -1)


def bottleneck_forward(x, p, stride):
    """BottleneckWithFixedBatchNorm (stride_in_1x1=True), NHWC bf16 activations."""
    # TODO(synk): fold the stride-2 subsampling into the matmul X BlockSpec
    # (pl.ds with stride) instead of this wrapper-level strided slice.
    xs = x[:, ::stride, ::stride, :] if stride > 1 else x
    identity = conv1x1(xs, *p['down'], relu=False) if 'down' in p else x
    out = conv1x1(xs, *p['conv1'], relu=True)          # the 1x1 carries the stride
    out = conv3x3(out, *p['conv2'], relu=True)
    n, h, ww, _ = out.shape
    w3, b3 = p['conv3']
    out2d = fused_matmul(out.reshape(n * h * ww, -1), w3, b3,
                         residual=identity.reshape(n * h * ww, -1), relu=True)
    return out2d.reshape(n, h, ww, -1)


# ----------------------------------------------------------------------------
# Pooler: single-scale ROIAlign (Detectron / maskrcnn_benchmark, aligned=False)
# ----------------------------------------------------------------------------
def convert_to_roi_format(proposals):
    rois = []
    for i, boxes in enumerate(proposals):
        idx = jnp.full((boxes.shape[0], 1), float(i), dtype=boxes.dtype)
        rois.append(jnp.concatenate([idx, boxes], axis=1))
    return jnp.concatenate(rois, axis=0)


def roi_align(feat, rois, output_size, spatial_scale, sampling_ratio):
    """feat: (N,C,H,W) f32; rois: (R,5)=[batch_idx,x1,y1,x2,y2] -> (R,P,P,C) NHWC.

    One merged gather of the 2x2 bilinear neighborhood from a flat (N*H*W, C)
    table — no per-ROI replication of the feature map."""
    # TODO(synk): the data-dependent bilinear gather stays in plain JAX; a Pallas
    # version needs PrefetchScalarGridSpec + per-ROI manual DMA of neighbor rows.
    N, C, H, W = feat.shape
    R = rois.shape[0]
    P = output_size
    gh = gw = sampling_ratio

    batch_idx = rois[:, 0].astype(jnp.int32)
    x1 = rois[:, 1] * spatial_scale
    y1 = rois[:, 2] * spatial_scale
    x2 = rois[:, 3] * spatial_scale
    y2 = rois[:, 4] * spatial_scale
    roi_w = jnp.maximum(x2 - x1, 1.0)
    roi_h = jnp.maximum(y2 - y1, 1.0)
    bin_h = roi_h / P
    bin_w = roi_w / P

    pidx = jnp.arange(P, dtype=jnp.float32)
    gidx = jnp.arange(gh, dtype=jnp.float32)
    yy = (y1[:, None, None] + pidx[None, :, None] * bin_h[:, None, None]
          + (gidx[None, None, :] + 0.5) * bin_h[:, None, None] / gh)        # (R,P,gh)
    xx = (x1[:, None, None] + pidx[None, :, None] * bin_w[:, None, None]
          + (gidx[None, None, :] + 0.5) * bin_w[:, None, None] / gw)        # (R,P,gw)

    Y = jnp.broadcast_to(yy[:, :, :, None, None], (R, P, gh, P, gw)).reshape(R, -1)
    X = jnp.broadcast_to(xx[:, None, None, :, :], (R, P, gh, P, gw)).reshape(R, -1)
    S = Y.shape[1]

    invalid = (Y < -1.0) | (Y > H) | (X < -1.0) | (X > W)
    y = jnp.maximum(Y, 0.0)
    x = jnp.maximum(X, 0.0)
    y_low = jnp.minimum(jnp.floor(y).astype(jnp.int32), H - 1)
    x_low = jnp.minimum(jnp.floor(x).astype(jnp.int32), W - 1)
    y_high = jnp.minimum(y_low + 1, H - 1)
    x_high = jnp.minimum(x_low + 1, W - 1)
    y = jnp.where(y_low >= H - 1, y_low.astype(jnp.float32), y)
    x = jnp.where(x_low >= W - 1, x_low.astype(jnp.float32), x)
    ly = y - y_low.astype(jnp.float32)
    lx = x - x_low.astype(jnp.float32)
    hy = 1.0 - ly
    hx = 1.0 - lx
    wts = jnp.stack([hy * hx, hy * lx, ly * hx, ly * lx], axis=-1)          # (R,S,4)

    feat_flat = jnp.transpose(feat, (0, 2, 3, 1)).reshape(N * H * W, C)     # (NHW,C)
    base = (batch_idx * (H * W))[:, None, None]                             # (R,1,1)
    idx = jnp.stack([y_low * W + x_low, y_low * W + x_high,
                     y_high * W + x_low, y_high * W + x_high], axis=-1)     # (R,S,4)
    gathered = jnp.take(feat_flat, (base + idx).reshape(R, S * 4), axis=0)  # (R,4S,C)
    gathered = gathered.reshape(R, S, 4, C)
    val = jnp.sum(wts[..., None] * gathered, axis=2)                        # (R,S,C)
    val = jnp.where(invalid[:, :, None], 0.0, val)
    val = val.reshape(R, P, gh, P, gw, C)
    return val.mean(axis=(2, 4))                                            # (R,P,P,C)


# ----------------------------------------------------------------------------
# Parameter initialization (deterministic, synthetic) with FrozenBN folding
# ----------------------------------------------------------------------------
def _conv_weight(key, cout, cin, k):
    fan_in = cin * k * k
    return jax.random.normal(key, (cout, cin, k, k), jnp.float32) * jnp.sqrt(2.0 / fan_in)


def _frozen_bn(key, c):
    k1, k2, k3, k4 = jax.random.split(key, 4)
    weight = 1.0 + 0.1 * jax.random.normal(k1, (c,), jnp.float32)
    bias = 0.1 * jax.random.normal(k2, (c,), jnp.float32)
    mean = 0.1 * jax.random.normal(k3, (c,), jnp.float32)
    var = jax.random.uniform(k4, (c,), jnp.float32, minval=0.5, maxval=1.5)
    scale = weight * jax.lax.rsqrt(var)
    return scale, bias - mean * scale


def _fold_1x1(w, scale, shift):
    # (Cout,Cin,1,1) -> (Cin,Cout), FrozenBN scale folded into the weight columns.
    wm = jnp.transpose(w[:, :, 0, 0], (1, 0)) * scale[None, :]
    return wm.astype(jnp.bfloat16), shift


def _fold_3x3(w, scale, shift):
    # (Cout,Cin,3,3) -> (9,Cin,Cout); tap index = kh*3 + kw, scale folded in.
    wt = (jnp.transpose(w, (2, 3, 1, 0)).reshape(9, w.shape[1], w.shape[0])
          * scale[None, None, :])
    return wt.astype(jnp.bfloat16), shift


def _init_bottleneck(key, cin, cmid, cout, has_down):
    ks = jax.random.split(key, 8)
    p = {}
    if has_down:
        p['down'] = _fold_1x1(_conv_weight(ks[0], cout, cin, 1), *_frozen_bn(ks[1], cout))
    p['conv1'] = _fold_1x1(_conv_weight(ks[2], cmid, cin, 1), *_frozen_bn(ks[3], cmid))
    p['conv2'] = _fold_3x3(_conv_weight(ks[4], cmid, cmid, 3), *_frozen_bn(ks[5], cmid))
    p['conv3'] = _fold_1x1(_conv_weight(ks[6], cout, cmid, 1), *_frozen_bn(ks[7], cout))
    return p


def init_head_params(key, in_channels, bottleneck_channels, out_channels, block_count):
    keys = jax.random.split(key, block_count)
    blocks = []
    cin = in_channels
    for b in range(block_count):
        has_down = (b == 0)  # first block: stride 2 and in != out channels
        blocks.append(_init_bottleneck(keys[b], cin, bottleneck_channels,
                                       out_channels, has_down))
        cin = out_channels
    return {'blocks': blocks}


# ----------------------------------------------------------------------------
# Full forward (== ResNet50Conv5ROIFeatureExtractor.forward)
# ----------------------------------------------------------------------------
def roi_box_feature_extractor(x_nchw, proposals, params, *, resolution, scale,
                              sampling_ratio):
    rois = convert_to_roi_format(proposals)
    pooled = roi_align(x_nchw, rois, resolution, scale, sampling_ratio)  # (R,P,P,C) NHWC
    h = pooled.astype(jnp.bfloat16)
    strides = [2] + [1] * (len(params['blocks']) - 1)
    for blk, s in zip(params['blocks'], strides):
        h = bottleneck_forward(h, blk, s)
    return jnp.transpose(h, (0, 3, 1, 2)).astype(jnp.float32)            # NCHW f32


if __name__ == "__main__":
    key = jax.random.PRNGKey(0)
    k_params, k_x = jax.random.split(key)

    # Synthetic small config (shapes consistent with the module's __init__ math).
    POOLER_RESOLUTION = 8
    POOLER_SCALE = 0.25
    SAMPLING_RATIO = 2
    NUM_GROUPS = 1
    WIDTH_PER_GROUP = 2
    RES2_OUT_CHANNELS = 8
    STAGE_INDEX = 4
    BLOCK_COUNT = 3
    factor = 2 ** (STAGE_INDEX - 1)                               # 8
    out_channels = RES2_OUT_CHANNELS * factor                     # 64
    in_channels = out_channels // 2                               # 32
    bottleneck_channels = NUM_GROUPS * WIDTH_PER_GROUP * factor   # 16

    # Backbone feature map (NCHW) and per-image proposal boxes (x1,y1,x2,y2).
    x = jax.random.normal(k_x, (2, in_channels, 16, 16), jnp.float32)
    proposals = [
        jnp.array([[1.0, 2.0, 40.0, 50.0], [10.0, 8.0, 60.0, 62.0]], jnp.float32),
        jnp.array([[0.0, 0.0, 30.0, 30.0], [20.0, 20.0, 63.0, 63.0]], jnp.float32),
    ]

    params = init_head_params(k_params, in_channels, bottleneck_channels,
                              out_channels, BLOCK_COUNT)

    forward = jax.jit(functools.partial(
        roi_box_feature_extractor,
        resolution=POOLER_RESOLUTION, scale=POOLER_SCALE,
        sampling_ratio=SAMPLING_RATIO))
    out = forward(x, proposals, params)
    jax.block_until_ready(out)
    assert out.shape == (4, out_channels, POOLER_RESOLUTION // 2, POOLER_RESOLUTION // 2)
    print("KERNEL_OK")
</pallas_src>

<mosaic_0001>
module attributes {stable_mosaic.version = 11 : i64} {
  func.func @_matmul_kernel(%arg0: i32, %arg1: i32, %arg2: i32, %arg3: memref<64x128xbf16, #tpu.memory_space<vmem>>, %arg4: memref<128x128xbf16, #tpu.memory_space<vmem>>, %arg5: memref<1x128xf32, #tpu.memory_space<vmem>>, %arg6: memref<64x128xbf16, #tpu.memory_space<vmem>>, %arg7: memref<64x128xf32, #tpu.memory_space<vmem>>) attributes {dimension_semantics = [#tpu.dimension_semantics<parallel>, #tpu.dimension_semantics<parallel>, #tpu.dimension_semantics<arbitrary>], iteration_bounds = array<i64: 1, 1, 1>, scalar_prefetch = 0 : i64, scratch_operands = 1 : i64, tpu.core_type = #tpu.core_type<tc>, window_params = [{transform_indices = @transform_0, window_bounds = array<i64: 64, 128>}, {transform_indices = @transform_1, window_bounds = array<i64: 128, 128>}, {transform_indices = @transform_2, window_bounds = array<i64: 1, 128>}, {transform_indices = @transform_3, window_bounds = array<i64: 64, 128>}]} {
    %c0_i32 = arith.constant 0 : i32
    %0 = arith.cmpi eq, %arg2, %c0_i32 : i32
    %1 = arith.extui %0 : i1 to i32
    %c0_i32_0 = arith.constant 0 : i32
    %2 = arith.cmpi ne, %1, %c0_i32_0 : i32
    scf.if %2 {
      %cst_10 = arith.constant 0.000000e+00 : f32
      %12 = vector.broadcast %cst_10 : f32 to vector<64x128xf32>
      %c0_11 = arith.constant 0 : index
      %c0_12 = arith.constant 0 : index
      %13 = vector.load %arg7[%c0_11, %c0_12] : memref<64x128xf32, #tpu.memory_space<vmem>>, vector<64x128xf32>
      tpu.vector_store %arg7[%c0_11, %c0_12], %12 {strides = array<i32>} : memref<64x128xf32, #tpu.memory_space<vmem>>, vector<64x128xf32>,
    } else {
    }
    %c0 = arith.constant 0 : index
    %c0_1 = arith.constant 0 : index
    %3 = vector.load %arg7[%c0, %c0_1] : memref<64x128xf32, #tpu.memory_space<vmem>>, vector<64x128xf32>
    %c0_2 = arith.constant 0 : index
    %c0_3 = arith.constant 0 : index
    %4 = vector.load %arg3[%c0_2, %c0_3] : memref<64x128xbf16, #tpu.memory_space<vmem>>, vector<64x128xbf16>
    %c0_4 = arith.constant 0 : index
    %c0_5 = arith.constant 0 : index
    %5 = vector.load %arg4[%c0_4, %c0_5] : memref<128x128xbf16, #tpu.memory_space<vmem>>, vector<128x128xbf16>
    %cst = arith.constant dense<0.000000e+00> : vector<64x128xf32>
    %6 = tpu.matmul %4, %5, %cst {dimension_numbers = #tpu.dot_dimension_numbers<[1], [0], [0], [1], [0, 0, 1, 1], [], []>} : vector<64x128xbf16>, vector<128x128xbf16>, vector<64x128xf32> -> vector<64x128xf32>
    %7 = arith.addf %3, %6 : vector<64x128xf32>
    %c0_6 = arith.constant 0 : index
    %c0_7 = arith.constant 0 : index
    %8 = vector.load %arg7[%c0_6, %c0_7] : memref<64x128xf32, #tpu.memory_space<vmem>>, vector<64x128xf32>
    tpu.vector_store %arg7[%c0_6, %c0_7], %7 {strides = array<i32>} : memref<64x128xf32, #tpu.memory_space<vmem>>, vector<64x128xf32>,
    %c0_i32_8 = arith.constant 0 : i32
    %9 = arith.cmpi eq, %arg2, %c0_i32_8 : i32
    %10 = arith.extui %9 : i1 to i32
    %c0_i32_9 = arith.constant 0 : i32
    %11 = arith.cmpi ne, %10, %c0_i32_9 : i32
    scf.if %11 {
      %c0_10 = arith.constant 0 : index
      %c0_11 = arith.constant 0 : index
      %12 = vector.load %arg7[%c0_10, %c0_11] : memref<64x128xf32, #tpu.memory_space<vmem>>, vector<64x128xf32>
      %c0_12 = arith.constant 0 : index
      %c0_13 = arith.constant 0 : index
      %13 = vector.load %arg5[%c0_12, %c0_13] : memref<1x128xf32, #tpu.memory_space<vmem>>, vector<1x128xf32>
      %14 = vector.broadcast %13 : vector<1x128xf32> to vector<64x128xf32>
      %15 = arith.addf %12, %14 : vector<64x128xf32>
      %cst_14 = arith.constant 0.000000e+00 : f32
      %16 = vector.broadcast %cst_14 : f32 to vector<64x128xf32>
      %17 = arith.maximumf %15, %16 : vector<64x128xf32>
      %18 = arith.truncf %17 : vector<64x128xf32> to vector<64x128xbf16>
      %c0_15 = arith.constant 0 : index
      %c0_16 = arith.constant 0 : index
      %19 = vector.load %arg6[%c0_15, %c0_16] : memref<64x128xbf16, #tpu.memory_space<vmem>>, vector<64x128xbf16>
      tpu.vector_store %arg6[%c0_15, %c0_16], %18 {strides = array<i32>} : memref<64x128xbf16, #tpu.memory_space<vmem>>, vector<64x128xbf16>,
    } else {
    }
    return
  }
  func.func @transform_0(%arg0: i32, %arg1: i32, %arg2: i32) -> (i32, i32) {
    %c0_i32 = arith.constant 0 : i32
    return %arg0, %arg2 : i32, i32
  }
  func.func @transform_1(%arg0: i32, %arg1: i32, %arg2: i32) -> (i32, i32) {
    %c0_i32 = arith.constant 0 : i32
    return %arg2, %arg1 : i32, i32
  }
  func.func @transform_2(%arg0: i32, %arg1: i32, %arg2: i32) -> (i32, i32) {
    %c0_i32 = arith.constant 0 : i32
    %c0_i32_0 = arith.constant 0 : i32
    return %c0_i32, %arg1 : i32, i32
  }
  func.func @transform_3(%arg0: i32, %arg1: i32, %arg2: i32) -> (i32, i32) {
    %c0_i32 = arith.constant 0 : i32
    return %arg0, %arg1 : i32, i32
  }
}

module attributes {stable_mosaic.version = 11 : i64} {
  func.func @_conv3x3_kernel(%arg0: i32, %arg1: i32, %arg2: i32, %arg3: memref<4x42x128xbf16, #tpu.memory_space<vmem>>, %arg4: memref<9x128x128xbf16, #tpu.memory_space<vmem>>, %arg5: memref<1x128xf32, #tpu.memory_space<vmem>>, %arg6: memref<4x24x128xbf16, #tpu.memory_space<vmem>>, %arg7: memref<4x24x128xf32, #tpu.memory_space<vmem>>) attributes {dimension_semantics = [#tpu.dimension_semantics<parallel>, #tpu.dimension_semantics<parallel>, #tpu.dimension_semantics<arbitrary>], iteration_bounds = array<i64: 1, 1, 1>, scalar_prefetch = 0 : i64, scratch_operands = 1 : i64, tpu.core_type = #tpu.core_type<tc>, window_params = [{transform_indices = @transform_0, window_bounds = array<i64: 4, 42, 128>}, {transform_indices = @transform_1, window_bounds = array<i64: 9, 128, 128>}, {transform_indices = @transform_2, window_bounds = array<i64: 1, 128>}, {transform_indices = @transform_3, window_bounds = array<i64: 4, 24, 128>}]} {
    %c0_i32 = arith.constant 0 : i32
    %0 = arith.cmpi eq, %arg2, %c0_i32 : i32
    %1 = arith.extui %0 : i1 to i32
    %c0_i32_0 = arith.constant 0 : i32
    %2 = arith.cmpi ne, %1, %c0_i32_0 : i32
    scf.if %2 {
      %cst_266 = arith.constant 0.000000e+00 : f32
      %242 = vector.broadcast %cst_266 : f32 to vector<4x24x128xf32>
      %c0_267 = arith.constant 0 : index
      %c0_268 = arith.constant 0 : index
      %c0_269 = arith.constant 0 : index
      %243 = vector.load %arg7[%c0_267, %c0_268, %c0_269] : memref<4x24x128xf32, #tpu.memory_space<vmem>>, vector<4x24x128xf32>
      tpu.vector_store %arg7[%c0_267, %c0_268, %c0_269], %242 {strides = array<i32>} : memref<4x24x128xf32, #tpu.memory_space<vmem>>, vector<4x24x128xf32>,
    } else {
    }
    %c0 = arith.constant 0 : index
    %c0_1 = arith.constant 0 : index
    %c0_2 = arith.constant 0 : index
    %3 = vector.load %arg7[%c0, %c0_1, %c0_2] : memref<4x24x128xf32, #tpu.memory_space<vmem>>, vector<1x24x128xf32>
    %4 = vector.shape_cast %3 : vector<1x24x128xf32> to vector<24x128xf32>
    %c0_3 = arith.constant 0 : index
    %c0_4 = arith.constant 0 : index
    %c0_5 = arith.constant 0 : index
    %5 = vector.load %arg3[%c0_3, %c0_4, %c0_5] : memref<4x42x128xbf16, #tpu.memory_space<vmem>>, vector<1x24x128xbf16>
    %6 = vector.shape_cast %5 : vector<1x24x128xbf16> to vector<24x128xbf16>
    %c0_6 = arith.constant 0 : index
    %c0_7 = arith.constant 0 : index
    %c0_8 = arith.constant 0 : index
    %7 = vector.load %arg4[%c0_6, %c0_7, %c0_8] : memref<9x128x128xbf16, #tpu.memory_space<vmem>>, vector<1x128x128xbf16>
    %8 = vector.shape_cast %7 : vector<1x128x128xbf16> to vector<128x128xbf16>
    %cst = arith.constant dense<0.000000e+00> : vector<24x128xf32>
    %9 = tpu.matmul %6, %8, %cst {dimension_numbers = #tpu.dot_dimension_numbers<[1], [0], [0], [1], [0, 0, 1, 1], [], []>} : vector<24x128xbf16>, vector<128x128xbf16>, vector<24x128xf32> -> vector<24x128xf32>
    %10 = arith.addf %4, %9 : vector<24x128xf32>
    %c0_9 = arith.constant 0 : index
    %c1 = arith.constant 1 : index
    %c0_10 = arith.constant 0 : index
    %11 = vector.load %arg3[%c0_9, %c1, %c0_10] : memref<4x42x128xbf16, #tpu.memory_space<vmem>>, vector<1x24x128xbf16>
    %12 = vector.shape_cast %11 : vector<1x24x128xbf16> to vector<24x128xbf16>
    %c1_11 = arith.constant 1 : index
    %c0_12 = arith.constant 0 : index
    %c0_13 = arith.constant 0 : index
    %13 = vector.load %arg4[%c1_11, %c0_12, %c0_13] : memref<9x128x128xbf16, #tpu.memory_space<vmem>>, vector<1x128x128xbf16>
    %14 = vector.shape_cast %13 : vector<1x128x128xbf16> to vector<128x128xbf16>
    %cst_14 = arith.constant dense<0.000000e+00> : vector<24x128xf32>
    %15 = tpu.matmul %12, %14, %cst_14 {dimension_numbers = #tpu.dot_dimension_numbers<[1], [0], [0], [1], [0, 0, 1, 1], [], []>} : vector<24x128xbf16>, vector<128x128xbf16>, vector<24x128xf32> -> vector<24x128xf32>
    %16 = arith.addf %10, %15 : vector<24x128xf32>
    %c0_15 = arith.constant 0 : index
    %c2 = arith.constant 2 : index
    %c0_16 = arith.constant 0 : index
    %17 = vector.load %arg3[%c0_15, %c2, %c0_16] : memref<4x42x128xbf16, #tpu.memory_space<vmem>>, vector<1x24x128xbf16>
    %18 = vector.shape_cast %17 : vector<1x24x128xbf16> to vector<24x128xbf16>
    %c2_17 = arith.constant 2 : index
    %c0_18 = arith.constant 0 : index
    %c0_19 = arith.constant 0 : index
    %19 = vector.load %arg4[%c2_17, %c0_18, %c0_19] : memref<9x128x128xbf16, #tpu.memory_space<vmem>>, vector<1x128x128xbf16>
    %20 = vector.shape_cast %19 : vector<1x128x128xbf16> to vector<128x128xbf16>
    %cst_20 = arith.constant dense<0.000000e+00> : vector<24x128xf32>
    %21 = tpu.matmul %18, %20, %cst_20 {dimension_numbers = #tpu.dot_dimension_numbers<[1], [0], [0], [1], [0, 0, 1, 1], [], []>} : vector<24x128xbf16>, vector<128x128xbf16>, vector<24x128xf32> -> vector<24x128xf32>
    %22 = arith.addf %16, %21 : vector<24x128xf32>
    %c0_21 = arith.constant 0 : index
    %c6 = arith.constant 6 : index
    %c0_22 = arith.constant 0 : index
    %23 = vector.load %arg3[%c0_21, %c6, %c0_22] : memref<4x42x128xbf16, #tpu.memory_space<vmem>>, vector<1x24x128xbf16>
    %24 = vector.shape_cast %23 : vector<1x24x128xbf16> to vector<24x128xbf16>
    %c3 = arith.constant 3 : index
    %c0_23 = arith.constant 0 : index
    %c0_24 = arith.constant 0 : index
    %25 = vector.load %arg4[%c3, %c0_23, %c0_24] : memref<9x128x128xbf16, #tpu.memory_space<vmem>>, vector<1x128x128xbf16>
    %26 = vector.shape_cast %25 : vector<1x128x128xbf16> to vector<128x128xbf16>
    %cst_25 = arith.constant dense<0.000000e+00> : vector<24x128xf32>
    %27 = tpu.matmul %24, %26, %cst_25 {dimension_numbers = #tpu.dot_dimension_numbers<[1], [0], [0], [1], [0, 0, 1, 1], [], []>} : vector<24x128xbf16>, vector<128x128xbf16>, vector<24x128xf32> -> vector<24x128xf32>
    %28 = arith.addf %22, %27 : vector<24x128xf32>
    %c0_26 = arith.constant 0 : index
    %c7 = arith.constant 7 : index
    %c0_27 = arith.constant 0 : index
    %29 = vector.load %arg3[%c0_26, %c7, %c0_27] : memref<4x42x128xbf16, #tpu.memory_space<vmem>>, vector<1x24x128xbf16>
    %30 = vector.shape_cast %29 : vector<1x24x128xbf16> to vector<24x128xbf16>
    %c4 = arith.constant 4 : index
    %c0_28 = arith.constant 0 : index
    %c0_29 = arith.constant 0 : index
    %31 = vector.load %arg4[%c4, %c0_28, %c0_29] : memref<9x128x128xbf16, #tpu.memory_space<vmem>>, vector<1x128x128xbf16>
    %32 = vector.shape_cast %31 : vector<1x128x128xbf16> to vector<128x128xbf16>
    %cst_30 = arith.constant dense<0.000000e+00> : vector<24x128xf32>
    %33 = tpu.matmul %30, %32, %cst_30 {dimension_numbers = #tpu.dot_dimension_numbers<[1], [0], [0], [1], [0, 0, 1, 1], [], []>} : vector<24x128xbf16>, vector<128x128xbf16>, vector<24x128xf32> -> vector<24x128xf32>
    %34 = arith.addf %28, %33 : vector<24x128xf32>
    %c0_31 = arith.constant 0 : index
    %c8 = arith.constant 8 : index
    %c0_32 = arith.constant 0 : index
    %35 = vector.load %arg3[%c0_31, %c8, %c0_32] : memref<4x42x128xbf16, #tpu.memory_space<vmem>>, vector<1x24x128xbf16>
    %36 = vector.shape_cast %35 : vector<1x24x128xbf16> to vector<24x128xbf16>
    %c5 = arith.constant 5 : index
    %c0_33 = arith.constant 0 : index
    %c0_34 = arith.constant 0 : index
    %37 = vector.load %arg4[%c5, %c0_33, %c0_34] : memref<9x128x128xbf16, #tpu.memory_space<vmem>>, vector<1x128x128xbf16>
    %38 = vector.shape_cast %37 : vector<1x128x128xbf16> to vector<128x128xbf16>
    %cst_35 = arith.constant dense<0.000000e+00> : vector<24x128xf32>
    %39 = tpu.matmul %36, %38, %cst_35 {dimension_numbers = #tpu.dot_dimension_numbers<[1], [0], [0], [1], [0, 0, 1, 1], [], []>} : vector<24x128xbf16>, vector<128x128xbf16>, vector<24x128xf32> -> vector<24x128xf32>
    %40 = arith.addf %34, %39 : vector<24x128xf32>
    %c0_36 = arith.constant 0 : index
    %c12 = arith.constant 12 : index
    %c0_37 = arith.constant 0 : index
    %41 = vector.load %arg3[%c0_36, %c12, %c0_37] : memref<4x42x128xbf16, #tpu.memory_space<vmem>>, vector<1x24x128xbf16>
    %42 = vector.shape_cast %41 : vector<1x24x128xbf16> to vector<24x128xbf16>
    %c6_38 = arith.constant 6 : index
    %c0_39 = arith.constant 0 : index
    %c0_40 = arith.constant 0 : index
    %43 = vector.load %arg4[%c6_38, %c0_39, %c0_40] : memref<9x128x128xbf16, #tpu.memory_space<vmem>>, vector<1x128x128xbf16>
    %44 = vector.shape_cast %43 : vector<1x128x128xbf16> to vector<128x128xbf16>
    %cst_41 = arith.constant dense<0.000000e+00> : vector<24x128xf32>
    %45 = tpu.matmul %42, %44, %cst_41 {dimension_numbers = #tpu.dot_dimension_numbers<[1], [0], [0], [1], [0, 0, 1, 1], [], []>} : vector<24x128xbf16>, vector<128x128xbf16>, vector<24x128xf32> -> vector<24x128xf32>
    %46 = arith.addf %40, %45 : vector<24x128xf32>
    %c0_42 = arith.constant 0 : index
    %c13 = arith.constant 13 : index
    %c0_43 = arith.constant 0 : index
    %47 = vector.load %arg3[%c0_42, %c13, %c0_43] : memref<4x42x128xbf16, #tpu.memory_space<vmem>>, vector<1x24x128xbf16>
    %48 = vector.shape_cast %47 : vector<1x24x128xbf16> to vector<24x128xbf16>
    %c7_44 = arith.constant 7 : index
    %c0_45 = arith.constant 0 : index
    %c0_46 = arith.constant 0 : index
    %49 = vector.load %arg4[%c7_44, %c0_45, %c0_46] : memref<9x128x128xbf16, #tpu.memory_space<vmem>>, vector<1x128x128xbf16>
    %50 = vector.shape_cast %49 : vector<1x128x128xbf16> to vector<128x128xbf16>
    %cst_47 = arith.constant dense<0.000000e+00> : vector<24x128xf32>
    %51 = tpu.matmul %48, %50, %cst_47 {dimension_numbers = #tpu.dot_dimension_numbers<[1], [0], [0], [1], [0, 0, 1, 1], [], []>} : vector<24x128xbf16>, vector<128x128xbf16>, vector<24x128xf32> -> vector<24x128xf32>
    %52 = arith.addf %46, %51 : vector<24x128xf32>
    %c0_48 = arith.constant 0 : index
    %c14 = arith.constant 14 : index
    %c0_49 = arith.constant 0 : index
    %53 = vector.load %arg3[%c0_48, %c14, %c0_49] : memref<4x42x128xbf16, #tpu.memory_space<vmem>>, vector<1x24x128xbf16>
    %54 = vector.shape_cast %53 : vector<1x24x128xbf16> to vector<24x128xbf16>
    %c8_50 = arith.constant 8 : index
    %c0_51 = arith.constant 0 : index
    %c0_52 = arith.constant 0 : index
    %55 = vector.load %arg4[%c8_50, %c0_51, %c0_52] : memref<9x128x128xbf16, #tpu.memory_space<vmem>>, vector<1x128x128xbf16>
    %56 = vector.shape_cast %55 : vector<1x128x128xbf16> to vector<128x128xbf16>
    %cst_53 = arith.constant dense<0.000000e+00> : vector<24x128xf32>
    %57 = tpu.matmul %54, %56, %cst_53 {dimension_numbers = #tpu.dot_dimension_numbers<[1], [0], [0], [1], [0, 0, 1, 1], [], []>} : vector<24x128xbf16>, vector<128x128xbf16>, vector<24x128xf32> -> vector<24x128xf32>
    %58 = arith.addf %52, %57 : vector<24x128xf32>
    %c0_54 = arith.constant 0 : index
    %c0_55 = arith.constant 0 : index
    %c0_56 = arith.constant 0 : index
    %59 = vector.load %arg7[%c0_54, %c0_55, %c0_56] : memref<4x24x128xf32, #tpu.memory_space<vmem>>, vector<1x24x128xf32>
    %60 = vector.shape_cast %59 : vector<1x24x128xf32> to vector<24x128xf32>
    %61 = vector.shape_cast %58 : vector<24x128xf32> to vector<1x24x128xf32>
    tpu.vector_store %arg7[%c0_54, %c0_55, %c0_56], %61 {strides = array<i32>} : memref<4x24x128xf32, #tpu.memory_space<vmem>>, vector<1x24x128xf32>,
    %c1_57 = arith.constant 1 : index
    %c0_58 = arith.constant 0 : index
    %c0_59 = arith.constant 0 : index
    %62 = vector.load %arg7[%c1_57, %c0_58, %c0_59] : memref<4x24x128xf32, #tpu.memory_space<vmem>>, vector<1x24x128xf32>
    %63 = vector.shape_cast %62 : vector<1x24x128xf32> to vector<24x128xf32>
    %c1_60 = arith.constant 1 : index
    %c0_61 = arith.constant 0 : index
    %c0_62 = arith.constant 0 : index
    %64 = vector.load %arg3[%c1_60, %c0_61, %c0_62] : memref<4x42x128xbf16, #tpu.memory_space<vmem>>, vector<1x24x128xbf16>
    %65 = vector.shape_cast %64 : vector<1x24x128xbf16> to vector<24x128xbf16>
    %c0_63 = arith.constant 0 : index
    %c0_64 = arith.constant 0 : index
    %c0_65 = arith.constant 0 : index
    %66 = vector.load %arg4[%c0_63, %c0_64, %c0_65] : memref<9x128x128xbf16, #tpu.memory_space<vmem>>, vector<1x128x128xbf16>
    %67 = vector.shape_cast %66 : vector<1x128x128xbf16> to vector<128x128xbf16>
    %cst_66 = arith.constant dense<0.000000e+00> : vector<24x128xf32>
    %68 = tpu.matmul %65, %67, %cst_66 {dimension_numbers = #tpu.dot_dimension_numbers<[1], [0], [0], [1], [0, 0, 1, 1], [], []>} : vector<24x128xbf16>, vector<128x128xbf16>, vector<24x128xf32> -> vector<24x128xf32>
    %69 = arith.addf %63, %68 : vector<24x128xf32>
    %c1_67 = arith.constant 1 : index
    %c1_68 = arith.constant 1 : index
    %c0_69 = arith.constant 0 : index
    %70 = vector.load %arg3[%c1_67, %c1_68, %c0_69] : memref<4x42x128xbf16, #tpu.memory_space<vmem>>, vector<1x24x128xbf16>
    %71 = vector.shape_cast %70 : vector<1x24x128xbf16> to vector<24x128xbf16>
    %c1_70 = arith.constant 1 : index
    %c0_71 = arith.constant 0 : index
    %c0_72 = arith.constant 0 : index
    %72 = vector.load %arg4[%c1_70, %c0_71, %c0_72] : memref<9x128x128xbf16, #tpu.memory_space<vmem>>, vector<1x128x128xbf16>
    %73 = vector.shape_cast %72 : vector<1x128x128xbf16> to vector<128x128xbf16>
    %cst_73 = arith.constant dense<0.000000e+00> : vector<24x128xf32>
    %74 = tpu.matmul %71, %73, %cst_73 {dimension_numbers = #tpu.dot_dimension_numbers<[1], [0], [0], [1], [0, 0, 1, 1], [], []>} : vector<24x128xbf16>, vector<128x128xbf16>, vector<24x128xf32> -> vector<24x128xf32>
    %75 = arith.addf %69, %74 : vector<24x128xf32>
    %c1_74 = arith.constant 1 : index
    %c2_75 = arith.constant 2 : index
    %c0_76 = arith.constant 0 : index
    %76 = vector.load %arg3[%c1_74, %c2_75, %c0_76] : memref<4x42x128xbf16, #tpu.memory_space<vmem>>, vector<1x24x128xbf16>
    %77 = vector.shape_cast %76 : vector<1x24x128xbf16> to vector<24x128xbf16>
    %c2_77 = arith.constant 2 : index
    %c0_78 = arith.constant 0 : index
    %c0_79 = arith.constant 0 : index
    %78 = vector.load %arg4[%c2_77, %c0_78, %c0_79] : memref<9x128x128xbf16, #tpu.memory_space<vmem>>, vector<1x128x128xbf16>
    %79 = vector.shape_cast %78 : vector<1x128x128xbf16> to vector<128x128xbf16>
    %cst_80 = arith.constant dense<0.000000e+00> : vector<24x128xf32>
    %80 = tpu.matmul %77, %79, %cst_80 {dimension_numbers = #tpu.dot_dimension_numbers<[1], [0], [0], [1], [0, 0, 1, 1], [], []>} : vector<24x128xbf16>, vector<128x128xbf16>, vector<24x128xf32> -> vector<24x128xf32>
    %81 = arith.addf %75, %80 : vector<24x128xf32>
    %c1_81 = arith.constant 1 : index
    %c6_82 = arith.constant 6 : index
    %c0_83 = arith.constant 0 : index
    %82 = vector.load %arg3[%c1_81, %c6_82, %c0_83] : memref<4x42x128xbf16, #tpu.memory_space<vmem>>, vector<1x24x128xbf16>
    %83 = vector.shape_cast %82 : vector<1x24x128xbf16> to vector<24x128xbf16>
    %c3_84 = arith.constant 3 : index
    %c0_85 = arith.constant 0 : index
    %c0_86 = arith.constant 0 : index
    %84 = vector.load %arg4[%c3_84, %c0_85, %c0_86] : memref<9x128x128xbf16, #tpu.memory_space<vmem>>, vector<1x128x128xbf16>
    %85 = vector.shape_cast %84 : vector<1x128x128xbf16> to vector<128x128xbf16>
    %cst_87 = arith.constant dense<0.000000e+00> : vector<24x128xf32>
    %86 = tpu.matmul %83, %85, %cst_87 {dimension_numbers = #tpu.dot_dimension_numbers<[1], [0], [0], [1], [0, 0, 1, 1], [], []>} : vector<24x128xbf16>, vector<128x128xbf16>, vector<24x128xf32> -> vector<24x128xf32>
    %87 = arith.addf %81, %86 : vector<24x128xf32>
    %c1_88 = arith.constant 1 : index
    %c7_89 = arith.constant 7 : index
    %c0_90 = arith.constant 0 : index
    %88 = vector.load %arg3[%c1_88, %c7_89, %c0_90] : memref<4x42x128xbf16, #tpu.memory_space<vmem>>, vector<1x24x128xbf16>
    %89 = vector.shape_cast %88 : vector<1x24x128xbf16> to vector<24x128xbf16>
    %c4_91 = arith.constant 4 : index
    %c0_92 = arith.constant 0 : index
    %c0_93 = arith.constant 0 : index
    %90 = vector.load %arg4[%c4_91, %c0_92, %c0_93] : memref<9x128x128xbf16, #tpu.memory_space<vmem>>, vector<1x128x128xbf16>
    %91 = vector.shape_cast %90 : vector<1x128x128xbf16> to vector<128x128xbf16>
    %cst_94 = arith.constant dense<0.000000e+00> : vector<24x128xf32>
    %92 = tpu.matmul %89, %91, %cst_94 {dimension_numbers = #tpu.dot_dimension_numbers<[1], [0], [0], [1], [0, 0, 1, 1], [], []>} : vector<24x128xbf16>, vector<128x128xbf16>, vector<24x128xf32> -> vector<24x128xf32>
    %93 = arith.addf %87, %92 : vector<24x128xf32>
    %c1_95 = arith.constant 1 : index
    %c8_96 = arith.constant 8 : index
    %c0_97 = arith.constant 0 : index
    %94 = vector.load %arg3[%c1_95, %c8_96, %c0_97] : memref<4x42x128xbf16, #tpu.memory_space<vmem>>, vector<1x24x128xbf16>
    %95 = vector.shape_cast %94 : vector<1x24x128xbf16> to vector<24x128xbf16>
    %c5_98 = arith.constant 5 : index
    %c0_99 = arith.constant 0 : index
    %c0_100 = arith.constant 0 : index
    %96 = vector.load %arg4[%c5_98, %c0_99, %c0_100] : memref<9x128x128xbf16, #tpu.memory_space<vmem>>, vector<1x128x128xbf16>
    %97 = vector.shape_cast %96 : vector<1x128x128xbf16> to vector<128x128xbf16>
    %cst_101 = arith.constant dense<0.000000e+00> : vector<24x128xf32>
    %98 = tpu.matmul %95, %97, %cst_101 {dimension_numbers = #tpu.dot_dimension_numbers<[1], [0], [0], [1], [0, 0, 1, 1], [], []>} : vector<24x128xbf16>, vector<128x128xbf16>, vector<24x128xf32> -> vector<24x128xf32>
    %99 = arith.addf %93, %98 : vector<24x128xf32>
    %c1_102 = arith.constant 1 : index
    %c12_103 = arith.constant 12 : index
    %c0_104 = arith.constant 0 : index
    %100 = vector.load %arg3[%c1_102, %c12_103, %c0_104] : memref<4x42x128xbf16, #tpu.memory_space<vmem>>, vector<1x24x128xbf16>
    %101 = vector.shape_cast %100 : vector<1x24x128xbf16> to vector<24x128xbf16>
    %c6_105 = arith.constant 6 : index
    %c0_106 = arith.constant 0 : index
    %c0_107 = arith.constant 0 : index
    %102 = vector.load %arg4[%c6_105, %c0_106, %c0_107] : memref<9x128x128xbf16, #tpu.memory_space<vmem>>, vector<1x128x128xbf16>
    %103 = vector.shape_cast %102 : vector<1x128x128xbf16> to vector<128x128xbf16>
    %cst_108 = arith.constant dense<0.000000e+00> : vector<24x128xf32>
    %104 = tpu.matmul %101, %103, %cst_108 {dimension_numbers = #tpu.dot_dimension_numbers<[1], [0], [0], [1], [0, 0, 1, 1], [], []>} : vector<24x128xbf16>, vector<128x128xbf16>, vector<24x128xf32> -> vector<24x128xf32>
    %105 = arith.addf %99, %104 : vector<24x128xf32>
    %c1_109 = arith.constant 1 : index
    %c13_110 = arith.constant 13 : index
    %c0_111 = arith.constant 0 : index
    %106 = vector.load %arg3[%c1_109, %c13_110, %c0_111] : memref<4x42x128xbf16, #tpu.memory_space<vmem>>, vector<1x24x128xbf16>
    %107 = vector.shape_cast %106 : vector<1x24x128xbf16> to vector<24x128xbf16>
    %c7_112 = arith.constant 7 : index
    %c0_113 = arith.constant 0 : index
    %c0_114 = arith.constant 0 : index
    %108 = vector.load %arg4[%c7_112, %c0_113, %c0_114] : memref<9x128x128xbf16, #tpu.memory_space<vmem>>, vector<1x128x128xbf16>
    %109 = vector.shape_cast %108 : vector<1x128x128xbf16> to vector<128x128xbf16>
    %cst_115 = arith.constant dense<0.000000e+00> : vector<24x128xf32>
    %110 = tpu.matmul %107, %109, %cst_115 {dimension_numbers = #tpu.dot_dimension_numbers<[1], [0], [0], [1], [0, 0, 1, 1], [], []>} : vector<24x128xbf16>, vector<128x128xbf16>, vector<24x128xf32> -> vector<24x128xf32>
    %111 = arith.addf %105, %110 : vector<24x128xf32>
    %c1_116 = arith.constant 1 : index
    %c14_117 = arith.constant 14 : index
    %c0_118 = arith.constant 0 : index
    %112 = vector.load %arg3[%c1_116, %c14_117, %c0_118] : memref<4x42x128xbf16, #tpu.memory_space<vmem>>, vector<1x24x128xbf16>
    %113 = vector.shape_cast %112 : vector<1x24x128xbf16> to vector<24x128xbf16>
    %c8_119 = arith.constant 8 : index
    %c0_120 = arith.constant 0 : index
    %c0_121 = arith.constant 0 : index
    %114 = vector.load %arg4[%c8_119, %c0_120, %c0_121] : memref<9x128x128xbf16, #tpu.memory_space<vmem>>, vector<1x128x128xbf16>
    %115 = vector.shape_cast %114 : vector<1x128x128xbf16> to vector<128x128xbf16>
    %cst_122 = arith.constant dense<0.000000e+00> : vector<24x128xf32>
    %116 = tpu.matmul %113, %115, %cst_122 {dimension_numbers = #tpu.dot_dimension_numbers<[1], [0], [0], [1], [0, 0, 1, 1], [], []>} : vector<24x128xbf16>, vector<128x128xbf16>, vector<24x128xf32> -> vector<24x128xf32>
    %117 = arith.addf %111, %116 : vector<24x128xf32>
    %c1_123 = arith.constant 1 : index
    %c0_124 = arith.constant 0 : index
    %c0_125 = arith.constant 0 : index
    %118 = vector.load %arg7[%c1_123, %c0_124, %c0_125] : memref<4x24x128xf32, #tpu.memory_space<vmem>>, vector<1x24x128xf32>
    %119 = vector.shape_cast %118 : vector<1x24x128xf32> to vector<24x128xf32>
    %120 = vector.shape_cast %117 : vector<24x128xf32> to vector<1x24x128xf32>
    tpu.vector_store %arg7[%c1_123, %c0_124, %c0_125], %120 {strides = array<i32>} : memref<4x24x128xf32, #tpu.memory_space<vmem>>, vector<1x24x128xf32>,
    %c2_126 = arith.constant 2 : index
    %c0_127 = arith.constant 0 : index
    %c0_128 = arith.constant 0 : index
    %121 = vector.load %arg7[%c2_126, %c0_127, %c0_128] : memref<4x24x128xf32, #tpu.memory_space<vmem>>, vector<1x24x128xf32>
    %122 = vector.shape_cast %121 : vector<1x24x128xf32> to vector<24x128xf32>
    %c2_129 = arith.constant 2 : index
    %c0_130 = arith.constant 0 : index
    %c0_131 = arith.constant 0 : index
    %123 = vector.load %arg3[%c2_129, %c0_130, %c0_131] : memref<4x42x128xbf16, #tpu.memory_space<vmem>>, vector<1x24x128xbf16>
    %124 = vector.shape_cast %123 : vector<1x24x128xbf16> to vector<24x128xbf16>
    %c0_132 = arith.constant 0 : index
    %c0_133 = arith.constant 0 : index
    %c0_134 = arith.constant 0 : index
    %125 = vector.load %arg4[%c0_132, %c0_133, %c0_134] : memref<9x128x128xbf16, #tpu.memory_space<vmem>>, vector<1x128x128xbf16>
    %126 = vector.shape_cast %125 : vector<1x128x128xbf16> to vector<128x128xbf16>
    %cst_135 = arith.constant dense<0.000000e+00> : vector<24x128xf32>
    %127 = tpu.matmul %124, %126, %cst_135 {dimension_numbers = #tpu.dot_dimension_numbers<[1], [0], [0], [1], [0, 0, 1, 1], [], []>} : vector<24x128xbf16>, vector<128x128xbf16>, vector<24x128xf32> -> vector<24x128xf32>
    %128 = arith.addf %122, %127 : vector<24x128xf32>
    %c2_136 = arith.constant 2 : index
    %c1_137 = arith.constant 1 : index
    %c0_138 = arith.constant 0 : index
    %129 = vector.load %arg3[%c2_136, %c1_137, %c0_138] : memref<4x42x128xbf16, #tpu.memory_space<vmem>>, vector<1x24x128xbf16>
    %130 = vector.shape_cast %129 : vector<1x24x128xbf16> to vector<24x128xbf16>
    %c1_139 = arith.constant 1 : index
    %c0_140 = arith.constant 0 : index
    %c0_141 = arith.constant 0 : index
    %131 = vector.load %arg4[%c1_139, %c0_140, %c0_141] : memref<9x128x128xbf16, #tpu.memory_space<vmem>>, vector<1x128x128xbf16>
    %132 = vector.shape_cast %131 : vector<1x128x128xbf16> to vector<128x128xbf16>
    %cst_142 = arith.constant dense<0.000000e+00> : vector<24x128xf32>
    %133 = tpu.matmul %130, %132, %cst_142 {dimension_numbers = #tpu.dot_dimension_numbers<[1], [0], [0], [1], [0, 0, 1, 1], [], []>} : vector<24x128xbf16>, vector<128x128xbf16>, vector<24x128xf32> -> vector<24x128xf32>
    %134 = arith.addf %128, %133 : vector<24x128xf32>
    %c2_143 = arith.constant 2 : index
    %c2_144 = arith.constant 2 : index
    %c0_145 = arith.constant 0 : index
    %135 = vector.load %arg3[%c2_143, %c2_144, %c0_145] : memref<4x42x128xbf16, #tpu.memory_space<vmem>>, vector<1x24x128xbf16>
    %136 = vector.shape_cast %135 : vector<1x24x128xbf16> to vector<24x128xbf16>
    %c2_146 = arith.constant 2 : index
    %c0_147 = arith.constant 0 : index
    %c0_148 = arith.constant 0 : index
    %137 = vector.load %arg4[%c2_146, %c0_147, %c0_148] : memref<9x128x128xbf16, #tpu.memory_space<vmem>>, vector<1x128x128xbf16>
    %138 = vector.shape_cast %137 : vector<1x128x128xbf16> to vector<128x128xbf16>
    %cst_149 = arith.constant dense<0.000000e+00> : vector<24x128xf32>
    %139 = tpu.matmul %136, %138, %cst_149 {dimension_numbers = #tpu.dot_dimension_numbers<[1], [0], [0], [1], [0, 0, 1, 1], [], []>} : vector<24x128xbf16>, vector<128x128xbf16>, vector<24x128xf32> -> vector<24x128xf32>
    %140 = arith.addf %134, %139 : vector<24x128xf32>
    %c2_150 = arith.constant 2 : index
    %c6_151 = arith.constant 6 : index
    %c0_152 = arith.constant 0 : index
    %141 = vector.load %arg3[%c2_150, %c6_151, %c0_152] : memref<4x42x128xbf16, #tpu.memory_space<vmem>>, vector<1x24x128xbf16>
    %142 = vector.shape_cast %141 : vector<1x24x128xbf16> to vector<24x128xbf16>
    %c3_153 = arith.constant 3 : index
    %c0_154 = arith.constant 0 : index
    %c0_155 = arith.constant 0 : index
    %143 = vector.load %arg4[%c3_153, %c0_154, %c0_155] : memref<9x128x128xbf16, #tpu.memory_space<vmem>>, vector<1x128x128xbf16>
    %144 = vector.shape_cast %143 : vector<1x128x128xbf16> to vector<128x128xbf16>
    %cst_156 = arith.constant dense<0.000000e+00> : vector<24x128xf32>
    %145 = tpu.matmul %142, %144, %cst_156 {dimension_numbers = #tpu.dot_dimension_numbers<[1], [0], [0], [1], [0, 0, 1, 1], [], []>} : vector<24x128xbf16>, vector<128x128xbf16>, vector<24x128xf32> -> vector<24x128xf32>
    %146 = arith.addf %140, %145 : vector<24x128xf32>
    %c2_157 = arith.constant 2 : index
    %c7_158 = arith.constant 7 : index
    %c0_159 = arith.constant 0 : index
    %147 = vector.load %arg3[%c2_157, %c7_158, %c0_159] : memref<4x42x128xbf16, #tpu.memory_space<vmem>>, vector<1x24x128xbf16>
    %148 = vector.shape_cast %147 : vector<1x24x128xbf16> to vector<24x128xbf16>
    %c4_160 = arith.constant 4 : index
    %c0_161 = arith.constant 0 : index
    %c0_162 = arith.constant 0 : index
    %149 = vector.load %arg4[%c4_160, %c0_161, %c0_162] : memref<9x128x128xbf16, #tpu.memory_space<vmem>>, vector<1x128x128xbf16>
    %150 = vector.shape_cast %149 : vector<1x128x128xbf16> to vector<128x128xbf16>
    %cst_163 = arith.constant dense<0.000000e+00> : vector<24x128xf32>
    %151 = tpu.matmul %148, %150, %cst_163 {dimension_numbers = #tpu.dot_dimension_numbers<[1], [0], [0], [1], [0, 0, 1, 1], [], []>} : vector<24x128xbf16>, vector<128x128xbf16>, vector<24x128xf32> -> vector<24x128xf32>
    %152 = arith.addf %146, %151 : vector<24x128xf32>
    %c2_164 = arith.constant 2 : index
    %c8_165 = arith.constant 8 : index
    %c0_166 = arith.constant 0 : index
    %153 = vector.load %arg3[%c2_164, %c8_165, %c0_166] : memref<4x42x128xbf16, #tpu.memory_space<vmem>>, vector<1x24x128xbf16>
    %154 = vector.shape_cast %153 : vector<1x24x128xbf16> to vector<24x128xbf16>
    %c5_167 = arith.constant 5 : index
    %c0_168 = arith.constant 0 : index
    %c0_169 = arith.constant 0 : index
    %155 = vector.load %arg4[%c5_167, %c0_168, %c0_169] : memref<9x128x128xbf16, #tpu.memory_space<vmem>>, vector<1x128x128xbf16>
    %156 = vector.shape_cast %155 : vector<1x128x128xbf16> to vector<128x128xbf16>
    %cst_170 = arith.constant dense<0.000000e+00> : vector<24x128xf32>
    %157 = tpu.matmul %154, %156, %cst_170 {dimension_numbers = #tpu.dot_dimension_numbers<[1], [0], [0], [1], [0, 0, 1, 1], [], []>} : vector<24x128xbf16>, vector<128x128xbf16>, vector<24x128xf32> -> vector<24x128xf32>
    %158 = arith.addf %152, %157 : vector<24x128xf32>
    %c2_171 = arith.constant 2 : index
    %c12_172 = arith.constant 12 : index
    %c0_173 = arith.constant 0 : index
    %159 = vector.load %arg3[%c2_171, %c12_172, %c0_173] : memref<4x42x128xbf16, #tpu.memory_space<vmem>>, vector<1x24x128xbf16>
    %160 = vector.shape_cast %159 : vector<1x24x128xbf16> to vector<24x128xbf16>
    %c6_174 = arith.constant 6 : index
    %c0_175 = arith.constant 0 : index
    %c0_176 = arith.constant 0 : index
    %161 = vector.load %arg4[%c6_174, %c0_175, %c0_176] : memref<9x128x128xbf16, #tpu.memory_space<vmem>>, vector<1x128x128xbf16>
    %162 = vector.shape_cast %161 : vector<1x128x128xbf16> to vector<128x128xbf16>
    %cst_177 = arith.constant dense<0.000000e+00> : vector<24x128xf32>
    %163 = tpu.matmul %160, %162, %cst_177 {dimension_numbers = #tpu.dot_dimension_numbers<[1], [0], [0], [1], [0, 0, 1, 1], [], []>} : vector<24x128xbf16>, vector<128x128xbf16>, vector<24x128xf32> -> vector<24x128xf32>
    %164 = arith.addf %158, %163 : vector<24x128xf32>
    %c2_178 = arith.constant 2 : index
    %c13_179 = arith.constant 13 : index
    %c0_180 = arith.constant 0 : index
    %165 = vector.load %arg3[%c2_178, %c13_179, %c0_180] : memref<4x42x128xbf16, #tpu.memory_space<vmem>>, vector<1x24x128xbf16>
    %166 = vector.shape_cast %165 : vector<1x24x128xbf16> to vector<24x128xbf16>
    %c7_181 = arith.constant 7 : index
    %c0_182 = arith.constant 0 : index
    %c0_183 = arith.constant 0 : index
    %167 = vector.load %arg4[%c7_181, %c0_182, %c0_183] : memref<9x128x128xbf16, #tpu.memory_space<vmem>>, vector<1x128x128xbf16>
    %168 = vector.shape_cast %167 : vector<1x128x128xbf16> to vector<128x128xbf16>
    %cst_184 = arith.constant dense<0.000000e+00> : vector<24x128xf32>
    %169 = tpu.matmul %166, %168, %cst_184 {dimension_numbers = #tpu.dot_dimension_numbers<[1], [0], [0], [1], [0, 0, 1, 1], [], []>} : vector<24x128xbf16>, vector<128x128xbf16>, vector<24x128xf32> -> vector<24x128xf32>
    %170 = arith.addf %164, %169 : vector<24x128xf32>
    %c2_185 = arith.constant 2 : index
    %c14_186 = arith.constant 14 : index
    %c0_187 = arith.constant 0 : index
    %171 = vector.load %arg3[%c2_185, %c14_186, %c0_187] : memref<4x42x128xbf16, #tpu.memory_space<vmem>>, vector<1x24x128xbf16>
    %172 = vector.shape_cast %171 : vector<1x24x128xbf16> to vector<24x128xbf16>
    %c8_188 = arith.constant 8 : index
    %c0_189 = arith.constant 0 : index
    %c0_190 = arith.constant 0 : index
    %173 = vector.load %arg4[%c8_188, %c0_189, %c0_190] : memref<9x128x128xbf16, #tpu.memory_space<vmem>>, vector<1x128x128xbf16>
    %174 = vector.shape_cast %173 : vector<1x128x128xbf16> to vector<128x128xbf16>
    %cst_191 = arith.constant dense<0.000000e+00> : vector<24x128xf32>
    %175 = tpu.matmul %172, %174, %cst_191 {dimension_numbers = #tpu.dot_dimension_numbers<[1], [0], [0], [1], [0, 0, 1, 1], [], []>} : vector<24x128xbf16>, vector<128x128xbf16>, vector<24x128xf32> -> vector<24x128xf32>
    %176 = arith.addf %170, %175 : vector<24x128xf32>
    %c2_192 = arith.constant 2 : index
    %c0_193 = arith.constant 0 : index
    %c0_194 = arith.constant 0 : index
    %177 = vector.load %arg7[%c2_192, %c0_193, %c0_194] : memref<4x24x128xf32, #tpu.memory_space<vmem>>, vector<1x24x128xf32>
    %178 = vector.shape_cast %177 : vector<1x24x128xf32> to vector<24x128xf32>
    %179 = vector.shape_cast %176 : vector<24x128xf32> to vector<1x24x128xf32>
    tpu.vector_store %arg7[%c2_192, %c0_193, %c0_194], %179 {strides = array<i32>} : memref<4x24x128xf32, #tpu.memory_space<vmem>>, vector<1x24x128xf32>,
    %c3_195 = arith.constant 3 : index
    %c0_196 = arith.constant 0 : index
    %c0_197 = arith.constant 0 : index
    %180 = vector.load %arg7[%c3_195, %c0_196, %c0_197] : memref<4x24x128xf32, #tpu.memory_space<vmem>>, vector<1x24x128xf32>
    %181 = vector.shape_cast %180 : vector<1x24x128xf32> to vector<24x128xf32>
    %c3_198 = arith.constant 3 : index
    %c0_199 = arith.constant 0 : index
    %c0_200 = arith.constant 0 : index
    %182 = vector.load %arg3[%c3_198, %c0_199, %c0_200] : memref<4x42x128xbf16, #tpu.memory_space<vmem>>, vector<1x24x128xbf16>
    %183 = vector.shape_cast %182 : vector<1x24x128xbf16> to vector<24x128xbf16>
    %c0_201 = arith.constant 0 : index
    %c0_202 = arith.constant 0 : index
    %c0_203 = arith.constant 0 : index
    %184 = vector.load %arg4[%c0_201, %c0_202, %c0_203] : memref<9x128x128xbf16, #tpu.memory_space<vmem>>, vector<1x128x128xbf16>
    %185 = vector.shape_cast %184 : vector<1x128x128xbf16> to vector<128x128xbf16>
    %cst_204 = arith.constant dense<0.000000e+00> : vector<24x128xf32>
    %186 = tpu.matmul %183, %185, %cst_204 {dimension_numbers = #tpu.dot_dimension_numbers<[1], [0], [0], [1], [0, 0, 1, 1], [], []>} : vector<24x128xbf16>, vector<128x128xbf16>, vector<24x128xf32> -> vector<24x128xf32>
    %187 = arith.addf %181, %186 : vector<24x128xf32>
    %c3_205 = arith.constant 3 : index
    %c1_206 = arith.constant 1 : index
    %c0_207 = arith.constant 0 : index
    %188 = vector.load %arg3[%c3_205, %c1_206, %c0_207] : memref<4x42x128xbf16, #tpu.memory_space<vmem>>, vector<1x24x128xbf16>
    %189 = vector.shape_cast %188 : vector<1x24x128xbf16> to vector<24x128xbf16>
    %c1_208 = arith.constant 1 : index
    %c0_209 = arith.constant 0 : index
    %c0_210 = arith.constant 0 : index
    %190 = vector.load %arg4[%c1_208, %c0_209, %c0_210] : memref<9x128x128xbf16, #tpu.memory_space<vmem>>, vector<1x128x128xbf16>
    %191 = vector.shape_cast %190 : vector<1x128x128xbf16> to vector<128x128xbf16>
    %cst_211 = arith.constant dense<0.000000e+00> : vector<24x128xf32>
    %192 = tpu.matmul %189, %191, %cst_211 {dimension_numbers = #tpu.dot_dimension_numbers<[1], [0], [0], [1], [0, 0, 1, 1], [], []>} : vector<24x128xbf16>, vector<128x128xbf16>, vector<24x128xf32> -> vector<24x128xf32>
    %193 = arith.addf %187, %192 : vector<24x128xf32>
    %c3_212 = arith.constant 3 : index
    %c2_213 = arith.constant 2 : index
    %c0_214 = arith.constant 0 : index
    %194 = vector.load %arg3[%c3_212, %c2_213, %c0_214] : memref<4x42x128xbf16, #tpu.memory_space<vmem>>, vector<1x24x128xbf16>
    %195 = vector.shape_cast %194 : vector<1x24x128xbf16> to vector<24x128xbf16>
    %c2_215 = arith.constant 2 : index
    %c0_216 = arith.constant 0 : index
    %c0_217 = arith.constant 0 : index
    %196 = vector.load %arg4[%c2_215, %c0_216, %c0_217] : memref<9x128x128xbf16, #tpu.memory_space<vmem>>, vector<1x128x128xbf16>
    %197 = vector.shape_cast %196 : vector<1x128x128xbf16> to vector<128x128xbf16>
    %cst_218 = arith.constant dense<0.000000e+00> : vector<24x128xf32>
    %198 = tpu.matmul %195, %197, %cst_218 {dimension_numbers = #tpu.dot_dimension_numbers<[1], [0], [0], [1], [0, 0, 1, 1], [], []>} : vector<24x128xbf16>, vector<128x128xbf16>, vector<24x128xf32> -> vector<24x128xf32>
    %199 = arith.addf %193, %198 : vector<24x128xf32>
    %c3_219 = arith.constant 3 : index
    %c6_220 = arith.constant 6 : index
    %c0_221 = arith.constant 0 : index
    %200 = vector.load %arg3[%c3_219, %c6_220, %c0_221] : memref<4x42x128xbf16, #tpu.memory_space<vmem>>, vector<1x24x128xbf16>
    %201 = vector.shape_cast %200 : vector<1x24x128xbf16> to vector<24x128xbf16>
    %c3_222 = arith.constant 3 : index
    %c0_223 = arith.constant 0 : index
    %c0_224 = arith.constant 0 : index
    %202 = vector.load %arg4[%c3_222, %c0_223, %c0_224] : memref<9x128x128xbf16, #tpu.memory_space<vmem>>, vector<1x128x128xbf16>
    %203 = vector.shape_cast %202 : vector<1x128x128xbf16> to vector<128x128xbf16>
    %cst_225 = arith.constant dense<0.000000e+00> : vector<24x128xf32>
    %204 = tpu.matmul %201, %203, %cst_225 {dimension_numbers = #tpu.dot_dimension_numbers<[1], [0], [0], [1], [0, 0, 1, 1], [], []>} : vector<24x128xbf16>, vector<128x128xbf16>, vector<24x128xf32> -> vector<24x128xf32>
    %205 = arith.addf %199, %204 : vector<24x128xf32>
    %c3_226 = arith.constant 3 : index
    %c7_227 = arith.constant 7 : index
    %c0_228 = arith.constant 0 : index
    %206 = vector.load %arg3[%c3_226, %c7_227, %c0_228] : memref<4x42x128xbf16, #tpu.memory_space<vmem>>, vector<1x24x128xbf16>
    %207 = vector.shape_cast %206 : vector<1x24x128xbf16> to vector<24x128xbf16>
    %c4_229 = arith.constant 4 : index
    %c0_230 = arith.constant 0 : index
    %c0_231 = arith.constant 0 : index
    %208 = vector.load %arg4[%c4_229, %c0_230, %c0_231] : memref<9x128x128xbf16, #tpu.memory_space<vmem>>, vector<1x128x128xbf16>
    %209 = vector.shape_cast %208 : vector<1x128x128xbf16> to vector<128x128xbf16>
    %cst_232 = arith.constant dense<0.000000e+00> : vector<24x128xf32>
    %210 = tpu.matmul %207, %209, %cst_232 {dimension_numbers = #tpu.dot_dimension_numbers<[1], [0], [0], [1], [0, 0, 1, 1], [], []>} : vector<24x128xbf16>, vector<128x128xbf16>, vector<24x128xf32> -> vector<24x128xf32>
    %211 = arith.addf %205, %210 : vector<24x128xf32>
    %c3_233 = arith.constant 3 : index
    %c8_234 = arith.constant 8 : index
    %c0_235 = arith.constant 0 : index
    %212 = vector.load %arg3[%c3_233, %c8_234, %c0_235] : memref<4x42x128xbf16, #tpu.memory_space<vmem>>, vector<1x24x128xbf16>
    %213 = vector.shape_cast %212 : vector<1x24x128xbf16> to vector<24x128xbf16>
    %c5_236 = arith.constant 5 : index
    %c0_237 = arith.constant 0 : index
    %c0_238 = arith.constant 0 : index
    %214 = vector.load %arg4[%c5_236, %c0_237, %c0_238] : memref<9x128x128xbf16, #tpu.memory_space<vmem>>, vector<1x128x128xbf16>
    %215 = vector.shape_cast %214 : vector<1x128x128xbf16> to vector<128x128xbf16>
    %cst_239 = arith.constant dense<0.000000e+00> : vector<24x128xf32>
    %216 = tpu.matmul %213, %215, %cst_239 {dimension_numbers = #tpu.dot_dimension_numbers<[1], [0], [0], [1], [0, 0, 1, 1], [], []>} : vector<24x128xbf16>, vector<128x128xbf16>, vector<24x128xf32> -> vector<24x128xf32>
    %217 = arith.addf %211, %216 : vector<24x128xf32>
    %c3_240 = arith.constant 3 : index
    %c12_241 = arith.constant 12 : index
    %c0_242 = arith.constant 0 : index
    %218 = vector.load %arg3[%c3_240, %c12_241, %c0_242] : memref<4x42x128xbf16, #tpu.memory_space<vmem>>, vector<1x24x128xbf16>
    %219 = vector.shape_cast %218 : vector<1x24x128xbf16> to vector<24x128xbf16>
    %c6_243 = arith.constant 6 : index
    %c0_244 = arith.constant 0 : index
    %c0_245 = arith.constant 0 : index
    %220 = vector.load %arg4[%c6_243, %c0_244, %c0_245] : memref<9x128x128xbf16, #tpu.memory_space<vmem>>, vector<1x128x128xbf16>
    %221 = vector.shape_cast %220 : vector<1x128x128xbf16> to vector<128x128xbf16>
    %cst_246 = arith.constant dense<0.000000e+00> : vector<24x128xf32>
    %222 = tpu.matmul %219, %221, %cst_246 {dimension_numbers = #tpu.dot_dimension_numbers<[1], [0], [0], [1], [0, 0, 1, 1], [], []>} : vector<24x128xbf16>, vector<128x128xbf16>, vector<24x128xf32> -> vector<24x128xf32>
    %223 = arith.addf %217, %222 : vector<24x128xf32>
    %c3_247 = arith.constant 3 : index
    %c13_248 = arith.constant 13 : index
    %c0_249 = arith.constant 0 : index
    %224 = vector.load %arg3[%c3_247, %c13_248, %c0_249] : memref<4x42x128xbf16, #tpu.memory_space<vmem>>, vector<1x24x128xbf16>
    %225 = vector.shape_cast %224 : vector<1x24x128xbf16> to vector<24x128xbf16>
    %c7_250 = arith.constant 7 : index
    %c0_251 = arith.constant 0 : index
    %c0_252 = arith.constant 0 : index
    %226 = vector.load %arg4[%c7_250, %c0_251, %c0_252] : memref<9x128x128xbf16, #tpu.memory_space<vmem>>, vector<1x128x128xbf16>
    %227 = vector.shape_cast %226 : vector<1x128x128xbf16> to vector<128x128xbf16>
    %cst_253 = arith.constant dense<0.000000e+00> : vector<24x128xf32>
    %228 = tpu.matmul %225, %227, %cst_253 {dimension_numbers = #tpu.dot_dimension_numbers<[1], [0], [0], [1], [0, 0, 1, 1], [], []>} : vector<24x128xbf16>, vector<128x128xbf16>, vector<24x128xf32> -> vector<24x128xf32>
    %229 = arith.addf %223, %228 : vector<24x128xf32>
    %c3_254 = arith.constant 3 : index
    %c14_255 = arith.constant 14 : index
    %c0_256 = arith.constant 0 : index
    %230 = vector.load %arg3[%c3_254, %c14_255, %c0_256] : memref<4x42x128xbf16, #tpu.memory_space<vmem>>, vector<1x24x128xbf16>
    %231 = vector.shape_cast %230 : vector<1x24x128xbf16> to vector<24x128xbf16>
    %c8_257 = arith.constant 8 : index
    %c0_258 = arith.constant 0 : index
    %c0_259 = arith.constant 0 : index
    %232 = vector.load %arg4[%c8_257, %c0_258, %c0_259] : memref<9x128x128xbf16, #tpu.memory_space<vmem>>, vector<1x128x128xbf16>
    %233 = vector.shape_cast %232 : vector<1x128x128xbf16> to vector<128x128xbf16>
    %cst_260 = arith.constant dense<0.000000e+00> : vector<24x128xf32>
    %234 = tpu.matmul %231, %233, %cst_260 {dimension_numbers = #tpu.dot_dimension_numbers<[1], [0], [0], [1], [0, 0, 1, 1], [], []>} : vector<24x128xbf16>, vector<128x128xbf16>, vector<24x128xf32> -> vector<24x128xf32>
    %235 = arith.addf %229, %234 : vector<24x128xf32>
    %c3_261 = arith.constant 3 : index
    %c0_262 = arith.constant 0 : index
    %c0_263 = arith.constant 0 : index
    %236 = vector.load %arg7[%c3_261, %c0_262, %c0_263] : memref<4x24x128xf32, #tpu.memory_space<vmem>>, vector<1x24x128xf32>
    %237 = vector.shape_cast %236 : vector<1x24x128xf32> to vector<24x128xf32>
    %238 = vector.shape_cast %235 : vector<24x128xf32> to vector<1x24x128xf32>
    tpu.vector_store %arg7[%c3_261, %c0_262, %c0_263], %238 {strides = array<i32>} : memref<4x24x128xf32, #tpu.memory_space<vmem>>, vector<1x24x128xf32>,
    %c0_i32_264 = arith.constant 0 : i32
    %239 = arith.cmpi eq, %arg2, %c0_i32_264 : i32
    %240 = arith.extui %239 : i1 to i32
    %c0_i32_265 = arith.constant 0 : i32
    %241 = arith.cmpi ne, %240, %c0_i32_265 : i32
    scf.if %241 {
      %c0_266 = arith.constant 0 : index
      %c0_267 = arith.constant 0 : index
      %c0_268 = arith.constant 0 : index
      %242 = vector.load %arg7[%c0_266, %c0_267, %c0_268] : memref<4x24x128xf32, #tpu.memory_space<vmem>>, vector<4x24x128xf32>
      %c0_269 = arith.constant 0 : index
      %c0_270 = arith.constant 0 : index
      %243 = vector.load %arg5[%c0_269, %c0_270] : memref<1x128xf32, #tpu.memory_space<vmem>>, vector<1x128xf32>
      %244 = vector.shape_cast %243 : vector<1x128xf32> to vector<1x1x128xf32>
      %245 = vector.broadcast %244 : vector<1x1x128xf32> to vector<4x24x128xf32>
      %246 = arith.addf %242, %245 : vector<4x24x128xf32>
      %cst_271 = arith.constant 0.000000e+00 : f32
      %247 = vector.broadcast %cst_271 : f32 to vector<4x24x128xf32>
      %248 = arith.maximumf %246, %247 : vector<4x24x128xf32>
      %249 = arith.truncf %248 : vector<4x24x128xf32> to vector<4x24x128xbf16>
      %c0_272 = arith.constant 0 : index
      %c0_273 = arith.constant 0 : index
      %c0_274 = arith.constant 0 : index
      %250 = vector.load %arg6[%c0_272, %c0_273, %c0_274] : memref<4x24x128xbf16, #tpu.memory_space<vmem>>, vector<4x24x128xbf16>
      tpu.vector_store %arg6[%c0_272, %c0_273, %c0_274], %249 {strides = array<i32>} : memref<4x24x128xbf16, #tpu.memory_space<vmem>>, vector<4x24x128xbf16>,
    } else {
    }
    return
  }
  func.func @transform_0(%arg0: i32, %arg1: i32, %arg2: i32) -> (i32, i32, i32) {
    %c0_i32 = arith.constant 0 : i32
    %c0_i32_0 = arith.constant 0 : i32
    return %arg0, %c0_i32, %arg2 : i32, i32, i32
  }
  func.func @transform_1(%arg0: i32, %arg1: i32, %arg2: i32) -> (i32, i32, i32) {
    %c0_i32 = arith.constant 0 : i32
    %c0_i32_0 = arith.constant 0 : i32
    return %c0_i32, %arg2, %arg1 : i32, i32, i32
  }
  func.func @transform_2(%arg0: i32, %arg1: i32, %arg2: i32) -> (i32, i32) {
    %c0_i32 = arith.constant 0 : i32
    %c0_i32_0 = arith.constant 0 : i32
    return %c0_i32, %arg1 : i32, i32
  }
  func.func @transform_3(%arg0: i32, %arg1: i32, %arg2: i32) -> (i32, i32, i32) {
    %c0_i32 = arith.constant 0 : i32
    %c0_i32_0 = arith.constant 0 : i32
    return %arg0, %c0_i32, %arg1 : i32, i32, i32
  }
}

module attributes {stable_mosaic.version = 11 : i64} {
  func.func @_matmul_kernel(%arg0: i32, %arg1: i32, %arg2: i32, %arg3: memref<64x128xbf16, #tpu.memory_space<vmem>>, %arg4: memref<128x128xbf16, #tpu.memory_space<vmem>>, %arg5: memref<1x128xf32, #tpu.memory_space<vmem>>, %arg6: memref<64x128xbf16, #tpu.memory_space<vmem>>, %arg7: memref<64x128xf32, #tpu.memory_space<vmem>>) attributes {dimension_semantics = [#tpu.dimension_semantics<parallel>, #tpu.dimension_semantics<parallel>, #tpu.dimension_semantics<arbitrary>], iteration_bounds = array<i64: 1, 1, 1>, scalar_prefetch = 0 : i64, scratch_operands = 1 : i64, tpu.core_type = #tpu.core_type<tc>, window_params = [{transform_indices = @transform_0, window_bounds = array<i64: 64, 128>}, {transform_indices = @transform_1, window_bounds = array<i64: 128, 128>}, {transform_indices = @transform_2, window_bounds = array<i64: 1, 128>}, {transform_indices = @transform_3, window_bounds = array<i64: 64, 128>}]} {
    %c0_i32 = arith.constant 0 : i32
    %0 = arith.cmpi eq, %arg2, %c0_i32 : i32
    %1 = arith.extui %0 : i1 to i32
    %c0_i32_0 = arith.constant 0 : i32
    %2 = arith.cmpi ne, %1, %c0_i32_0 : i32
    scf.if %2 {
      %cst_10 = arith.constant 0.000000e+00 : f32
      %12 = vector.broadcast %cst_10 : f32 to vector<64x128xf32>
      %c0_11 = arith.constant 0 : index
      %c0_12 = arith.constant 0 : index
      %13 = vector.load %arg7[%c0_11, %c0_12] : memref<64x128xf32, #tpu.memory_space<vmem>>, vector<64x128xf32>
      tpu.vector_store %arg7[%c0_11, %c0_12], %12 {strides = array<i32>} : memref<64x128xf32, #tpu.memory_space<vmem>>, vector<64x128xf32>,
    } else {
    }
    %c0 = arith.constant 0 : index
    %c0_1 = arith.constant 0 : index
    %3 = vector.load %arg7[%c0, %c0_1] : memref<64x128xf32, #tpu.memory_space<vmem>>, vector<64x128xf32>
    %c0_2 = arith.constant 0 : index
    %c0_3 = arith.constant 0 : index
    %4 = vector.load %arg3[%c0_2, %c0_3] : memref<64x128xbf16, #tpu.memory_space<vmem>>, vector<64x128xbf16>
    %c0_4 = arith.constant 0 : index
    %c0_5 = arith.constant 0 : index
    %5 = vector.load %arg4[%c0_4, %c0_5] : memref<128x128xbf16, #tpu.memory_space<vmem>>, vector<128x128xbf16>
    %cst = arith.constant dense<0.000000e+00> : vector<64x128xf32>
    %6 = tpu.matmul %4, %5, %cst {dimension_numbers = #tpu.dot_dimension_numbers<[1], [0], [0], [1], [0, 0, 1, 1], [], []>} : vector<64x128xbf16>, vector<128x128xbf16>, vector<64x128xf32> -> vector<64x128xf32>
    %7 = arith.addf %3, %6 : vector<64x128xf32>
    %c0_6 = arith.constant 0 : index
    %c0_7 = arith.constant 0 : index
    %8 = vector.load %arg7[%c0_6, %c0_7] : memref<64x128xf32, #tpu.memory_space<vmem>>, vector<64x128xf32>
    tpu.vector_store %arg7[%c0_6, %c0_7], %7 {strides = array<i32>} : memref<64x128xf32, #tpu.memory_space<vmem>>, vector<64x128xf32>,
    %c0_i32_8 = arith.constant 0 : i32
    %9 = arith.cmpi eq, %arg2, %c0_i32_8 : i32
    %10 = arith.extui %9 : i1 to i32
    %c0_i32_9 = arith.constant 0 : i32
    %11 = arith.cmpi ne, %10, %c0_i32_9 : i32
    scf.if %11 {
      %c0_10 = arith.constant 0 : index
      %c0_11 = arith.constant 0 : index
      %12 = vector.load %arg7[%c0_10, %c0_11] : memref<64x128xf32, #tpu.memory_space<vmem>>, vector<64x128xf32>
      %c0_12 = arith.constant 0 : index
      %c0_13 = arith.constant 0 : index
      %13 = vector.load %arg5[%c0_12, %c0_13] : memref<1x128xf32, #tpu.memory_space<vmem>>, vector<1x128xf32>
      %14 = vector.broadcast %13 : vector<1x128xf32> to vector<64x128xf32>
      %15 = arith.addf %12, %14 : vector<64x128xf32>
      %16 = arith.truncf %15 : vector<64x128xf32> to vector<64x128xbf16>
      %c0_14 = arith.constant 0 : index
      %c0_15 = arith.constant 0 : index
      %17 = vector.load %arg6[%c0_14, %c0_15] : memref<64x128xbf16, #tpu.memory_space<vmem>>, vector<64x128xbf16>
      tpu.vector_store %arg6[%c0_14, %c0_15], %16 {strides = array<i32>} : memref<64x128xbf16, #tpu.memory_space<vmem>>, vector<64x128xbf16>,
    } else {
    }
    return
  }
  func.func @transform_0(%arg0: i32, %arg1: i32, %arg2: i32) -> (i32, i32) {
    %c0_i32 = arith.constant 0 : i32
    return %arg0, %arg2 : i32, i32
  }
  func.func @transform_1(%arg0: i32, %arg1: i32, %arg2: i32) -> (i32, i32) {
    %c0_i32 = arith.constant 0 : i32
    return %arg2, %arg1 : i32, i32
  }
  func.func @transform_2(%arg0: i32, %arg1: i32, %arg2: i32) -> (i32, i32) {
    %c0_i32 = arith.constant 0 : i32
    %c0_i32_0 = arith.constant 0 : i32
    return %c0_i32, %arg1 : i32, i32
  }
  func.func @transform_3(%arg0: i32, %arg1: i32, %arg2: i32) -> (i32, i32) {
    %c0_i32 = arith.constant 0 : i32
    return %arg0, %arg1 : i32, i32
  }
}

module attributes {stable_mosaic.version = 11 : i64} {
  func.func @_matmul_res_kernel(%arg0: i32, %arg1: i32, %arg2: i32, %arg3: memref<64x128xbf16, #tpu.memory_space<vmem>>, %arg4: memref<128x128xbf16, #tpu.memory_space<vmem>>, %arg5: memref<1x128xf32, #tpu.memory_space<vmem>>, %arg6: memref<64x128xbf16, #tpu.memory_space<vmem>>, %arg7: memref<64x128xbf16, #tpu.memory_space<vmem>>, %arg8: memref<64x128xf32, #tpu.memory_space<vmem>>) attributes {dimension_semantics = [#tpu.dimension_semantics<parallel>, #tpu.dimension_semantics<parallel>, #tpu.dimension_semantics<arbitrary>], iteration_bounds = array<i64: 1, 1, 1>, scalar_prefetch = 0 : i64, scratch_operands = 1 : i64, tpu.core_type = #tpu.core_type<tc>, window_params = [{transform_indices = @transform_0, window_bounds = array<i64: 64, 128>}, {transform_indices = @transform_1, window_bounds = array<i64: 128, 128>}, {transform_indices = @transform_2, window_bounds = array<i64: 1, 128>}, {transform_indices = @transform_3, window_bounds = array<i64: 64, 128>}, {transform_indices = @transform_4, window_bounds = array<i64: 64, 128>}]} {
    %c0_i32 = arith.constant 0 : i32
    %0 = arith.cmpi eq, %arg2, %c0_i32 : i32
    %1 = arith.extui %0 : i1 to i32
    %c0_i32_0 = arith.constant 0 : i32
    %2 = arith.cmpi ne, %1, %c0_i32_0 : i32
    scf.if %2 {
      %cst_10 = arith.constant 0.000000e+00 : f32
      %12 = vector.broadcast %cst_10 : f32 to vector<64x128xf32>
      %c0_11 = arith.constant 0 : index
      %c0_12 = arith.constant 0 : index
      %13 = vector.load %arg8[%c0_11, %c0_12] : memref<64x128xf32, #tpu.memory_space<vmem>>, vector<64x128xf32>
      tpu.vector_store %arg8[%c0_11, %c0_12], %12 {strides = array<i32>} : memref<64x128xf32, #tpu.memory_space<vmem>>, vector<64x128xf32>,
    } else {
    }
    %c0 = arith.constant 0 : index
    %c0_1 = arith.constant 0 : index
    %3 = vector.load %arg8[%c0, %c0_1] : memref<64x128xf32, #tpu.memory_space<vmem>>, vector<64x128xf32>
    %c0_2 = arith.constant 0 : index
    %c0_3 = arith.constant 0 : index
    %4 = vector.load %arg3[%c0_2, %c0_3] : memref<64x128xbf16, #tpu.memory_space<vmem>>, vector<64x128xbf16>
    %c0_4 = arith.constant 0 : index
    %c0_5 = arith.constant 0 : index
    %5 = vector.load %arg4[%c0_4, %c0_5] : memref<128x128xbf16, #tpu.memory_space<vmem>>, vector<128x128xbf16>
    %cst = arith.constant dense<0.000000e+00> : vector<64x128xf32>
    %6 = tpu.matmul %4, %5, %cst {dimension_numbers = #tpu.dot_dimension_numbers<[1], [0], [0], [1], [0, 0, 1, 1], [], []>} : vector<64x128xbf16>, vector<128x128xbf16>, vector<64x128xf32> -> vector<64x128xf32>
    %7 = arith.addf %3, %6 : vector<64x128xf32>
    %c0_6 = arith.constant 0 : index
    %c0_7 = arith.constant 0 : index
    %8 = vector.load %arg8[%c0_6, %c0_7] : memref<64x128xf32, #tpu.memory_space<vmem>>, vector<64x128xf32>
    tpu.vector_store %arg8[%c0_6, %c0_7], %7 {strides = array<i32>} : memref<64x128xf32, #tpu.memory_space<vmem>>, vector<64x128xf32>,
    %c0_i32_8 = arith.constant 0 : i32
    %9 = arith.cmpi eq, %arg2, %c0_i32_8 : i32
    %10 = arith.extui %9 : i1 to i32
    %c0_i32_9 = arith.constant 0 : i32
    %11 = arith.cmpi ne, %10, %c0_i32_9 : i32
    scf.if %11 {
      %c0_10 = arith.constant 0 : index
      %c0_11 = arith.constant 0 : index
      %12 = vector.load %arg8[%c0_10, %c0_11] : memref<64x128xf32, #tpu.memory_space<vmem>>, vector<64x128xf32>
      %c0_12 = arith.constant 0 : index
      %c0_13 = arith.constant 0 : index
      %13 = vector.load %arg5[%c0_12, %c0_13] : memref<1x128xf32, #tpu.memory_space<vmem>>, vector<1x128xf32>
      %14 = vector.broadcast %13 : vector<1x128xf32> to vector<64x128xf32>
      %15 = arith.addf %12, %14 : vector<64x128xf32>
      %c0_14 = arith.constant 0 : index
      %c0_15 = arith.constant 0 : index
      %16 = vector.load %arg6[%c0_14, %c0_15] : memref<64x128xbf16, #tpu.memory_space<vmem>>, vector<64x128xbf16>
      %17 = arith.extf %16 : vector<64x128xbf16> to vector<64x128xf32>
      %18 = arith.addf %15, %17 : vector<64x128xf32>
      %cst_16 = arith.constant 0.000000e+00 : f32
      %19 = vector.broadcast %cst_16 : f32 to vector<64x128xf32>
      %20 = arith.maximumf %18, %19 : vector<64x128xf32>
      %21 = arith.truncf %20 : vector<64x128xf32> to vector<64x128xbf16>
      %c0_17 = arith.constant 0 : index
      %c0_18 = arith.constant 0 : index
      %22 = vector.load %arg7[%c0_17, %c0_18] : memref<64x128xbf16, #tpu.memory_space<vmem>>, vector<64x128xbf16>
      tpu.vector_store %arg7[%c0_17, %c0_18], %21 {strides = array<i32>} : memref<64x128xbf16, #tpu.memory_space<vmem>>, vector<64x128xbf16>,
    } else {
    }
    return
  }
  func.func @transform_0(%arg0: i32, %arg1: i32, %arg2: i32) -> (i32, i32) {
    %c0_i32 = arith.constant 0 : i32
    return %arg0, %arg2 : i32, i32
  }
  func.func @transform_1(%arg0: i32, %arg1: i32, %arg2: i32) -> (i32, i32) {
    %c0_i32 = arith.constant 0 : i32
    return %arg2, %arg1 : i32, i32
  }
  func.func @transform_2(%arg0: i32, %arg1: i32, %arg2: i32) -> (i32, i32) {
    %c0_i32 = arith.constant 0 : i32
    %c0_i32_0 = arith.constant 0 : i32
    return %c0_i32, %arg1 : i32, i32
  }
  func.func @transform_3(%arg0: i32, %arg1: i32, %arg2: i32) -> (i32, i32) {
    %c0_i32 = arith.constant 0 : i32
    return %arg0, %arg1 : i32, i32
  }
  func.func @transform_4(%arg0: i32, %arg1: i32, %arg2: i32) -> (i32, i32) {
    %c0_i32 = arith.constant 0 : i32
    return %arg0, %arg1 : i32, i32
  }
}

</mosaic_0001>

<llo_original>
// kernel: roi_box_feature_extractor.11
$region0: #{roi_box_feature_extractor.11}
  #allocation0 [shape = 'u32[]', space=smem, size = 0x4, offset = 0x4, fixed_abs, tag = 'smem constant byte address 0x4 - core index']
  #allocation1 [shape = 'u32[144,128]{1,0:T(1,128)}', space=vmem, size = 0x12000, scoped, tag = 'internal scratch']
  #allocation2 [shape = 'f32[64,128]{1,0:T(8,128)}', space=vmem, size = 0x8000, scoped, tag = 'scratch operand']
  %s0 = inlined_call_operand.vmem [shape: bf16[64,128], index: 0, kind: input, shape index: {}]
  %s1 = inlined_call_operand.vmem [shape: bf16[128,128], index: 1, kind: input, shape index: {}]
  %s2 = inlined_call_operand.vmem [shape: f32[1,128], index: 2, kind: input, shape index: {}]
  %s3 = inlined_call_operand.vmem [shape: bf16[64,128], index: 3, kind: output, shape index: {}]
  %s4 = sld [smem:[#allocation0]]
  $region30: #{roi_box_feature_extractor.11} parent=0
    _
  %s6 = ssub.s32 1, %s4
  %s7 = scalar_select 0, %s6, %s4
  // Predicated region
  $region2: #{roi_box_feature_extractor.11} parent=0 // pred_check
    _
  $region3: #{roi_box_feature_extractor.11} parent=0 // pred_check_branch
    %9 = sbr.rel (0) target = $region5
  $region4: #{roi_box_feature_extractor.11} parent=0 // pred_region
    _
  $region5: #{roi_box_feature_extractor.11} parent=0 // pred_fallthru
    _
  // Predicated region
  $region6: #{roi_box_feature_extractor.11} parent=0 // pred_check
    _
  $region7: #{roi_box_feature_extractor.11} parent=0 // pred_check_branch
    %11 = sbr.rel (0) target = $region9
  $region8: #{roi_box_feature_extractor.11} parent=0 // pred_region
    _
  $region9: #{roi_box_feature_extractor.11} parent=0 // pred_fallthru
    _
  // Predicated region
  $region10: #{roi_box_feature_extractor.11} parent=0 // pred_check
    _
  $region11: #{roi_box_feature_extractor.11} parent=0 // pred_check_branch
    %13 = sbr.rel (0) target = $region13
  $region12: #{roi_box_feature_extractor.11} parent=0 // pred_region
    _
  $region13: #{roi_box_feature_extractor.11} parent=0 // pred_fallthru
    _
  %p15 = scmp.eq.s32.totalorder 0, 0
  // Predicated region
  $region14: #{roi_box_feature_extractor.11} parent=0 // pred_check
    %p16 = pneg %p15
  $region15: #{roi_box_feature_extractor.11} parent=0 // pred_check_branch
    %18 = sbr.rel (%p16) target = $region17
  $region16: #{roi_box_feature_extractor.11} parent=0 // pred_region
    %19 = vst [vmem:[#allocation2] sm:$0xff] 0.0
    %20 = vst [vmem:[#allocation2 + $0x8] sm:$0xff] 0.0
    %21 = vst [vmem:[#allocation2 + $0x10] sm:$0xff] 0.0
    %22 = vst [vmem:[#allocation2 + $0x18] sm:$0xff] 0.0
    %23 = vst [vmem:[#allocation2 + $0x20] sm:$0xff] 0.0
    %24 = vst [vmem:[#allocation2 + $0x28] sm:$0xff] 0.0
    %25 = vst [vmem:[#allocation2 + $0x30] sm:$0xff] 0.0
    %26 = vst [vmem:[#allocation2 + $0x38] sm:$0xff] 0.0
  $region17: #{roi_box_feature_extractor.11} parent=0 // pred_fallthru
    _
  %v27 = vld [vmem:[#allocation2] sm:$0xff]
  %v28 = vld [vmem:[#allocation2 + $0x8] sm:$0xff]
  %v29 = vld [vmem:[#allocation2 + $0x10] sm:$0xff]
  %v30 = vld [vmem:[#allocation2 + $0x18] sm:$0xff]
  %v31 = vld [vmem:[#allocation2 + $0x20] sm:$0xff]
  %v32 = vld [vmem:[#allocation2 + $0x28] sm:$0xff]
  %v33 = vld [vmem:[#allocation2 + $0x30] sm:$0xff]
  %v34 = vld [vmem:[#allocation2 + $0x38] sm:$0xff]
  %v35 = vld [vmem:[%s0] sm:$0xf]
  %v36 = vld [vmem:[%s0 + $0x4] sm:$0xf]
  %v37 = vld [vmem:[%s0 + $0x8] sm:$0xf]
  %v38 = vld [vmem:[%s0 + $0xc] sm:$0xf]
  %v39 = vld [vmem:[%s0 + $0x10] sm:$0xf]
  %v40 = vld [vmem:[%s0 + $0x14] sm:$0xf]
  %v41 = vld [vmem:[%s0 + $0x18] sm:$0xf]
  %v42 = vld [vmem:[%s0 + $0x1c] sm:$0xf]
  %v43 = vld [vmem:[%s1] sm:$0xf]
  %v44 = vld [vmem:[%s1 + $0x4] sm:$0xf]
  %v45 = vld [vmem:[%s1 + $0x8] sm:$0xf]
  %v46 = vld [vmem:[%s1 + $0xc] sm:$0xf]
  %v47 = vld [vmem:[%s1 + $0x10] sm:$0xf]
  %v48 = vld [vmem:[%s1 + $0x14] sm:$0xf]
  %v49 = vld [vmem:[%s1 + $0x18] sm:$0xf]
  %v50 = vld [vmem:[%s1 + $0x1c] sm:$0xf]
  %v51 = vld [vmem:[%s1 + $0x20] sm:$0xf]
  %v52 = vld [vmem:[%s1 + $0x24] sm:$0xf]
  %v53 = vld [vmem:[%s1 + $0x28] sm:$0xf]
  %v54 = vld [vmem:[%s1 + $0x2c] sm:$0xf]
  %v55 = vld [vmem:[%s1 + $0x30] sm:$0xf]
  %v56 = vld [vmem:[%s1 + $0x34] sm:$0xf]
  %v57 = vld [vmem:[%s1 + $0x38] sm:$0xf]
  %v58 = vld [vmem:[%s1 + $0x3c] sm:$0xf]
  %v67 = vunpack.c.l.b16 %v35
  %v68 = vunpack.c.l.b16 %v36
  %v69 = vunpack.c.l.b16 %v37
  %v70 = vunpack.c.l.b16 %v38
  %v71 = vunpack.c.l.b16 %v39
  %v72 = vunpack.c.l.b16 %v40
  %v73 = vunpack.c.l.b16 %v41
  %v74 = vunpack.c.l.b16 %v42
  %v75 = vpack.c.b16 %v68, %v67
  %v76 = vpack.c.b16 %v70, %v69
  %v77 = vpack.c.b16 %v72, %v71
  %v78 = vpack.c.b16 %v74, %v73
  %v99 = vunpack.c.l.b16 %v43
  %v100 = vunpack.c.l.b16 %v44
  %v101 = vunpack.c.l.b16 %v45
  %v102 = vunpack.c.l.b16 %v46
  %v103 = vunpack.c.l.b16 %v47
  %v104 = vunpack.c.l.b16 %v48
  %v105 = vunpack.c.l.b16 %v49
  %v106 = vunpack.c.l.b16 %v50
  %v107 = vunpack.c.l.b16 %v51
  %v108 = vunpack.c.l.b16 %v52
  %v109 = vunpack.c.l.b16 %v53
  %v110 = vunpack.c.l.b16 %v54
  %v111 = vunpack.c.l.b16 %v55
  %v112 = vunpack.c.l.b16 %v56
  %v113 = vunpack.c.l.b16 %v57
  %v114 = vunpack.c.l.b16 %v58
  %v115 = vpack.c.b16 %v100, %v99
  %v116 = vpack.c.b16 %v102, %v101
  %v117 = vpack.c.b16 %v104, %v103
  %v118 = vpack.c.b16 %v106, %v105
  %v119 = vpack.c.b16 %v108, %v107
  %v120 = vpack.c.b16 %v110, %v109
  %v121 = vpack.c.b16 %v112, %v111
  %v122 = vpack.c.b16 %v114, %v113
  %131 = vmatprep.subr.bf16.mxu0 0
  %132 = vmatpush1.bf16.msra.mxu0 %v122
  %133 = vmatprep.subr.bf16.mxu0 0
  %134 = vmatpush1.bf16.msra.mxu0 %v121
  %135 = vmatprep.subr.bf16.mxu0 0
  %136 = vmatpush1.bf16.msra.mxu0 %v120
  %137 = vmatprep.subr.bf16.mxu0 0
  %138 = vmatpush1.bf16.msra.mxu0 %v119
  %139 = vmatprep.subr.bf16.mxu0 0
  %140 = vmatpush1.bf16.msra.mxu0 %v118
  %141 = vmatprep.subr.bf16.mxu0 0
  %142 = vmatpush1.bf16.msra.mxu0 %v117
  %143 = vmatprep.subr.bf16.mxu0 0
  %144 = vmatpush1.bf16.msra.mxu0 %v116
  %145 = vmatprep.subr.bf16.mxu0 0
  %146 = vmatpush1.bf16.msra.mxu0 %v115
  %147 = vmatprep.subr.bf16.mxu0 0
  %148 = vmatpush2.bf16.msra.mxu0 0
  %149 = vmatprep.subr.bf16.mxu0 0
  %150 = vmatpush2.bf16.msra.mxu0 0
  %151 = vmatprep.subr.bf16.mxu0 0
  %152 = vmatpush2.bf16.msra.mxu0 0
  %153 = vmatprep.subr.bf16.mxu0 0
  %154 = vmatpush2.bf16.msra.mxu0 0
  %155 = vmatprep.subr.bf16.mxu0 0
  %156 = vmatpush2.bf16.msra.mxu0 0
  %157 = vmatprep.subr.bf16.mxu0 0
  %158 = vmatpush2.bf16.msra.mxu0 0
  %159 = vmatprep.subr.bf16.mxu0 0
  %160 = vmatpush2.bf16.msra.mxu0 0
  %161 = vmatprep.subr.bf16.mxu0 0
  %162 = vmatpush2.bf16.msra.mxu0 0
  %163 = vmatprep.mubr.bf16.mxu0 0
  %164 = vmatmul.mubr.bf16.gmra.mxu0 %v75
  %v165 = vpop.f32.mrf.mxu0
  %v166 = vadd.f32 0.0, %v165
  %v167 = vpop.f32.mrf.mxu0
  %v168 = vpop.f32.mrf.mxu0
  %v169 = vadd.f32 0.0, %v168
  %v170 = vpop.f32.mrf.mxu0
  %171 = vmatprep.mubr.bf16.mxu0 0
  %172 = vmatmul.mubr.bf16.gmra.mxu0 %v76
  %v173 = vpop.f32.mrf.mxu0
  %v174 = vadd.f32 0.0, %v173
  %v175 = vpop.f32.mrf.mxu0
  %v176 = vpop.f32.mrf.mxu0
  %v177 = vadd.f32 0.0, %v176
  %v178 = vpop.f32.mrf.mxu0
  %179 = vmatprep.mubr.bf16.mxu0 0
  %180 = vmatmul.mubr.bf16.gmra.mxu0 %v77
  %v181 = vpop.f32.mrf.mxu0
  %v182 = vadd.f32 0.0, %v181
  %v183 = vpop.f32.mrf.mxu0
  %v184 = vpop.f32.mrf.mxu0
  %v185 = vadd.f32 0.0, %v184
  %v186 = vpop.f32.mrf.mxu0
  %187 = vmatprep.mubr.bf16.mxu0 0
  %188 = vmatmul.mubr.bf16.gmra.mxu0 %v78
  %v189 = vpop.f32.mrf.mxu0
  %v190 = vadd.f32 0.0, %v189
  %v191 = vpop.f32.mrf.mxu0
  %v192 = vpop.f32.mrf.mxu0
  %v193 = vadd.f32 0.0, %v192
  %v194 = vpop.f32.mrf.mxu0
  %195 = vdwg.mxu0
  %v196 = vadd.f32 %v27, %v166
  %v197 = vadd.f32 %v28, %v169
  %v198 = vadd.f32 %v29, %v174
  %v199 = vadd.f32 %v30, %v177
  %v200 = vadd.f32 %v31, %v182
  %v201 = vadd.f32 %v32, %v185
  %v202 = vadd.f32 %v33, %v190
  %v203 = vadd.f32 %v34, %v193
  %204 = vst [vmem:[#allocation2] sm:$0xff] %v196
  %205 = vst [vmem:[#allocation2 + $0x8] sm:$0xff] %v197
  %206 = vst [vmem:[#allocation2 + $0x10] sm:$0xff] %v198
  %207 = vst [vmem:[#allocation2 + $0x18] sm:$0xff] %v199
  %208 = vst [vmem:[#allocation2 + $0x20] sm:$0xff] %v200
  %209 = vst [vmem:[#allocation2 + $0x28] sm:$0xff] %v201
  %210 = vst [vmem:[#allocation2 + $0x30] sm:$0xff] %v202
  %211 = vst [vmem:[#allocation2 + $0x38] sm:$0xff] %v203
  // Predicated region
  $region18: #{roi_box_feature_extractor.11} parent=0 // pred_check
    %p212 = pneg %p15
  $region19: #{roi_box_feature_extractor.11} parent=0 // pred_check_branch
    %214 = sbr.rel (%p212) target = $region21
  $region20: #{roi_box_feature_extractor.11} parent=0 // pred_region
    %v215 = vld [vmem:[#allocation2] sm:$0xff]
    %v216 = vld [vmem:[#allocation2 + $0x8] sm:$0xff]
    %v217 = vld [vmem:[#allocation2 + $0x10] sm:$0xff]
    %v218 = vld [vmem:[#allocation2 + $0x18] sm:$0xff]
    %v219 = vld [vmem:[#allocation2 + $0x20] sm:$0xff]
    %v220 = vld [vmem:[#allocation2 + $0x28] sm:$0xff]
    %v221 = vld [vmem:[#allocation2 + $0x30] sm:$0xff]
    %v222 = vld [vmem:[#allocation2 + $0x38] sm:$0xff]
    %v223 = vld [vmem:[%s2] sm:$0x1]
    %v225 = vlaneseq
    %v226 = vshrl.u32 %v225, 7
    %v227 = vsub.s32 0, %v226
    %v228 = vrot.slane %v223, %v227
    %v230 = vadd.f32 %v215, %v228
    %v231 = vadd.f32 %v216, %v228
    %v232 = vadd.f32 %v217, %v228
    %v233 = vadd.f32 %v218, %v228
    %v234 = vadd.f32 %v219, %v228
    %v235 = vadd.f32 %v220, %v228
    %v236 = vadd.f32 %v221, %v228
    %v237 = vadd.f32 %v222, %v228
    %v238 = vmax.f32 %v230, 0.0
    %v239 = vmax.f32 %v231, 0.0
    %v240 = vmax.f32 %v232, 0.0
    %v241 = vmax.f32 %v233, 0.0
    %v242 = vmax.f32 %v234, 0.0
    %v243 = vmax.f32 %v235, 0.0
    %v244 = vmax.f32 %v236, 0.0
    %v245 = vmax.f32 %v237, 0.0
    %v246 = vpack.c.bf16 %v239, %v238
    %v247 = vpack.c.bf16 %v241, %v240
    %v248 = vpack.c.bf16 %v243, %v242
    %v249 = vpack.c.bf16 %v245, %v244
    %v254 = vunpack.c.l.b16 %v246
    %v255 = vunpack.c.h.b16 %v246
    %v256 = vunpack.c.l.b16 %v247
    %v257 = vunpack.c.h.b16 %v247
    %v258 = vunpack.c.l.b16 %v248
    %v259 = vunpack.c.h.b16 %v248
    %v260 = vunpack.c.l.b16 %v249
    %v261 = vunpack.c.h.b16 %v249
    %v262 = vpack.c.b16 %v254, %v254
    %v263 = vpack.c.b16 %v255, %v255
    %v264 = vpack.c.b16 %v256, %v256
    %v265 = vpack.c.b16 %v257, %v257
    %v266 = vpack.c.b16 %v258, %v258
    %v267 = vpack.c.b16 %v259, %v259
    %v268 = vpack.c.b16 %v260, %v260
    %v269 = vpack.c.b16 %v261, %v261
    %278 = vst [vmem:[%s3] sm:$0xf] %v262
    %279 = vst [vmem:[%s3 + $0x4] sm:$0xf] %v263
    %280 = vst [vmem:[%s3 + $0x8] sm:$0xf] %v264
    %281 = vst [vmem:[%s3 + $0xc] sm:$0xf] %v265
    %282 = vst [vmem:[%s3 + $0x10] sm:$0xf] %v266
    %283 = vst [vmem:[%s3 + $0x14] sm:$0xf] %v267
    %284 = vst [vmem:[%s3 + $0x18] sm:$0xf] %v268
    %285 = vst [vmem:[%s3 + $0x1c] sm:$0xf] %v269
  $region21: #{roi_box_feature_extractor.11} parent=0 // pred_fallthru
    _
  // Predicated region
  $region22: #{roi_box_feature_extractor.11} parent=0 // pred_check
    _
  $region23: #{roi_box_feature_extractor.11} parent=0 // pred_check_branch
    %287 = sbr.rel (0) target = $region25
  $region24: #{roi_box_feature_extractor.11} parent=0 // pred_region
    _
  $region25: #{roi_box_feature_extractor.11} parent=0 // pred_fallthru
    _
  // Predicated region
  $region26: #{roi_box_feature_extractor.11} parent=0 // pred_check
    _
  $region27: #{roi_box_feature_extractor.11} parent=0 // pred_check_branch
    %289 = sbr.rel (0) target = $region29
  $region28: #{roi_box_feature_extractor.11} parent=0 // pred_region
    _
  $region29: #{roi_box_feature_extractor.11} parent=0 // pred_fallthru
    _

// kernel: roi_box_feature_extractor.10
$region0: #{roi_box_feature_extractor.10}
  #allocation0 [shape = 'u32[]', space=smem, size = 0x4, offset = 0x4, fixed_abs, tag = 'smem constant byte address 0x4 - core index']
  #allocation1 [shape = 'u32[144,128]{1,0:T(1,128)}', space=vmem, size = 0x12000, scoped, tag = 'internal scratch']
  #allocation2 [shape = 'f32[64,128]{1,0:T(8,128)}', space=vmem, size = 0x8000, scoped, tag = 'scratch operand']
  %s0 = inlined_call_operand.vmem [shape: bf16[64,128], index: 0, kind: input, shape index: {}]
  %s1 = inlined_call_operand.vmem [shape: bf16[128,128], index: 1, kind: input, shape index: {}]
  %s2 = inlined_call_operand.vmem [shape: f32[1,128], index: 2, kind: input, shape index: {}]
  %s3 = inlined_call_operand.vmem [shape: bf16[64,128], index: 3, kind: output, shape index: {}]
  %s4 = sld [smem:[#allocation0]]
  $region30: #{roi_box_feature_extractor.10} parent=0
    _
  %s6 = ssub.s32 1, %s4
  %s7 = scalar_select 0, %s6, %s4
  // Predicated region
  $region2: #{roi_box_feature_extractor.10} parent=0 // pred_check
    _
  $region3: #{roi_box_feature_extractor.10} parent=0 // pred_check_branch
    %9 = sbr.rel (0) target = $region5
  $region4: #{roi_box_feature_extractor.10} parent=0 // pred_region
    _
  $region5: #{roi_box_feature_extractor.10} parent=0 // pred_fallthru
    _
  // Predicated region
  $region6: #{roi_box_feature_extractor.10} parent=0 // pred_check
    _
  $region7: #{roi_box_feature_extractor.10} parent=0 // pred_check_branch
    %11 = sbr.rel (0) target = $region9
  $region8: #{roi_box_feature_extractor.10} parent=0 // pred_region
    _
  $region9: #{roi_box_feature_extractor.10} parent=0 // pred_fallthru
    _
  // Predicated region
  $region10: #{roi_box_feature_extractor.10} parent=0 // pred_check
    _
  $region11: #{roi_box_feature_extractor.10} parent=0 // pred_check_branch
    %13 = sbr.rel (0) target = $region13
  $region12: #{roi_box_feature_extractor.10} parent=0 // pred_region
    _
  $region13: #{roi_box_feature_extractor.10} parent=0 // pred_fallthru
    _
  %p15 = scmp.eq.s32.totalorder 0, 0
  // Predicated region
  $region14: #{roi_box_feature_extractor.10} parent=0 // pred_check
    %p16 = pneg %p15
  $region15: #{roi_box_feature_extractor.10} parent=0 // pred_check_branch
    %18 = sbr.rel (%p16) target = $region17
  $region16: #{roi_box_feature_extractor.10} parent=0 // pred_region
    %19 = vst [vmem:[#allocation2] sm:$0xff] 0.0
    %20 = vst [vmem:[#allocation2 + $0x8] sm:$0xff] 0.0
    %21 = vst [vmem:[#allocation2 + $0x10] sm:$0xff] 0.0
    %22 = vst [vmem:[#allocation2 + $0x18] sm:$0xff] 0.0
    %23 = vst [vmem:[#allocation2 + $0x20] sm:$0xff] 0.0
    %24 = vst [vmem:[#allocation2 + $0x28] sm:$0xff] 0.0
    %25 = vst [vmem:[#allocation2 + $0x30] sm:$0xff] 0.0
    %26 = vst [vmem:[#allocation2 + $0x38] sm:$0xff] 0.0
  $region17: #{roi_box_feature_extractor.10} parent=0 // pred_fallthru
    _
  %v27 = vld [vmem:[#allocation2] sm:$0xff]
  %v28 = vld [vmem:[#allocation2 + $0x8] sm:$0xff]
  %v29 = vld [vmem:[#allocation2 + $0x10] sm:$0xff]
  %v30 = vld [vmem:[#allocation2 + $0x18] sm:$0xff]
  %v31 = vld [vmem:[#allocation2 + $0x20] sm:$0xff]
  %v32 = vld [vmem:[#allocation2 + $0x28] sm:$0xff]
  %v33 = vld [vmem:[#allocation2 + $0x30] sm:$0xff]
  %v34 = vld [vmem:[#allocation2 + $0x38] sm:$0xff]
  %v35 = vld [vmem:[%s0] sm:$0xf]
  %v36 = vld [vmem:[%s0 + $0x4] sm:$0xf]
  %v37 = vld [vmem:[%s0 + $0x8] sm:$0xf]
  %v38 = vld [vmem:[%s0 + $0xc] sm:$0xf]
  %v39 = vld [vmem:[%s0 + $0x10] sm:$0xf]
  %v40 = vld [vmem:[%s0 + $0x14] sm:$0xf]
  %v41 = vld [vmem:[%s0 + $0x18] sm:$0xf]
  %v42 = vld [vmem:[%s0 + $0x1c] sm:$0xf]
  %v43 = vld [vmem:[%s1] sm:$0xf]
  %v44 = vld [vmem:[%s1 + $0x4] sm:$0xf]
  %v45 = vld [vmem:[%s1 + $0x8] sm:$0xf]
  %v46 = vld [vmem:[%s1 + $0xc] sm:$0xf]
  %v47 = vld [vmem:[%s1 + $0x10] sm:$0xf]
  %v48 = vld [vmem:[%s1 + $0x14] sm:$0xf]
  %v49 = vld [vmem:[%s1 + $0x18] sm:$0xf]
  %v50 = vld [vmem:[%s1 + $0x1c] sm:$0xf]
  %v51 = vld [vmem:[%s1 + $0x20] sm:$0xf]
  %v52 = vld [vmem:[%s1 + $0x24] sm:$0xf]
  %v53 = vld [vmem:[%s1 + $0x28] sm:$0xf]
  %v54 = vld [vmem:[%s1 + $0x2c] sm:$0xf]
  %v55 = vld [vmem:[%s1 + $0x30] sm:$0xf]
  %v56 = vld [vmem:[%s1 + $0x34] sm:$0xf]
  %v57 = vld [vmem:[%s1 + $0x38] sm:$0xf]
  %v58 = vld [vmem:[%s1 + $0x3c] sm:$0xf]
  %v67 = vunpack.c.l.b16 %v35
  %v68 = vunpack.c.l.b16 %v36
  %v69 = vunpack.c.l.b16 %v37
  %v70 = vunpack.c.l.b16 %v38
  %v71 = vunpack.c.l.b16 %v39
  %v72 = vunpack.c.l.b16 %v40
  %v73 = vunpack.c.l.b16 %v41
  %v74 = vunpack.c.l.b16 %v42
  %v75 = vpack.c.b16 %v68, %v67
  %v76 = vpack.c.b16 %v70, %v69
  %v77 = vpack.c.b16 %v72, %v71
  %v78 = vpack.c.b16 %v74, %v73
  %v99 = vunpack.c.l.b16 %v43
  %v100 = vunpack.c.l.b16 %v44
  %v101 = vunpack.c.l.b16 %v45
  %v102 = vunpack.c.l.b16 %v46
  %v103 = vunpack.c.l.b16 %v47
  %v104 = vunpack.c.l.b16 %v48
  %v105 = vunpack.c.l.b16 %v49
  %v106 = vunpack.c.l.b16 %v50
  %v107 = vunpack.c.l.b16 %v51
  %v108 = vunpack.c.l.b16 %v52
  %v109 = vunpack.c.l.b16 %v53
  %v110 = vunpack.c.l.b16 %v54
  %v111 = vunpack.c.l.b16 %v55
  %v112 = vunpack.c.l.b16 %v56
  %v113 = vunpack.c.l.b16 %v57
  %v114 = vunpack.c.l.b16 %v58
  %v115 = vpack.c.b16 %v100, %v99
  %v116 = vpack.c.b16 %v102, %v101
  %v117 = vpack.c.b16 %v104, %v103
  %v118 = vpack.c.b16 %v106, %v105
  %v119 = vpack.c.b16 %v108, %v107
  %v120 = vpack.c.b16 %v110, %v109
  %v121 = vpack.c.b16 %v112, %v111
  %v122 = vpack.c.b16 %v114, %v113
  %131 = vmatprep.subr.bf16.mxu0 0
  %132 = vmatpush1.bf16.msra.mxu0 %v122
  %133 = vmatprep.subr.bf16.mxu0 0
  %134 = vmatpush1.bf16.msra.mxu0 %v121
  %135 = vmatprep.subr.bf16.mxu0 0
  %136 = vmatpush1.bf16.msra.mxu0 %v120
  %137 = vmatprep.subr.bf16.mxu0 0
  %138 = vmatpush1.bf16.msra.mxu0 %v119
  %139 = vmatprep.subr.bf16.mxu0 0
  %140 = vmatpush1.bf16.msra.mxu0 %v118
  %141 = vmatprep.subr.bf16.mxu0 0
  %142 = vmatpush1.bf16.msra.mxu0 %v117
  %143 = vmatprep.subr.bf16.mxu0 0
  %144 = vmatpush1.bf16.msra.mxu0 %v116
  %145 = vmatprep.subr.bf16.mxu0 0
  %146 = vmatpush1.bf16.msra.mxu0 %v115
  %147 = vmatprep.subr.bf16.mxu0 0
  %148 = vmatpush2.bf16.msra.mxu0 0
  %149 = vmatprep.subr.bf16.mxu0 0
  %150 = vmatpush2.bf16.msra.mxu0 0
  %151 = vmatprep.subr.bf16.mxu0 0
  %152 = vmatpush2.bf16.msra.mxu0 0
  %153 = vmatprep.subr.bf16.mxu0 0
  %154 = vmatpush2.bf16.msra.mxu0 0
  %155 = vmatprep.subr.bf16.mxu0 0
  %156 = vmatpush2.bf16.msra.mxu0 0
  %157 = vmatprep.subr.bf16.mxu0 0
  %158 = vmatpush2.bf16.msra.mxu0 0
  %159 = vmatprep.subr.bf16.mxu0 0
  %160 = vmatpush2.bf16.msra.mxu0 0
  %161 = vmatprep.subr.bf16.mxu0 0
  %162 = vmatpush2.bf16.msra.mxu0 0
  %163 = vmatprep.mubr.bf16.mxu0 0
  %164 = vmatmul.mubr.bf16.gmra.mxu0 %v75
  %v165 = vpop.f32.mrf.mxu0
  %v166 = vadd.f32 0.0, %v165
  %v167 = vpop.f32.mrf.mxu0
  %v168 = vpop.f32.mrf.mxu0
  %v169 = vadd.f32 0.0, %v168
  %v170 = vpop.f32.mrf.mxu0
  %171 = vmatprep.mubr.bf16.mxu0 0
  %172 = vmatmul.mubr.bf16.gmra.mxu0 %v76
  %v173 = vpop.f32.mrf.mxu0
  %v174 = vadd.f32 0.0, %v173
  %v175 = vpop.f32.mrf.mxu0
  %v176 = vpop.f32.mrf.mxu0
  %v177 = vadd.f32 0.0, %v176
  %v178 = vpop.f32.mrf.mxu0
  %179 = vmatprep.mubr.bf16.mxu0 0
  %180 = vmatmul.mubr.bf16.gmra.mxu0 %v77
  %v181 = vpop.f32.mrf.mxu0
  %v182 = vadd.f32 0.0, %v181
  %v183 = vpop.f32.mrf.mxu0
  %v184 = vpop.f32.mrf.mxu0
  %v185 = vadd.f32 0.0, %v184
  %v186 = vpop.f32.mrf.mxu0
  %187 = vmatprep.mubr.bf16.mxu0 0
  %188 = vmatmul.mubr.bf16.gmra.mxu0 %v78
  %v189 = vpop.f32.mrf.mxu0
  %v190 = vadd.f32 0.0, %v189
  %v191 = vpop.f32.mrf.mxu0
  %v192 = vpop.f32.mrf.mxu0
  %v193 = vadd.f32 0.0, %v192
  %v194 = vpop.f32.mrf.mxu0
  %195 = vdwg.mxu0
  %v196 = vadd.f32 %v27, %v166
  %v197 = vadd.f32 %v28, %v169
  %v198 = vadd.f32 %v29, %v174
  %v199 = vadd.f32 %v30, %v177
  %v200 = vadd.f32 %v31, %v182
  %v201 = vadd.f32 %v32, %v185
  %v202 = vadd.f32 %v33, %v190
  %v203 = vadd.f32 %v34, %v193
  %204 = vst [vmem:[#allocation2] sm:$0xff] %v196
  %205 = vst [vmem:[#allocation2 + $0x8] sm:$0xff] %v197
  %206 = vst [vmem:[#allocation2 + $0x10] sm:$0xff] %v198
  %207 = vst [vmem:[#allocation2 + $0x18] sm:$0xff] %v199
  %208 = vst [vmem:[#allocation2 + $0x20] sm:$0xff] %v200
  %209 = vst [vmem:[#allocation2 + $0x28] sm:$0xff] %v201
  %210 = vst [vmem:[#allocation2 + $0x30] sm:$0xff] %v202
  %211 = vst [vmem:[#allocation2 + $0x38] sm:$0xff] %v203
  // Predicated region
  $region18: #{roi_box_feature_extractor.10} parent=0 // pred_check
    %p212 = pneg %p15
  $region19: #{roi_box_feature_extractor.10} parent=0 // pred_check_branch
    %214 = sbr.rel (%p212) target = $region21
  $region20: #{roi_box_feature_extractor.10} parent=0 // pred_region
    %v215 = vld [vmem:[#allocation2] sm:$0xff]
    %v216 = vld [vmem:[#allocation2 + $0x8] sm:$0xff]
    %v217 = vld [vmem:[#allocation2 + $0x10] sm:$0xff]
    %v218 = vld [vmem:[#allocation2 + $0x18] sm:$0xff]
    %v219 = vld [vmem:[#allocation2 + $0x20] sm:$0xff]
    %v220 = vld [vmem:[#allocation2 + $0x28] sm:$0xff]
    %v221 = vld [vmem:[#allocation2 + $0x30] sm:$0xff]
    %v222 = vld [vmem:[#allocation2 + $0x38] sm:$0xff]
    %v223 = vld [vmem:[%s2] sm:$0x1]
    %v225 = vlaneseq
    %v226 = vshrl.u32 %v225, 7
    %v227 = vsub.s32 0, %v226
    %v228 = vrot.slane %v223, %v227
    %v230 = vadd.f32 %v215, %v228
    %v231 = vadd.f32 %v216, %v228
    %v232 = vadd.f32 %v217, %v228
    %v233 = vadd.f32 %v218, %v228
    %v234 = vadd.f32 %v219, %v228
    %v235 = vadd.f32 %v220, %v228
    %v236 = vadd.f32 %v221, %v228
    %v237 = vadd.f32 %v222, %v228
    %v238 = vpack.c.bf16 %v231, %v230
    %v239 = vpack.c.bf16 %v233, %v232
    %v240 = vpack.c.bf16 %v235, %v234
    %v241 = vpack.c.bf16 %v237, %v236
    %v246 = vunpack.c.l.b16 %v238
    %v247 = vunpack.c.h.b16 %v238
    %v248 = vunpack.c.l.b16 %v239
    %v249 = vunpack.c.h.b16 %v239
    %v250 = vunpack.c.l.b16 %v240
    %v251 = vunpack.c.h.b16 %v240
    %v252 = vunpack.c.l.b16 %v241
    %v253 = vunpack.c.h.b16 %v241
    %v254 = vpack.c.b16 %v246, %v246
    %v255 = vpack.c.b16 %v247, %v247
    %v256 = vpack.c.b16 %v248, %v248
    %v257 = vpack.c.b16 %v249, %v249
    %v258 = vpack.c.b16 %v250, %v250
    %v259 = vpack.c.b16 %v251, %v251
    %v260 = vpack.c.b16 %v252, %v252
    %v261 = vpack.c.b16 %v253, %v253
    %270 = vst [vmem:[%s3] sm:$0xf] %v254
    %271 = vst [vmem:[%s3 + $0x4] sm:$0xf] %v255
    %272 = vst [vmem:[%s3 + $0x8] sm:$0xf] %v256
    %273 = vst [vmem:[%s3 + $0xc] sm:$0xf] %v257
    %274 = vst [vmem:[%s3 + $0x10] sm:$0xf] %v258
    %275 = vst [vmem:[%s3 + $0x14] sm:$0xf] %v259
    %276 = vst [vmem:[%s3 + $0x18] sm:$0xf] %v260
    %277 = vst [vmem:[%s3 + $0x1c] sm:$0xf] %v261
  $region21: #{roi_box_feature_extractor.10} parent=0 // pred_fallthru
    _
  // Predicated region
  $region22: #{roi_box_feature_extractor.10} parent=0 // pred_check
    _
  $region23: #{roi_box_feature_extractor.10} parent=0 // pred_check_branch
    %279 = sbr.rel (0) target = $region25
  $region24: #{roi_box_feature_extractor.10} parent=0 // pred_region
    _
  $region25: #{roi_box_feature_extractor.10} parent=0 // pred_fallthru
    _
  // Predicated region
  $region26: #{roi_box_feature_extractor.10} parent=0 // pred_check
    _
  $region27: #{roi_box_feature_extractor.10} parent=0 // pred_check_branch
    %281 = sbr.rel (0) target = $region29
  $region28: #{roi_box_feature_extractor.10} parent=0 // pred_region
    _
  $region29: #{roi_box_feature_extractor.10} parent=0 // pred_fallthru
    _

// kernel: roi_box_feature_extractor.13
$region0: #{roi_box_feature_extractor.13}
  #allocation0 [shape = 'u32[]', space=smem, size = 0x4, offset = 0x4, fixed_abs, tag = 'smem constant byte address 0x4 - core index']
  #allocation1 [shape = 'u32[144,128]{1,0:T(1,128)}', space=vmem, size = 0x12000, scoped, tag = 'internal scratch']
  #allocation2 [shape = 'f32[64,128]{1,0:T(8,128)}', space=vmem, size = 0x8000, scoped, tag = 'scratch operand']
  %s0 = inlined_call_operand.vmem [shape: bf16[64,128], index: 0, kind: input, shape index: {}]
  %s1 = inlined_call_operand.vmem [shape: bf16[128,128], index: 1, kind: input, shape index: {}]
  %s2 = inlined_call_operand.vmem [shape: f32[1,128], index: 2, kind: input, shape index: {}]
  %s3 = inlined_call_operand.vmem [shape: bf16[64,128], index: 3, kind: input, shape index: {}]
  %s4 = inlined_call_operand.vmem [shape: bf16[64,128], index: 4, kind: output, shape index: {}]
  %s5 = sld [smem:[#allocation0]]
  $region34: #{roi_box_feature_extractor.13} parent=0
    _
  %s7 = ssub.s32 1, %s5
  %s8 = scalar_select 0, %s7, %s5
  // Predicated region
  $region2: #{roi_box_feature_extractor.13} parent=0 // pred_check
    _
  $region3: #{roi_box_feature_extractor.13} parent=0 // pred_check_branch
    %10 = sbr.rel (0) target = $region5
  $region4: #{roi_box_feature_extractor.13} parent=0 // pred_region
    _
  $region5: #{roi_box_feature_extractor.13} parent=0 // pred_fallthru
    _
  // Predicated region
  $region6: #{roi_box_feature_extractor.13} parent=0 // pred_check
    _
  $region7: #{roi_box_feature_extractor.13} parent=0 // pred_check_branch
    %12 = sbr.rel (0) target = $region9
  $region8: #{roi_box_feature_extractor.13} parent=0 // pred_region
    _
  $region9: #{roi_box_feature_extractor.13} parent=0 // pred_fallthru
    _
  // Predicated region
  $region10: #{roi_box_feature_extractor.13} parent=0 // pred_check
    _
  $region11: #{roi_box_feature_extractor.13} parent=0 // pred_check_branch
    %14 = sbr.rel (0) target = $region13
  $region12: #{roi_box_feature_extractor.13} parent=0 // pred_region
    _
  $region13: #{roi_box_feature_extractor.13} parent=0 // pred_fallthru
    _
  // Predicated region
  $region14: #{roi_box_feature_extractor.13} parent=0 // pred_check
    _
  $region15: #{roi_box_feature_extractor.13} parent=0 // pred_check_branch
    %16 = sbr.rel (0) target = $region17
  $region16: #{roi_box_feature_extractor.13} parent=0 // pred_region
    _
  $region17: #{roi_box_feature_extractor.13} parent=0 // pred_fallthru
    _
  %p18 = scmp.eq.s32.totalorder 0, 0
  // Predicated region
  $region18: #{roi_box_feature_extractor.13} parent=0 // pred_check
    %p19 = pneg %p18
  $region19: #{roi_box_feature_extractor.13} parent=0 // pred_check_branch
    %21 = sbr.rel (%p19) target = $region21
  $region20: #{roi_box_feature_extractor.13} parent=0 // pred_region
    %22 = vst [vmem:[#allocation2] sm:$0xff] 0.0
    %23 = vst [vmem:[#allocation2 + $0x8] sm:$0xff] 0.0
    %24 = vst [vmem:[#allocation2 + $0x10] sm:$0xff] 0.0
    %25 = vst [vmem:[#allocation2 + $0x18] sm:$0xff] 0.0
    %26 = vst [vmem:[#allocation2 + $0x20] sm:$0xff] 0.0
    %27 = vst [vmem:[#allocation2 + $0x28] sm:$0xff] 0.0
    %28 = vst [vmem:[#allocation2 + $0x30] sm:$0xff] 0.0
    %29 = vst [vmem:[#allocation2 + $0x38] sm:$0xff] 0.0
  $region21: #{roi_box_feature_extractor.13} parent=0 // pred_fallthru
    _
  %v30 = vld [vmem:[#allocation2] sm:$0xff]
  %v31 = vld [vmem:[#allocation2 + $0x8] sm:$0xff]
  %v32 = vld [vmem:[#allocation2 + $0x10] sm:$0xff]
  %v33 = vld [vmem:[#allocation2 + $0x18] sm:$0xff]
  %v34 = vld [vmem:[#allocation2 + $0x20] sm:$0xff]
  %v35 = vld [vmem:[#allocation2 + $0x28] sm:$0xff]
  %v36 = vld [vmem:[#allocation2 + $0x30] sm:$0xff]
  %v37 = vld [vmem:[#allocation2 + $0x38] sm:$0xff]
  %v38 = vld [vmem:[%s0] sm:$0xf]
  %v39 = vld [vmem:[%s0 + $0x4] sm:$0xf]
  %v40 = vld [vmem:[%s0 + $0x8] sm:$0xf]
  %v41 = vld [vmem:[%s0 + $0xc] sm:$0xf]
  %v42 = vld [vmem:[%s0 + $0x10] sm:$0xf]
  %v43 = vld [vmem:[%s0 + $0x14] sm:$0xf]
  %v44 = vld [vmem:[%s0 + $0x18] sm:$0xf]
  %v45 = vld [vmem:[%s0 + $0x1c] sm:$0xf]
  %v46 = vld [vmem:[%s1] sm:$0xf]
  %v47 = vld [vmem:[%s1 + $0x4] sm:$0xf]
  %v48 = vld [vmem:[%s1 + $0x8] sm:$0xf]
  %v49 = vld [vmem:[%s1 + $0xc] sm:$0xf]
  %v50 = vld [vmem:[%s1 + $0x10] sm:$0xf]
  %v51 = vld [vmem:[%s1 + $0x14] sm:$0xf]
  %v52 = vld [vmem:[%s1 + $0x18] sm:$0xf]
  %v53 = vld [vmem:[%s1 + $0x1c] sm:$0xf]
  %v54 = vld [vmem:[%s1 + $0x20] sm:$0xf]
  %v55 = vld [vmem:[%s1 + $0x24] sm:$0xf]
  %v56 = vld [vmem:[%s1 + $0x28] sm:$0xf]
  %v57 = vld [vmem:[%s1 + $0x2c] sm:$0xf]
  %v58 = vld [vmem:[%s1 + $0x30] sm:$0xf]
  %v59 = vld [vmem:[%s1 + $0x34] sm:$0xf]
  %v60 = vld [vmem:[%s1 + $0x38] sm:$0xf]
  %v61 = vld [vmem:[%s1 + $0x3c] sm:$0xf]
  %v70 = vunpack.c.l.b16 %v38
  %v71 = vunpack.c.l.b16 %v39
  %v72 = vunpack.c.l.b16 %v40
  %v73 = vunpack.c.l.b16 %v41
  %v74 = vunpack.c.l.b16 %v42
  %v75 = vunpack.c.l.b16 %v43
  %v76 = vunpack.c.l.b16 %v44
  %v77 = vunpack.c.l.b16 %v45
  %v78 = vpack.c.b16 %v71, %v70
  %v79 = vpack.c.b16 %v73, %v72
  %v80 = vpack.c.b16 %v75, %v74
  %v81 = vpack.c.b16 %v77, %v76
  %v102 = vunpack.c.l.b16 %v46
  %v103 = vunpack.c.l.b16 %v47
  %v104 = vunpack.c.l.b16 %v48
  %v105 = vunpack.c.l.b16 %v49
  %v106 = vunpack.c.l.b16 %v50
  %v107 = vunpack.c.l.b16 %v51
  %v108 = vunpack.c.l.b16 %v52
  %v109 = vunpack.c.l.b16 %v53
  %v110 = vunpack.c.l.b16 %v54
  %v111 = vunpack.c.l.b16 %v55
  %v112 = vunpack.c.l.b16 %v56
  %v113 = vunpack.c.l.b16 %v57
  %v114 = vunpack.c.l.b16 %v58
  %v115 = vunpack.c.l.b16 %v59
  %v116 = vunpack.c.l.b16 %v60
  %v117 = vunpack.c.l.b16 %v61
  %v118 = vpack.c.b16 %v103, %v102
  %v119 = vpack.c.b16 %v105, %v104
  %v120 = vpack.c.b16 %v107, %v106
  %v121 = vpack.c.b16 %v109, %v108
  %v122 = vpack.c.b16 %v111, %v110
  %v123 = vpack.c.b16 %v113, %v112
  %v124 = vpack.c.b16 %v115, %v114
  %v125 = vpack.c.b16 %v117, %v116
  %134 = vmatprep.subr.bf16.mxu0 0
  %135 = vmatpush1.bf16.msra.mxu0 %v125
  %136 = vmatprep.subr.bf16.mxu0 0
  %137 = vmatpush1.bf16.msra.mxu0 %v124
  %138 = vmatprep.subr.bf16.mxu0 0
  %139 = vmatpush1.bf16.msra.mxu0 %v123
  %140 = vmatprep.subr.bf16.mxu0 0
  %141 = vmatpush1.bf16.msra.mxu0 %v122
  %142 = vmatprep.subr.bf16.mxu0 0
  %143 = vmatpush1.bf16.msra.mxu0 %v121
  %144 = vmatprep.subr.bf16.mxu0 0
  %145 = vmatpush1.bf16.msra.mxu0 %v120
  %146 = vmatprep.subr.bf16.mxu0 0
  %147 = vmatpush1.bf16.msra.mxu0 %v119
  %148 = vmatprep.subr.bf16.mxu0 0
  %149 = vmatpush1.bf16.msra.mxu0 %v118
  %150 = vmatprep.subr.bf16.mxu0 0
  %151 = vmatpush2.bf16.msra.mxu0 0
  %152 = vmatprep.subr.bf16.mxu0 0
  %153 = vmatpush2.bf16.msra.mxu0 0
  %154 = vmatprep.subr.bf16.mxu0 0
  %155 = vmatpush2.bf16.msra.mxu0 0
  %156 = vmatprep.subr.bf16.mxu0 0
  %157 = vmatpush2.bf16.msra.mxu0 0
  %158 = vmatprep.subr.bf16.mxu0 0
  %159 = vmatpush2.bf16.msra.mxu0 0
  %160 = vmatprep.subr.bf16.mxu0 0
  %161 = vmatpush2.bf16.msra.mxu0 0
  %162 = vmatprep.subr.bf16.mxu0 0
  %163 = vmatpush2.bf16.msra.mxu0 0
  %164 = vmatprep.subr.bf16.mxu0 0
  %165 = vmatpush2.bf16.msra.mxu0 0
  %166 = vmatprep.mubr.bf16.mxu0 0
  %167 = vmatmul.mubr.bf16.gmra.mxu0 %v78
  %v168 = vpop.f32.mrf.mxu0
  %v169 = vadd.f32 0.0, %v168
  %v170 = vpop.f32.mrf.mxu0
  %v171 = vpop.f32.mrf.mxu0
  %v172 = vadd.f32 0.0, %v171
  %v173 = vpop.f32.mrf.mxu0
  %174 = vmatprep.mubr.bf16.mxu0 0
  %175 = vmatmul.mubr.bf16.gmra.mxu0 %v79
  %v176 = vpop.f32.mrf.mxu0
  %v177 = vadd.f32 0.0, %v176
  %v178 = vpop.f32.mrf.mxu0
  %v179 = vpop.f32.mrf.mxu0
  %v180 = vadd.f32 0.0, %v179
  %v181 = vpop.f32.mrf.mxu0
  %182 = vmatprep.mubr.bf16.mxu0 0
  %183 = vmatmul.mubr.bf16.gmra.mxu0 %v80
  %v184 = vpop.f32.mrf.mxu0
  %v185 = vadd.f32 0.0, %v184
  %v186 = vpop.f32.mrf.mxu0
  %v187 = vpop.f32.mrf.mxu0
  %v188 = vadd.f32 0.0, %v187
  %v189 = vpop.f32.mrf.mxu0
  %190 = vmatprep.mubr.bf16.mxu0 0
  %191 = vmatmul.mubr.bf16.gmra.mxu0 %v81
  %v192 = vpop.f32.mrf.mxu0
  %v193 = vadd.f32 0.0, %v192
  %v194 = vpop.f32.mrf.mxu0
  %v195 = vpop.f32.mrf.mxu0
  %v196 = vadd.f32 0.0, %v195
  %v197 = vpop.f32.mrf.mxu0
  %198 = vdwg.mxu0
  %v199 = vadd.f32 %v30, %v169
  %v200 = vadd.f32 %v31, %v172
  %v201 = vadd.f32 %v32, %v177
  %v202 = vadd.f32 %v33, %v180
  %v203 = vadd.f32 %v34, %v185
  %v204 = vadd.f32 %v35, %v188
  %v205 = vadd.f32 %v36, %v193
  %v206 = vadd.f32 %v37, %v196
  %207 = vst [vmem:[#allocation2] sm:$0xff] %v199
  %208 = vst [vmem:[#allocation2 + $0x8] sm:$0xff] %v200
  %209 = vst [vmem:[#allocation2 + $0x10] sm:$0xff] %v201
  %210 = vst [vmem:[#allocation2 + $0x18] sm:$0xff] %v202
  %211 = vst [vmem:[#allocation2 + $0x20] sm:$0xff] %v203
  %212 = vst [vmem:[#allocation2 + $0x28] sm:$0xff] %v204
  %213 = vst [vmem:[#allocation2 + $0x30] sm:$0xff] %v205
  %214 = vst [vmem:[#allocation2 + $0x38] sm:$0xff] %v206
  // Predicated region
  $region22: #{roi_box_feature_extractor.13} parent=0 // pred_check
    %p215 = pneg %p18
  $region23: #{roi_box_feature_extractor.13} parent=0 // pred_check_branch
    %217 = sbr.rel (%p215) target = $region25
  $region24: #{roi_box_feature_extractor.13} parent=0 // pred_region
    %v218 = vld [vmem:[#allocation2] sm:$0xff]
    %v219 = vld [vmem:[#allocation2 + $0x8] sm:$0xff]
    %v220 = vld [vmem:[#allocation2 + $0x10] sm:$0xff]
    %v221 = vld [vmem:[#allocation2 + $0x18] sm:$0xff]
    %v222 = vld [vmem:[#allocation2 + $0x20] sm:$0xff]
    %v223 = vld [vmem:[#allocation2 + $0x28] sm:$0xff]
    %v224 = vld [vmem:[#allocation2 + $0x30] sm:$0xff]
    %v225 = vld [vmem:[#allocation2 + $0x38] sm:$0xff]
    %v226 = vld [vmem:[%s2] sm:$0x1]
    %v228 = vlaneseq
    %v229 = vshrl.u32 %v228, 7
    %v230 = vsub.s32 0, %v229
    %v231 = vrot.slane %v226, %v230
    %v233 = vadd.f32 %v218, %v231
    %v234 = vadd.f32 %v219, %v231
    %v235 = vadd.f32 %v220, %v231
    %v236 = vadd.f32 %v221, %v231
    %v237 = vadd.f32 %v222, %v231
    %v238 = vadd.f32 %v223, %v231
    %v239 = vadd.f32 %v224, %v231
    %v240 = vadd.f32 %v225, %v231
    %v241 = vld [vmem:[%s3] sm:$0xf]
    %v242 = vld [vmem:[%s3 + $0x4] sm:$0xf]
    %v243 = vld [vmem:[%s3 + $0x8] sm:$0xf]
    %v244 = vld [vmem:[%s3 + $0xc] sm:$0xf]
    %v245 = vld [vmem:[%s3 + $0x10] sm:$0xf]
    %v246 = vld [vmem:[%s3 + $0x14] sm:$0xf]
    %v247 = vld [vmem:[%s3 + $0x18] sm:$0xf]
    %v248 = vld [vmem:[%s3 + $0x1c] sm:$0xf]
    %v249 = vunpack.c.l.bf16 %v241
    %v250 = vunpack.c.l.bf16 %v242
    %v251 = vunpack.c.l.bf16 %v243
    %v252 = vunpack.c.l.bf16 %v244
    %v253 = vunpack.c.l.bf16 %v245
    %v254 = vunpack.c.l.bf16 %v246
    %v255 = vunpack.c.l.bf16 %v247
    %v256 = vunpack.c.l.bf16 %v248
    %v257 = vadd.f32 %v233, %v249
    %v258 = vadd.f32 %v234, %v250
    %v259 = vadd.f32 %v235, %v251
    %v260 = vadd.f32 %v236, %v252
    %v261 = vadd.f32 %v237, %v253
    %v262 = vadd.f32 %v238, %v254
    %v263 = vadd.f32 %v239, %v255
    %v264 = vadd.f32 %v240, %v256
    %v265 = vmax.f32 %v257, 0.0
    %v266 = vmax.f32 %v258, 0.0
    %v267 = vmax.f32 %v259, 0.0
    %v268 = vmax.f32 %v260, 0.0
    %v269 = vmax.f32 %v261, 0.0
    %v270 = vmax.f32 %v262, 0.0
    %v271 = vmax.f32 %v263, 0.0
    %v272 = vmax.f32 %v264, 0.0
    %v273 = vpack.c.bf16 %v266, %v265
    %v274 = vpack.c.bf16 %v268, %v267
    %v275 = vpack.c.bf16 %v270, %v269
    %v276 = vpack.c.bf16 %v272, %v271
    %v281 = vunpack.c.l.b16 %v273
    %v282 = vunpack.c.h.b16 %v273
    %v283 = vunpack.c.l.b16 %v274
    %v284 = vunpack.c.h.b16 %v274
    %v285 = vunpack.c.l.b16 %v275
    %v286 = vunpack.c.h.b16 %v275
    %v287 = vunpack.c.l.b16 %v276
    %v288 = vunpack.c.h.b16 %v276
    %v289 = vpack.c.b16 %v281, %v281
    %v290 = vpack.c.b16 %v282, %v282
    %v291 = vpack.c.b16 %v283, %v283
    %v292 = vpack.c.b16 %v284, %v284
    %v293 = vpack.c.b16 %v285, %v285
    %v294 = vpack.c.b16 %v286, %v286
    %v295 = vpack.c.b16 %v287, %v287
    %v296 = vpack.c.b16 %v288, %v288
    %305 = vst [vmem:[%s4] sm:$0xf] %v289
    %306 = vst [vmem:[%s4 + $0x4] sm:$0xf] %v290
    %307 = vst [vmem:[%s4 + $0x8] sm:$0xf] %v291
    %308 = vst [vmem:[%s4 + $0xc] sm:$0xf] %v292
    %309 = vst [vmem:[%s4 + $0x10] sm:$0xf] %v293
    %310 = vst [vmem:[%s4 + $0x14] sm:$0xf] %v294
    %311 = vst [vmem:[%s4 + $0x18] sm:$0xf] %v295
    %312 = vst [vmem:[%s4 + $0x1c] sm:$0xf] %v296
  $region25: #{roi_box_feature_extractor.13} parent=0 // pred_fallthru
    _
  // Predicated region
  $region26: #{roi_box_feature_extractor.13} parent=0 // pred_check
    _
  $region27: #{roi_box_feature_extractor.13} parent=0 // pred_check_branch
    %314 = sbr.rel (0) target = $region29
  $region28: #{roi_box_feature_extractor.13} parent=0 // pred_region
    _
  $region29: #{roi_box_feature_extractor.13} parent=0 // pred_fallthru
    _
  // Predicated region
  $region30: #{roi_box_feature_extractor.13} parent=0 // pred_check
    _
  $region31: #{roi_box_feature_extractor.13} parent=0 // pred_check_branch
    %316 = sbr.rel (0) target = $region33
  $region32: #{roi_box_feature_extractor.13} parent=0 // pred_region
    _
  $region33: #{roi_box_feature_extractor.13} parent=0 // pred_fallthru
    _

// kernel: roi_box_feature_extractor.12
$region0: #{roi_box_feature_extractor.12}
  #allocation0 [shape = 'u32[]', space=smem, size = 0x4, offset = 0x4, fixed_abs, tag = 'smem constant byte address 0x4 - core index']
  #allocation1 [shape = 'u32[144,128]{1,0:T(1,128)}', space=vmem, size = 0x12000, scoped, tag = 'internal scratch']
  #allocation2 [shape = 'f32[4,24,128]{2,1,0:T(8,128)}', space=vmem, size = 0xc000, scoped, tag = 'scratch operand']
  %s0 = inlined_call_operand.vmem [shape: bf16[4,42,128], index: 0, kind: input, shape index: {}]
  %s1 = inlined_call_operand.vmem [shape: bf16[9,128,128], index: 1, kind: input, shape index: {}]
  %s2 = inlined_call_operand.vmem [shape: f32[1,128], index: 2, kind: input, shape index: {}]
  %s3 = inlined_call_operand.vmem [shape: bf16[4,24,128], index: 3, kind: output, shape index: {}]
  %s4 = sld [smem:[#allocation0]]
  $region30: #{roi_box_feature_extractor.12} parent=0
    _
  %s6 = ssub.s32 1, %s4
  %s7 = scalar_select 0, %s6, %s4
  // Predicated region
  $region2: #{roi_box_feature_extractor.12} parent=0 // pred_check
    _
  $region3: #{roi_box_feature_extractor.12} parent=0 // pred_check_branch
    %9 = sbr.rel (0) target = $region5
  $region4: #{roi_box_feature_extractor.12} parent=0 // pred_region
    _
  $region5: #{roi_box_feature_extractor.12} parent=0 // pred_fallthru
    _
  // Predicated region
  $region6: #{roi_box_feature_extractor.12} parent=0 // pred_check
    _
  $region7: #{roi_box_feature_extractor.12} parent=0 // pred_check_branch
    %11 = sbr.rel (0) target = $region9
  $region8: #{roi_box_feature_extractor.12} parent=0 // pred_region
    _
  $region9: #{roi_box_feature_extractor.12} parent=0 // pred_fallthru
    _
  // Predicated region
  $region10: #{roi_box_feature_extractor.12} parent=0 // pred_check
    _
  $region11: #{roi_box_feature_extractor.12} parent=0 // pred_check_branch
    %13 = sbr.rel (0) target = $region13
  $region12: #{roi_box_feature_extractor.12} parent=0 // pred_region
    _
  $region13: #{roi_box_feature_extractor.12} parent=0 // pred_fallthru
    _
  %p15 = scmp.eq.s32.totalorder 0, 0
  // Predicated region
  $region14: #{roi_box_feature_extractor.12} parent=0 // pred_check
    %p16 = pneg %p15
  $region15: #{roi_box_feature_extractor.12} parent=0 // pred_check_branch
    %18 = sbr.rel (%p16) target = $region17
  $region16: #{roi_box_feature_extractor.12} parent=0 // pred_region
    %19 = vst [vmem:[#allocation2] sm:$0xff] 0.0
    %20 = vst [vmem:[#allocation2 + $0x8] sm:$0xff] 0.0
    %21 = vst [vmem:[#allocation2 + $0x10] sm:$0xff] 0.0
    %22 = vst [vmem:[#allocation2 + $0x18] sm:$0xff] 0.0
    %23 = vst [vmem:[#allocation2 + $0x20] sm:$0xff] 0.0
    %24 = vst [vmem:[#allocation2 + $0x28] sm:$0xff] 0.0
    %25 = vst [vmem:[#allocation2 + $0x30] sm:$0xff] 0.0
    %26 = vst [vmem:[#allocation2 + $0x38] sm:$0xff] 0.0
    %27 = vst [vmem:[#allocation2 + $0x40] sm:$0xff] 0.0
    %28 = vst [vmem:[#allocation2 + $0x48] sm:$0xff] 0.0
    %29 = vst [vmem:[#allocation2 + $0x50] sm:$0xff] 0.0
    %30 = vst [vmem:[#allocation2 + $0x58] sm:$0xff] 0.0
  $region17: #{roi_box_feature_extractor.12} parent=0 // pred_fallthru
    _
  %v31 = vld [vmem:[#allocation2] sm:$0xff]
  %v32 = vld [vmem:[#allocation2 + $0x8] sm:$0xff]
  %v33 = vld [vmem:[#allocation2 + $0x10] sm:$0xff]
  %v34 = vld [vmem:[%s0] sm:$0xf]
  %v35 = vld [vmem:[%s0 + $0x4] sm:$0xf]
  %v36 = vld [vmem:[%s0 + $0x8] sm:$0xf]
  %v37 = vld [vmem:[%s1] sm:$0xf]
  %v38 = vld [vmem:[%s1 + $0x4] sm:$0xf]
  %v39 = vld [vmem:[%s1 + $0x8] sm:$0xf]
  %v40 = vld [vmem:[%s1 + $0xc] sm:$0xf]
  %v41 = vld [vmem:[%s1 + $0x10] sm:$0xf]
  %v42 = vld [vmem:[%s1 + $0x14] sm:$0xf]
  %v43 = vld [vmem:[%s1 + $0x18] sm:$0xf]
  %v44 = vld [vmem:[%s1 + $0x1c] sm:$0xf]
  %v45 = vld [vmem:[%s1 + $0x20] sm:$0xf]
  %v46 = vld [vmem:[%s1 + $0x24] sm:$0xf]
  %v47 = vld [vmem:[%s1 + $0x28] sm:$0xf]
  %v48 = vld [vmem:[%s1 + $0x2c] sm:$0xf]
  %v49 = vld [vmem:[%s1 + $0x30] sm:$0xf]
  %v50 = vld [vmem:[%s1 + $0x34] sm:$0xf]
  %v51 = vld [vmem:[%s1 + $0x38] sm:$0xf]
  %v52 = vld [vmem:[%s1 + $0x3c] sm:$0xf]
  %v56 = vunpack.c.l.b16 %v34
  %v57 = vunpack.c.l.b16 %v35
  %v58 = vunpack.c.l.b16 %v36
  %v59 = vpack.c.b16 %v57, %v56
  %v60 = vpack.c.b16 %v58, %v58
  %v79 = vunpack.c.l.b16 %v37
  %v80 = vunpack.c.l.b16 %v38
  %v81 = vunpack.c.l.b16 %v39
  %v82 = vunpack.c.l.b16 %v40
  %v83 = vunpack.c.l.b16 %v41
  %v84 = vunpack.c.l.b16 %v42
  %v85 = vunpack.c.l.b16 %v43
  %v86 = vunpack.c.l.b16 %v44
  %v87 = vunpack.c.l.b16 %v45
  %v88 = vunpack.c.l.b16 %v46
  %v89 = vunpack.c.l.b16 %v47
  %v90 = vunpack.c.l.b16 %v48
  %v91 = vunpack.c.l.b16 %v49
  %v92 = vunpack.c.l.b16 %v50
  %v93 = vunpack.c.l.b16 %v51
  %v94 = vunpack.c.l.b16 %v52
  %v95 = vpack.c.b16 %v80, %v79
  %v96 = vpack.c.b16 %v82, %v81
  %v97 = vpack.c.b16 %v84, %v83
  %v98 = vpack.c.b16 %v86, %v85
  %v99 = vpack.c.b16 %v88, %v87
  %v100 = vpack.c.b16 %v90, %v89
  %v101 = vpack.c.b16 %v92, %v91
  %v102 = vpack.c.b16 %v94, %v93
  %111 = vmatprep.subr.bf16.mxu0 0
  %112 = vmatpush1.bf16.msra.mxu0 %v102
  %113 = vmatprep.subr.bf16.mxu0 0
  %114 = vmatpush1.bf16.msra.mxu0 %v101
  %115 = vmatprep.subr.bf16.mxu0 0
  %116 = vmatpush1.bf16.msra.mxu0 %v100
  %117 = vmatprep.subr.bf16.mxu0 0
  %118 = vmatpush1.bf16.msra.mxu0 %v99
  %119 = vmatprep.subr.bf16.mxu0 0
  %120 = vmatpush1.bf16.msra.mxu0 %v98
  %121 = vmatprep.subr.bf16.mxu0 0
  %122 = vmatpush1.bf16.msra.mxu0 %v97
  %123 = vmatprep.subr.bf16.mxu0 0
  %124 = vmatpush1.bf16.msra.mxu0 %v96
  %125 = vmatprep.subr.bf16.mxu0 0
  %126 = vmatpush1.bf16.msra.mxu0 %v95
  %127 = vmatprep.subr.bf16.mxu0 0
  %128 = vmatpush2.bf16.msra.mxu0 0
  %129 = vmatprep.subr.bf16.mxu0 0
  %130 = vmatpush2.bf16.msra.mxu0 0
  %131 = vmatprep.subr.bf16.mxu0 0
  %132 = vmatpush2.bf16.msra.mxu0 0
  %133 = vmatprep.subr.bf16.mxu0 0
  %134 = vmatpush2.bf16.msra.mxu0 0
  %135 = vmatprep.subr.bf16.mxu0 0
  %136 = vmatpush2.bf16.msra.mxu0 0
  %137 = vmatprep.subr.bf16.mxu0 0
  %138 = vmatpush2.bf16.msra.mxu0 0
  %139 = vmatprep.subr.bf16.mxu0 0
  %140 = vmatpush2.bf16.msra.mxu0 0
  %141 = vmatprep.subr.bf16.mxu0 0
  %142 = vmatpush2.bf16.msra.mxu0 0
  %143 = vmatprep.mubr.bf16.mxu0 0
  %144 = vmatmul.mubr.bf16.gmra.mxu0 %v59
  %v145 = vpop.f32.mrf.mxu0
  %v146 = vadd.f32 0.0, %v145
  %v147 = vpop.f32.mrf.mxu0
  %v148 = vpop.f32.mrf.mxu0
  %v149 = vadd.f32 0.0, %v148
  %v150 = vpop.f32.mrf.mxu0
  %151 = vmatprep.mubr.bf16.mxu0 0
  %152 = vmatmul.mubr.bf16.gmra.mxu0 %v60
  %v153 = vpop.f32.mrf.mxu0
  %v154 = vadd.f32 0.0, %v153
  %v155 = vpop.f32.mrf.mxu0
  %v156 = vpop.f32.mrf.mxu0
  %v157 = vpop.f32.mrf.mxu0
  %158 = vdwg.mxu0
  %v159 = vadd.f32 %v31, %v146
  %v160 = vadd.f32 %v32, %v149
  %v161 = vadd.f32 %v33, %v154
  %v162 = vld [vmem:[%s0] sm:$0xf]
  %v163 = vld [vmem:[%s0 + $0x4] sm:$0xf]
  %v164 = vld [vmem:[%s0 + $0x8] sm:$0xf]
  %v165 = vld [vmem:[%s0 + $0xc] sm:$0x1]
  %s166 = scalar_lea.vmem %s1, 64
  %v167 = vld [vmem:[%s166] sm:$0xf]
  %v168 = vld [vmem:[%s166 + $0x4] sm:$0xf]
  %v169 = vld [vmem:[%s166 + $0x8] sm:$0xf]
  %v170 = vld [vmem:[%s166 + $0xc] sm:$0xf]
  %v171 = vld [vmem:[%s166 + $0x10] sm:$0xf]
  %v172 = vld [vmem:[%s166 + $0x14] sm:$0xf]
  %v173 = vld [vmem:[%s166 + $0x18] sm:$0xf]
  %v174 = vld [vmem:[%s166 + $0x1c] sm:$0xf]
  %v175 = vld [vmem:[%s166 + $0x20] sm:$0xf]
  %v176 = vld [vmem:[%s166 + $0x24] sm:$0xf]
  %v177 = vld [vmem:[%s166 + $0x28] sm:$0xf]
  %v178 = vld [vmem:[%s166 + $0x2c] sm:$0xf]
  %v179 = vld [vmem:[%s166 + $0x30] sm:$0xf]
  %v180 = vld [vmem:[%s166 + $0x34] sm:$0xf]
  %v181 = vld [vmem:[%s166 + $0x38] sm:$0xf]
  %v182 = vld [vmem:[%s166 + $0x3c] sm:$0xf]
  %v187 = vunpack.c.l.b16 %v162
  %v188 = vunpack.c.l.b16 %v163
  %v189 = vunpack.c.l.b16 %v164
  %v190 = vunpack.c.l.b16 %v165
  %v191 = vpack.c.b16 %v188, %v187
  %v192 = vpack.c.b16 %v190, %v189
  %vm193 = vsmask.f32 7424
  %v195 = vshrl.u32 %v191, 16
  %v197 = vshll.u32 %v191, 16
  %v199 = vrot.slane %v197, 1
  %v200 = vor.u32 %v195, %v199
  %v202 = vshll.u32 %v192, 16
  %v204 = vrot.slane %v202, 1
  %v205 = vsel %vm193, %v200, %v204
  %v206 = vshrl.u32 %v192, 16
  %v208 = vor.u32 %v206, %v204
  %v227 = vunpack.c.l.b16 %v167
  %v228 = vunpack.c.l.b16 %v168
  %v229 = vunpack.c.l.b16 %v169
  %v230 = vunpack.c.l.b16 %v170
  %v231 = vunpack.c.l.b16 %v171
  %v232 = vunpack.c.l.b16 %v172
  %v233 = vunpack.c.l.b16 %v173
  %v234 = vunpack.c.l.b16 %v174
  %v235 = vunpack.c.l.b16 %v175
  %v236 = vunpack.c.l.b16 %v176
  %v237 = vunpack.c.l.b16 %v177
  %v238 = vunpack.c.l.b16 %v178
  %v239 = vunpack.c.l.b16 %v179
  %v240 = vunpack.c.l.b16 %v180
  %v241 = vunpack.c.l.b16 %v181
  %v242 = vunpack.c.l.b16 %v182
  %v243 = vpack.c.b16 %v228, %v227
  %v244 = vpack.c.b16 %v230, %v229
  %v245 = vpack.c.b16 %v232, %v231
  %v246 = vpack.c.b16 %v234, %v233
  %v247 = vpack.c.b16 %v236, %v235
  %v248 = vpack.c.b16 %v238, %v237
  %v249 = vpack.c.b16 %v240, %v239
  %v250 = vpack.c.b16 %v242, %v241
  %259 = vmatprep.subr.bf16.mxu0 0
  %260 = vmatpush1.bf16.msra.mxu0 %v250
  %261 = vmatprep.subr.bf16.mxu0 0
  %262 = vmatpush1.bf16.msra.mxu0 %v249
  %263 = vmatprep.subr.bf16.mxu0 0
  %264 = vmatpush1.bf16.msra.mxu0 %v248
  %265 = vmatprep.subr.bf16.mxu0 0
  %266 = vmatpush1.bf16.msra.mxu0 %v247
  %267 = vmatprep.subr.bf16.mxu0 0
  %268 = vmatpush1.bf16.msra.mxu0 %v246
  %269 = vmatprep.subr.bf16.mxu0 0
  %270 = vmatpush1.bf16.msra.mxu0 %v245
  %271 = vmatprep.subr.bf16.mxu0 0
  %272 = vmatpush1.bf16.msra.mxu0 %v244
  %273 = vmatprep.subr.bf16.mxu0 0
  %274 = vmatpush1.bf16.msra.mxu0 %v243
  %275 = vmatprep.subr.bf16.mxu0 0
  %276 = vmatpush2.bf16.msra.mxu0 0
  %277 = vmatprep.subr.bf16.mxu0 0
  %278 = vmatpush2.bf16.msra.mxu0 0
  %279 = vmatprep.subr.bf16.mxu0 0
  %280 = vmatpush2.bf16.msra.mxu0 0
  %281 = vmatprep.subr.bf16.mxu0 0
  %282 = vmatpush2.bf16.msra.mxu0 0
  %283 = vmatprep.subr.bf16.mxu0 0
  %284 = vmatpush2.bf16.msra.mxu0 0
  %285 = vmatprep.subr.bf16.mxu0 0
  %286 = vmatpush2.bf16.msra.mxu0 0
  %287 = vmatprep.subr.bf16.mxu0 0
  %288 = vmatpush2.bf16.msra.mxu0 0
  %289 = vmatprep.subr.bf16.mxu0 0
  %290 = vmatpush2.bf16.msra.mxu0 0
  %291 = vmatprep.mubr.bf16.mxu0 0
  %292 = vmatmul.mubr.bf16.gmra.mxu0 %v205
  %v293 = vpop.f32.mrf.mxu0
  %v294 = vadd.f32 0.0, %v293
  %v295 = vpop.f32.mrf.mxu0
  %v296 = vpop.f32.mrf.mxu0
  %v297 = vadd.f32 0.0, %v296
  %v298 = vpop.f32.mrf.mxu0
  %299 = vmatprep.mubr.bf16.mxu0 0
  %300 = vmatmul.mubr.bf16.gmra.mxu0 %v208
  %v301 = vpop.f32.mrf.mxu0
  %v302 = vadd.f32 0.0, %v301
  %v303 = vpop.f32.mrf.mxu0
  %v304 = vpop.f32.mrf.mxu0
  %v305 = vpop.f32.mrf.mxu0
  %306 = vdwg.mxu0
  %v307 = vadd.f32 %v159, %v294
  %v308 = vadd.f32 %v160, %v297
  %v309 = vadd.f32 %v161, %v302
  %v310 = vld [vmem:[%s0] sm:$0xe]
  %s311 = scalar_lea.vmem %s1, 128
  %v312 = vld [vmem:[%s311] sm:$0xf]
  %v313 = vld [vmem:[%s311 + $0x4] sm:$0xf]
  %v314 = vld [vmem:[%s311 + $0x8] sm:$0xf]
  %v315 = vld [vmem:[%s311 + $0xc] sm:$0xf]
  %v316 = vld [vmem:[%s311 + $0x10] sm:$0xf]
  %v317 = vld [vmem:[%s311 + $0x14] sm:$0xf]
  %v318 = vld [vmem:[%s311 + $0x18] sm:$0xf]
  %v319 = vld [vmem:[%s311 + $0x1c] sm:$0xf]
  %v320 = vld [vmem:[%s311 + $0x20] sm:$0xf]
  %v321 = vld [vmem:[%s311 + $0x24] sm:$0xf]
  %v322 = vld [vmem:[%s311 + $0x28] sm:$0xf]
  %v323 = vld [vmem:[%s311 + $0x2c] sm:$0xf]
  %v324 = vld [vmem:[%s311 + $0x30] sm:$0xf]
  %v325 = vld [vmem:[%s311 + $0x34] sm:$0xf]
  %v326 = vld [vmem:[%s311 + $0x38] sm:$0xf]
  %v327 = vld [vmem:[%s311 + $0x3c] sm:$0xf]
  %v329 = vunpack.c.l.b16 %v310
  %v330 = vpack.c.b16 %v188, %v329
  %vm331 = vcmask 1046528
  %v332 = vrot.slane %v330, 1
  %v333 = vrot.slane %v192, 1
  %v334 = vsel %vm331, %v332, %v333
  %v353 = vunpack.c.l.b16 %v312
  %v354 = vunpack.c.l.b16 %v313
  %v355 = vunpack.c.l.b16 %v314
  %v356 = vunpack.c.l.b16 %v315
  %v357 = vunpack.c.l.b16 %v316
  %v358 = vunpack.c.l.b16 %v317
  %v359 = vunpack.c.l.b16 %v318
  %v360 = vunpack.c.l.b16 %v319
  %v361 = vunpack.c.l.b16 %v320
  %v362 = vunpack.c.l.b16 %v321
  %v363 = vunpack.c.l.b16 %v322
  %v364 = vunpack.c.l.b16 %v323
  %v365 = vunpack.c.l.b16 %v324
  %v366 = vunpack.c.l.b16 %v325
  %v367 = vunpack.c.l.b16 %v326
  %v368 = vunpack.c.l.b16 %v327
  %v369 = vpack.c.b16 %v354, %v353
  %v370 = vpack.c.b16 %v356, %v355
  %v371 = vpack.c.b16 %v358, %v357
  %v372 = vpack.c.b16 %v360, %v359
  %v373 = vpack.c.b16 %v362, %v361
  %v374 = vpack.c.b16 %v364, %v363
  %v375 = vpack.c.b16 %v366, %v365
  %v376 = vpack.c.b16 %v368, %v367
  %385 = vmatprep.subr.bf16.mxu0 0
  %386 = vmatpush1.bf16.msra.mxu0 %v376
  %387 = vmatprep.subr.bf16.mxu0 0
  %388 = vmatpush1.bf16.msra.mxu0 %v375
  %389 = vmatprep.subr.bf16.mxu0 0
  %390 = vmatpush1.bf16.msra.mxu0 %v374
  %391 = vmatprep.subr.bf16.mxu0 0
  %392 = vmatpush1.bf16.msra.mxu0 %v373
  %393 = vmatprep.subr.bf16.mxu0 0
  %394 = vmatpush1.bf16.msra.mxu0 %v372
  %395 = vmatprep.subr.bf16.mxu0 0
  %396 = vmatpush1.bf16.msra.mxu0 %v371
  %397 = vmatprep.subr.bf16.mxu0 0
  %398 = vmatpush1.bf16.msra.mxu0 %v370
  %399 = vmatprep.subr.bf16.mxu0 0
  %400 = vmatpush1.bf16.msra.mxu0 %v369
  %401 = vmatprep.subr.bf16.mxu0 0
  %402 = vmatpush2.bf16.msra.mxu0 0
  %403 = vmatprep.subr.bf16.mxu0 0
  %404 = vmatpush2.bf16.msra.mxu0 0
  %405 = vmatprep.subr.bf16.mxu0 0
  %406 = vmatpush2.bf16.msra.mxu0 0
  %407 = vmatprep.subr.bf16.mxu0 0
  %408 = vmatpush2.bf16.msra.mxu0 0
  %409 = vmatprep.subr.bf16.mxu0 0
  %410 = vmatpush2.bf16.msra.mxu0 0
  %411 = vmatprep.subr.bf16.mxu0 0
  %412 = vmatpush2.bf16.msra.mxu0 0
  %413 = vmatprep.subr.bf16.mxu0 0
  %414 = vmatpush2.bf16.msra.mxu0 0
  %415 = vmatprep.subr.bf16.mxu0 0
  %416 = vmatpush2.bf16.msra.mxu0 0
  %417 = vmatprep.mubr.bf16.mxu0 0
  %418 = vmatmul.mubr.bf16.gmra.mxu0 %v334
  %v419 = vpop.f32.mrf.mxu0
  %v420 = vadd.f32 0.0, %v419
  %v421 = vpop.f32.mrf.mxu0
  %v422 = vpop.f32.mrf.mxu0
  %v423 = vadd.f32 0.0, %v422
  %v424 = vpop.f32.mrf.mxu0
  %425 = vmatprep.mubr.bf16.mxu0 0
  %426 = vmatmul.mubr.bf16.gmra.mxu0 %v333
  %v427 = vpop.f32.mrf.mxu0
  %v428 = vadd.f32 0.0, %v427
  %v429 = vpop.f32.mrf.mxu0
  %v430 = vpop.f32.mrf.mxu0
  %v431 = vpop.f32.mrf.mxu0
  %432 = vdwg.mxu0
  %v433 = vadd.f32 %v307, %v420
  %v434 = vadd.f32 %v308, %v423
  %v435 = vadd.f32 %v309, %v428
  %v436 = vld [vmem:[%s0] sm:$0x8]
  %v437 = vld [vmem:[%s0 + $0xc] sm:$0x7]
  %s438 = scalar_lea.vmem %s1, 192
  %v439 = vld [vmem:[%s438] sm:$0xf]
  %v440 = vld [vmem:[%s438 + $0x4] sm:$0xf]
  %v441 = vld [vmem:[%s438 + $0x8] sm:$0xf]
  %v442 = vld [vmem:[%s438 + $0xc] sm:$0xf]
  %v443 = vld [vmem:[%s438 + $0x10] sm:$0xf]
  %v444 = vld [vmem:[%s438 + $0x14] sm:$0xf]
  %v445 = vld [vmem:[%s438 + $0x18] sm:$0xf]
  %v446 = vld [vmem:[%s438 + $0x1c] sm:$0xf]
  %v447 = vld [vmem:[%s438 + $0x20] sm:$0xf]
  %v448 = vld [vmem:[%s438 + $0x24] sm:$0xf]
  %v449 = vld [vmem:[%s438 + $0x28] sm:$0xf]
  %v450 = vld [vmem:[%s438 + $0x2c] sm:$0xf]
  %v451 = vld [vmem:[%s438 + $0x30] sm:$0xf]
  %v452 = vld [vmem:[%s438 + $0x34] sm:$0xf]
  %v453 = vld [vmem:[%s438 + $0x38] sm:$0xf]
  %v454 = vld [vmem:[%s438 + $0x3c] sm:$0xf]
  %v457 = vunpack.c.l.b16 %v436
  %v458 = vunpack.c.l.b16 %v437
  %v459 = vpack.c.b16 %v188, %v457
  %v460 = vpack.c.b16 %v458, %v189
  %vm461 = vcmask 1044480
  %v462 = vrot.slane %v459, 3
  %v463 = vrot.slane %v460, 3
  %v464 = vsel %vm461, %v462, %v463
  %v483 = vunpack.c.l.b16 %v439
  %v484 = vunpack.c.l.b16 %v440
  %v485 = vunpack.c.l.b16 %v441
  %v486 = vunpack.c.l.b16 %v442
  %v487 = vunpack.c.l.b16 %v443
  %v488 = vunpack.c.l.b16 %v444
  %v489 = vunpack.c.l.b16 %v445
  %v490 = vunpack.c.l.b16 %v446
  %v491 = vunpack.c.l.b16 %v447
  %v492 = vunpack.c.l.b16 %v448
  %v493 = vunpack.c.l.b16 %v449
  %v494 = vunpack.c.l.b16 %v450
  %v495 = vunpack.c.l.b16 %v451
  %v496 = vunpack.c.l.b16 %v452
  %v497 = vunpack.c.l.b16 %v453
  %v498 = vunpack.c.l.b16 %v454
  %v499 = vpack.c.b16 %v484, %v483
  %v500 = vpack.c.b16 %v486, %v485
  %v501 = vpack.c.b16 %v488, %v487
  %v502 = vpack.c.b16 %v490, %v489
  %v503 = vpack.c.b16 %v492, %v491
  %v504 = vpack.c.b16 %v494, %v493
  %v505 = vpack.c.b16 %v496, %v495
  %v506 = vpack.c.b16 %v498, %v497
  %515 = vmatprep.subr.bf16.mxu0 0
  %516 = vmatpush1.bf16.msra.mxu0 %v506
  %517 = vmatprep.subr.bf16.mxu0 0
  %518 = vmatpush1.bf16.msra.mxu0 %v505
  %519 = vmatprep.subr.bf16.mxu0 0
  %520 = vmatpush1.bf16.msra.mxu0 %v504
  %521 = vmatprep.subr.bf16.mxu0 0
  %522 = vmatpush1.bf16.msra.mxu0 %v503
  %523 = vmatprep.subr.bf16.mxu0 0
  %524 = vmatpush1.bf16.msra.mxu0 %v502
  %525 = vmatprep.subr.bf16.mxu0 0
  %526 = vmatpush1.bf16.msra.mxu0 %v501
  %527 = vmatprep.subr.bf16.mxu0 0
  %528 = vmatpush1.bf16.msra.mxu0 %v500
  %529 = vmatprep.subr.bf16.mxu0 0
  %530 = vmatpush1.bf16.msra.mxu0 %v499
  %531 = vmatprep.subr.bf16.mxu0 0
  %532 = vmatpush2.bf16.msra.mxu0 0
  %533 = vmatprep.subr.bf16.mxu0 0
  %534 = vmatpush2.bf16.msra.mxu0 0
  %535 = vmatprep.subr.bf16.mxu0 0
  %536 = vmatpush2.bf16.msra.mxu0 0
  %537 = vmatprep.subr.bf16.mxu0 0
  %538 = vmatpush2.bf16.msra.mxu0 0
  %539 = vmatprep.subr.bf16.mxu0 0
  %540 = vmatpush2.bf16.msra.mxu0 0
  %541 = vmatprep.subr.bf16.mxu0 0
  %542 = vmatpush2.bf16.msra.mxu0 0
  %543 = vmatprep.subr.bf16.mxu0 0
  %544 = vmatpush2.bf16.msra.mxu0 0
  %545 = vmatprep.subr.bf16.mxu0 0
  %546 = vmatpush2.bf16.msra.mxu0 0
  %547 = vmatprep.mubr.bf16.mxu0 0
  %548 = vmatmul.mubr.bf16.gmra.mxu0 %v464
  %v549 = vpop.f32.mrf.mxu0
  %v550 = vadd.f32 0.0, %v549
  %v551 = vpop.f32.mrf.mxu0
  %v552 = vpop.f32.mrf.mxu0
  %v553 = vadd.f32 0.0, %v552
  %v554 = vpop.f32.mrf.mxu0
  %555 = vmatprep.mubr.bf16.mxu0 0
  %556 = vmatmul.mubr.bf16.gmra.mxu0 %v463
  %v557 = vpop.f32.mrf.mxu0
  %v558 = vadd.f32 0.0, %v557
  %v559 = vpop.f32.mrf.mxu0
  %v560 = vpop.f32.mrf.mxu0
  %v561 = vpop.f32.mrf.mxu0
  %562 = vdwg.mxu0
  %v563 = vadd.f32 %v433, %v550
  %v564 = vadd.f32 %v434, %v553
  %v565 = vadd.f32 %v435, %v558
  %v566 = vld [vmem:[%s0 + $0xc] sm:$0xf]
  %s567 = scalar_lea.vmem %s1, 256
  %v568 = vld [vmem:[%s567] sm:$0xf]
  %v569 = vld [vmem:[%s567 + $0x4] sm:$0xf]
  %v570 = vld [vmem:[%s567 + $0x8] sm:$0xf]
  %v571 = vld [vmem:[%s567 + $0xc] sm:$0xf]
  %v572 = vld [vmem:[%s567 + $0x10] sm:$0xf]
  %v573 = vld [vmem:[%s567 + $0x14] sm:$0xf]
  %v574 = vld [vmem:[%s567 + $0x18] sm:$0xf]
  %v575 = vld [vmem:[%s567 + $0x1c] sm:$0xf]
  %v576 = vld [vmem:[%s567 + $0x20] sm:$0xf]
  %v577 = vld [vmem:[%s567 + $0x24] sm:$0xf]
  %v578 = vld [vmem:[%s567 + $0x28] sm:$0xf]
  %v579 = vld [vmem:[%s567 + $0x2c] sm:$0xf]
  %v580 = vld [vmem:[%s567 + $0x30] sm:$0xf]
  %v581 = vld [vmem:[%s567 + $0x34] sm:$0xf]
  %v582 = vld [vmem:[%s567 + $0x38] sm:$0xf]
  %v583 = vld [vmem:[%s567 + $0x3c] sm:$0xf]
  %v585 = vunpack.c.l.b16 %v566
  %v586 = vpack.c.b16 %v585, %v189
  %vm587 = vsmask.f32 4352
  %v589 = vshrl.u32 %v459, 16
  %v591 = vrot.slane %v589, 3
  %v592 = vshll.u32 %v459, 16
  %v594 = vrot.slane %v592, 4
  %v595 = vor.u32 %v591, %v594
  %v597 = vshrl.u32 %v586, 16
  %v599 = vrot.slane %v597, 3
  %v600 = vshll.u32 %v586, 16
  %v602 = vrot.slane %v600, 4
  %v603 = vor.u32 %v599, %v602
  %v604 = vsel %vm587, %v595, %v603
  %v623 = vunpack.c.l.b16 %v568
  %v624 = vunpack.c.l.b16 %v569
  %v625 = vunpack.c.l.b16 %v570
  %v626 = vunpack.c.l.b16 %v571
  %v627 = vunpack.c.l.b16 %v572
  %v628 = vunpack.c.l.b16 %v573
  %v629 = vunpack.c.l.b16 %v574
  %v630 = vunpack.c.l.b16 %v575
  %v631 = vunpack.c.l.b16 %v576
  %v632 = vunpack.c.l.b16 %v577
  %v633 = vunpack.c.l.b16 %v578
  %v634 = vunpack.c.l.b16 %v579
  %v635 = vunpack.c.l.b16 %v580
  %v636 = vunpack.c.l.b16 %v581
  %v637 = vunpack.c.l.b16 %v582
  %v638 = vunpack.c.l.b16 %v583
  %v639 = vpack.c.b16 %v624, %v623
  %v640 = vpack.c.b16 %v626, %v625
  %v641 = vpack.c.b16 %v628, %v627
  %v642 = vpack.c.b16 %v630, %v629
  %v643 = vpack.c.b16 %v632, %v631
  %v644 = vpack.c.b16 %v634, %v633
  %v645 = vpack.c.b16 %v636, %v635
  %v646 = vpack.c.b16 %v638, %v637
  %655 = vmatprep.subr.bf16.mxu0 0
  %656 = vmatpush1.bf16.msra.mxu0 %v646
  %657 = vmatprep.subr.bf16.mxu0 0
  %658 = vmatpush1.bf16.msra.mxu0 %v645
  %659 = vmatprep.subr.bf16.mxu0 0
  %660 = vmatpush1.bf16.msra.mxu0 %v644
  %661 = vmatprep.subr.bf16.mxu0 0
  %662 = vmatpush1.bf16.msra.mxu0 %v643
  %663 = vmatprep.subr.bf16.mxu0 0
  %664 = vmatpush1.bf16.msra.mxu0 %v642
  %665 = vmatprep.subr.bf16.mxu0 0
  %666 = vmatpush1.bf16.msra.mxu0 %v641
  %667 = vmatprep.subr.bf16.mxu0 0
  %668 = vmatpush1.bf16.msra.mxu0 %v640
  %669 = vmatprep.subr.bf16.mxu0 0
  %670 = vmatpush1.bf16.msra.mxu0 %v639
  %671 = vmatprep.subr.bf16.mxu0 0
  %672 = vmatpush2.bf16.msra.mxu0 0
  %673 = vmatprep.subr.bf16.mxu0 0
  %674 = vmatpush2.bf16.msra.mxu0 0
  %675 = vmatprep.subr.bf16.mxu0 0
  %676 = vmatpush2.bf16.msra.mxu0 0
  %677 = vmatprep.subr.bf16.mxu0 0
  %678 = vmatpush2.bf16.msra.mxu0 0
  %679 = vmatprep.subr.bf16.mxu0 0
  %680 = vmatpush2.bf16.msra.mxu0 0
  %681 = vmatprep.subr.bf16.mxu0 0
  %682 = vmatpush2.bf16.msra.mxu0 0
  %683 = vmatprep.subr.bf16.mxu0 0
  %684 = vmatpush2.bf16.msra.mxu0 0
  %685 = vmatprep.subr.bf16.mxu0 0
  %686 = vmatpush2.bf16.msra.mxu0 0
  %687 = vmatprep.mubr.bf16.mxu0 0
  %688 = vmatmul.mubr.bf16.gmra.mxu0 %v604
  %v689 = vpop.f32.mrf.mxu0
  %v690 = vadd.f32 0.0, %v689
  %v691 = vpop.f32.mrf.mxu0
  %v692 = vpop.f32.mrf.mxu0
  %v693 = vadd.f32 0.0, %v692
  %v694 = vpop.f32.mrf.mxu0
  %695 = vmatprep.mubr.bf16.mxu0 0
  %696 = vmatmul.mubr.bf16.gmra.mxu0 %v603
  %v697 = vpop.f32.mrf.mxu0
  %v698 = vadd.f32 0.0, %v697
  %v699 = vpop.f32.mrf.mxu0
  %v700 = vpop.f32.mrf.mxu0
  %v701 = vpop.f32.mrf.mxu0
  %702 = vdwg.mxu0
  %v703 = vadd.f32 %v563, %v690
  %v704 = vadd.f32 %v564, %v693
  %v705 = vadd.f32 %v565, %v698
  %s706 = scalar_lea.vmem %s1, 320
  %v707 = vld [vmem:[%s706] sm:$0xf]
  %v708 = vld [vmem:[%s706 + $0x4] sm:$0xf]
  %v709 = vld [vmem:[%s706 + $0x8] sm:$0xf]
  %v710 = vld [vmem:[%s706 + $0xc] sm:$0xf]
  %v711 = vld [vmem:[%s706 + $0x10] sm:$0xf]
  %v712 = vld [vmem:[%s706 + $0x14] sm:$0xf]
  %v713 = vld [vmem:[%s706 + $0x18] sm:$0xf]
  %v714 = vld [vmem:[%s706 + $0x1c] sm:$0xf]
  %v715 = vld [vmem:[%s706 + $0x20] sm:$0xf]
  %v716 = vld [vmem:[%s706 + $0x24] sm:$0xf]
  %v717 = vld [vmem:[%s706 + $0x28] sm:$0xf]
  %v718 = vld [vmem:[%s706 + $0x2c] sm:$0xf]
  %v719 = vld [vmem:[%s706 + $0x30] sm:$0xf]
  %v720 = vld [vmem:[%s706 + $0x34] sm:$0xf]
  %v721 = vld [vmem:[%s706 + $0x38] sm:$0xf]
  %v722 = vld [vmem:[%s706 + $0x3c] sm:$0xf]
  %v723 = vpack.c.b16 %v189, %v188
  %v724 = vpack.c.b16 %v585, %v585
  %v743 = vunpack.c.l.b16 %v707
  %v744 = vunpack.c.l.b16 %v708
  %v745 = vunpack.c.l.b16 %v709
  %v746 = vunpack.c.l.b16 %v710
  %v747 = vunpack.c.l.b16 %v711
  %v748 = vunpack.c.l.b16 %v712
  %v749 = vunpack.c.l.b16 %v713
  %v750 = vunpack.c.l.b16 %v714
  %v751 = vunpack.c.l.b16 %v715
  %v752 = vunpack.c.l.b16 %v716
  %v753 = vunpack.c.l.b16 %v717
  %v754 = vunpack.c.l.b16 %v718
  %v755 = vunpack.c.l.b16 %v719
  %v756 = vunpack.c.l.b16 %v720
  %v757 = vunpack.c.l.b16 %v721
  %v758 = vunpack.c.l.b16 %v722
  %v759 = vpack.c.b16 %v744, %v743
  %v760 = vpack.c.b16 %v746, %v745
  %v761 = vpack.c.b16 %v748, %v747
  %v762 = vpack.c.b16 %v750, %v749
  %v763 = vpack.c.b16 %v752, %v751
  %v764 = vpack.c.b16 %v754, %v753
  %v765 = vpack.c.b16 %v756, %v755
  %v766 = vpack.c.b16 %v758, %v757
  %775 = vmatprep.subr.bf16.mxu0 0
  %776 = vmatpush1.bf16.msra.mxu0 %v766
  %777 = vmatprep.subr.bf16.mxu0 0
  %778 = vmatpush1.bf16.msra.mxu0 %v765
  %779 = vmatprep.subr.bf16.mxu0 0
  %780 = vmatpush1.bf16.msra.mxu0 %v764
  %781 = vmatprep.subr.bf16.mxu0 0
  %782 = vmatpush1.bf16.msra.mxu0 %v763
  %783 = vmatprep.subr.bf16.mxu0 0
  %784 = vmatpush1.bf16.msra.mxu0 %v762
  %785 = vmatprep.subr.bf16.mxu0 0
  %786 = vmatpush1.bf16.msra.mxu0 %v761
  %787 = vmatprep.subr.bf16.mxu0 0
  %788 = vmatpush1.bf16.msra.mxu0 %v760
  %789 = vmatprep.subr.bf16.mxu0 0
  %790 = vmatpush1.bf16.msra.mxu0 %v759
  %791 = vmatprep.subr.bf16.mxu0 0
  %792 = vmatpush2.bf16.msra.mxu0 0
  %793 = vmatprep.subr.bf16.mxu0 0
  %794 = vmatpush2.bf16.msra.mxu0 0
  %795 = vmatprep.subr.bf16.mxu0 0
  %796 = vmatpush2.bf16.msra.mxu0 0
  %797 = vmatprep.subr.bf16.mxu0 0
  %798 = vmatpush2.bf16.msra.mxu0 0
  %799 = vmatprep.subr.bf16.mxu0 0
  %800 = vmatpush2.bf16.msra.mxu0 0
  %801 = vmatprep.subr.bf16.mxu0 0
  %802 = vmatpush2.bf16.msra.mxu0 0
  %803 = vmatprep.subr.bf16.mxu0 0
  %804 = vmatpush2.bf16.msra.mxu0 0
  %805 = vmatprep.subr.bf16.mxu0 0
  %806 = vmatpush2.bf16.msra.mxu0 0
  %807 = vmatprep.mubr.bf16.mxu0 0
  %808 = vmatmul.mubr.bf16.gmra.mxu0 %v723
  %v809 = vpop.f32.mrf.mxu0
  %v810 = vadd.f32 0.0, %v809
  %v811 = vpop.f32.mrf.mxu0
  %v812 = vpop.f32.mrf.mxu0
  %v813 = vadd.f32 0.0, %v812
  %v814 = vpop.f32.mrf.mxu0
  %815 = vmatprep.mubr.bf16.mxu0 0
  %816 = vmatmul.mubr.bf16.gmra.mxu0 %v724
  %v817 = vpop.f32.mrf.mxu0
  %v818 = vadd.f32 0.0, %v817
  %v819 = vpop.f32.mrf.mxu0
  %v820 = vpop.f32.mrf.mxu0
  %v821 = vpop.f32.mrf.mxu0
  %822 = vdwg.mxu0
  %v823 = vadd.f32 %v703, %v810
  %v824 = vadd.f32 %v704, %v813
  %v825 = vadd.f32 %v705, %v818
  %v826 = vld [vmem:[%s0 + $0x4] sm:$0xc]
  %v827 = vld [vmem:[%s0 + $0x8] sm:$0xf]
  %v828 = vld [vmem:[%s0 + $0xc] sm:$0xf]
  %v829 = vld [vmem:[%s0 + $0x10] sm:$0x3]
  %s830 = scalar_lea.vmem %s1, 384
  %v831 = vld [vmem:[%s830] sm:$0xf]
  %v832 = vld [vmem:[%s830 + $0x4] sm:$0xf]
  %v833 = vld [vmem:[%s830 + $0x8] sm:$0xf]
  %v834 = vld [vmem:[%s830 + $0xc] sm:$0xf]
  %v835 = vld [vmem:[%s830 + $0x10] sm:$0xf]
  %v836 = vld [vmem:[%s830 + $0x14] sm:$0xf]
  %v837 = vld [vmem:[%s830 + $0x18] sm:$0xf]
  %v838 = vld [vmem:[%s830 + $0x1c] sm:$0xf]
  %v839 = vld [vmem:[%s830 + $0x20] sm:$0xf]
  %v840 = vld [vmem:[%s830 + $0x24] sm:$0xf]
  %v841 = vld [vmem:[%s830 + $0x28] sm:$0xf]
  %v842 = vld [vmem:[%s830 + $0x2c] sm:$0xf]
  %v843 = vld [vmem:[%s830 + $0x30] sm:$0xf]
  %v844 = vld [vmem:[%s830 + $0x34] sm:$0xf]
  %v845 = vld [vmem:[%s830 + $0x38] sm:$0xf]
  %v846 = vld [vmem:[%s830 + $0x3c] sm:$0xf]
  %v851 = vunpack.c.l.b16 %v826
  %v852 = vunpack.c.l.b16 %v827
  %v853 = vunpack.c.l.b16 %v828
  %v854 = vunpack.c.l.b16 %v829
  %v855 = vpack.c.b16 %v852, %v851
  %v856 = vpack.c.b16 %v854, %v853
  %vm857 = vcmask 1045504
  %v858 = vrot.slane %v855, 2
  %v859 = vrot.slane %v856, 2
  %v860 = vsel %vm857, %v858, %v859
  %v879 = vunpack.c.l.b16 %v831
  %v880 = vunpack.c.l.b16 %v832
  %v881 = vunpack.c.l.b16 %v833
  %v882 = vunpack.c.l.b16 %v834
  %v883 = vunpack.c.l.b16 %v835
  %v884 = vunpack.c.l.b16 %v836
  %v885 = vunpack.c.l.b16 %v837
  %v886 = vunpack.c.l.b16 %v838
  %v887 = vunpack.c.l.b16 %v839
  %v888 = vunpack.c.l.b16 %v840
  %v889 = vunpack.c.l.b16 %v841
  %v890 = vunpack.c.l.b16 %v842
  %v891 = vunpack.c.l.b16 %v843
  %v892 = vunpack.c.l.b16 %v844
  %v893 = vunpack.c.l.b16 %v845
  %v894 = vunpack.c.l.b16 %v846
  %v895 = vpack.c.b16 %v880, %v879
  %v896 = vpack.c.b16 %v882, %v881
  %v897 = vpack.c.b16 %v884, %v883
  %v898 = vpack.c.b16 %v886, %v885
  %v899 = vpack.c.b16 %v888, %v887
  %v900 = vpack.c.b16 %v890, %v889
  %v901 = vpack.c.b16 %v892, %v891
  %v902 = vpack.c.b16 %v894, %v893
  %911 = vmatprep.subr.bf16.mxu0 0
  %912 = vmatpush1.bf16.msra.mxu0 %v902
  %913 = vmatprep.subr.bf16.mxu0 0
  %914 = vmatpush1.bf16.msra.mxu0 %v901
  %915 = vmatprep.subr.bf16.mxu0 0
  %916 = vmatpush1.bf16.msra.mxu0 %v900
  %917 = vmatprep.subr.bf16.mxu0 0
  %918 = vmatpush1.bf16.msra.mxu0 %v899
  %919 = vmatprep.subr.bf16.mxu0 0
  %920 = vmatpush1.bf16.msra.mxu0 %v898
  %921 = vmatprep.subr.bf16.mxu0 0
  %922 = vmatpush1.bf16.msra.mxu0 %v897
  %923 = vmatprep.subr.bf16.mxu0 0
  %924 = vmatpush1.bf16.msra.mxu0 %v896
  %925 = vmatprep.subr.bf16.mxu0 0
  %926 = vmatpush1.bf16.msra.mxu0 %v895
  %927 = vmatprep.subr.bf16.mxu0 0
  %928 = vmatpush2.bf16.msra.mxu0 0
  %929 = vmatprep.subr.bf16.mxu0 0
  %930 = vmatpush2.bf16.msra.mxu0 0
  %931 = vmatprep.subr.bf16.mxu0 0
  %932 = vmatpush2.bf16.msra.mxu0 0
  %933 = vmatprep.subr.bf16.mxu0 0
  %934 = vmatpush2.bf16.msra.mxu0 0
  %935 = vmatprep.subr.bf16.mxu0 0
  %936 = vmatpush2.bf16.msra.mxu0 0
  %937 = vmatprep.subr.bf16.mxu0 0
  %938 = vmatpush2.bf16.msra.mxu0 0
  %939 = vmatprep.subr.bf16.mxu0 0
  %940 = vmatpush2.bf16.msra.mxu0 0
  %941 = vmatprep.subr.bf16.mxu0 0
  %942 = vmatpush2.bf16.msra.mxu0 0
  %943 = vmatprep.mubr.bf16.mxu0 0
  %944 = vmatmul.mubr.bf16.gmra.mxu0 %v860
  %v945 = vpop.f32.mrf.mxu0
  %v946 = vadd.f32 0.0, %v945
  %v947 = vpop.f32.mrf.mxu0
  %v948 = vpop.f32.mrf.mxu0
  %v949 = vadd.f32 0.0, %v948
  %v950 = vpop.f32.mrf.mxu0
  %951 = vmatprep.mubr.bf16.mxu0 0
  %952 = vmatmul.mubr.bf16.gmra.mxu0 %v859
  %v953 = vpop.f32.mrf.mxu0
  %v954 = vadd.f32 0.0, %v953
  %v955 = vpop.f32.mrf.mxu0
  %v956 = vpop.f32.mrf.mxu0
  %v957 = vpop.f32.mrf.mxu0
  %958 = vdwg.mxu0
  %v959 = vadd.f32 %v823, %v946
  %v960 = vadd.f32 %v824, %v949
  %v961 = vadd.f32 %v825, %v954
  %v962 = vld [vmem:[%s0 + $0x10] sm:$0x7]
  %s963 = scalar_lea.vmem %s1, 448
  %v964 = vld [vmem:[%s963] sm:$0xf]
  %v965 = vld [vmem:[%s963 + $0x4] sm:$0xf]
  %v966 = vld [vmem:[%s963 + $0x8] sm:$0xf]
  %v967 = vld [vmem:[%s963 + $0xc] sm:$0xf]
  %v968 = vld [vmem:[%s963 + $0x10] sm:$0xf]
  %v969 = vld [vmem:[%s963 + $0x14] sm:$0xf]
  %v970 = vld [vmem:[%s963 + $0x18] sm:$0xf]
  %v971 = vld [vmem:[%s963 + $0x1c] sm:$0xf]
  %v972 = vld [vmem:[%s963 + $0x20] sm:$0xf]
  %v973 = vld [vmem:[%s963 + $0x24] sm:$0xf]
  %v974 = vld [vmem:[%s963 + $0x28] sm:$0xf]
  %v975 = vld [vmem:[%s963 + $0x2c] sm:$0xf]
  %v976 = vld [vmem:[%s963 + $0x30] sm:$0xf]
  %v977 = vld [vmem:[%s963 + $0x34] sm:$0xf]
  %v978 = vld [vmem:[%s963 + $0x38] sm:$0xf]
  %v979 = vld [vmem:[%s963 + $0x3c] sm:$0xf]
  %v981 = vunpack.c.l.b16 %v962
  %v982 = vpack.c.b16 %v981, %v853
  %vm983 = vsmask.f32 5376
  %v985 = vshrl.u32 %v855, 16
  %v987 = vrot.slane %v985, 2
  %v988 = vshll.u32 %v855, 16
  %v990 = vrot.slane %v988, 3
  %v991 = vor.u32 %v987, %v990
  %v993 = vshrl.u32 %v982, 16
  %v995 = vrot.slane %v993, 2
  %v996 = vshll.u32 %v982, 16
  %v998 = vrot.slane %v996, 3
  %v999 = vor.u32 %v995, %v998
  %v1000 = vsel %vm983, %v991, %v999
  %v1019 = vunpack.c.l.b16 %v964
  %v1020 = vunpack.c.l.b16 %v965
  %v1021 = vunpack.c.l.b16 %v966
  %v1022 = vunpack.c.l.b16 %v967
  %v1023 = vunpack.c.l.b16 %v968
  %v1024 = vunpack.c.l.b16 %v969
  %v1025 = vunpack.c.l.b16 %v970
  %v1026 = vunpack.c.l.b16 %v971
  %v1027 = vunpack.c.l.b16 %v972
  %v1028 = vunpack.c.l.b16 %v973
  %v1029 = vunpack.c.l.b16 %v974
  %v1030 = vunpack.c.l.b16 %v975
  %v1031 = vunpack.c.l.b16 %v976
  %v1032 = vunpack.c.l.b16 %v977
  %v1033 = vunpack.c.l.b16 %v978
  %v1034 = vunpack.c.l.b16 %v979
  %v1035 = vpack.c.b16 %v1020, %v1019
  %v1036 = vpack.c.b16 %v1022, %v1021
  %v1037 = vpack.c.b16 %v1024, %v1023
  %v1038 = vpack.c.b16 %v1026, %v1025
  %v1039 = vpack.c.b16 %v1028, %v1027
  %v1040 = vpack.c.b16 %v1030, %v1029
  %v1041 = vpack.c.b16 %v1032, %v1031
  %v1042 = vpack.c.b16 %v1034, %v1033
  %1051 = vmatprep.subr.bf16.mxu0 0
  %1052 = vmatpush1.bf16.msra.mxu0 %v1042
  %1053 = vmatprep.subr.bf16.mxu0 0
  %1054 = vmatpush1.bf16.msra.mxu0 %v1041
  %1055 = vmatprep.subr.bf16.mxu0 0
  %1056 = vmatpush1.bf16.msra.mxu0 %v1040
  %1057 = vmatprep.subr.bf16.mxu0 0
  %1058 = vmatpush1.bf16.msra.mxu0 %v1039
  %1059 = vmatprep.subr.bf16.mxu0 0
  %1060 = vmatpush1.bf16.msra.mxu0 %v1038
  %1061 = vmatprep.subr.bf16.mxu0 0
  %1062 = vmatpush1.bf16.msra.mxu0 %v1037
  %1063 = vmatprep.subr.bf16.mxu0 0
  %1064 = vmatpush1.bf16.msra.mxu0 %v1036
  %1065 = vmatprep.subr.bf16.mxu0 0
  %1066 = vmatpush1.bf16.msra.mxu0 %v1035
  %1067 = vmatprep.subr.bf16.mxu0 0
  %1068 = vmatpush2.bf16.msra.mxu0 0
  %1069 = vmatprep.subr.bf16.mxu0 0
  %1070 = vmatpush2.bf16.msra.mxu0 0
  %1071 = vmatprep.subr.bf16.mxu0 0
  %1072 = vmatpush2.bf16.msra.mxu0 0
  %1073 = vmatprep.subr.bf16.mxu0 0
  %1074 = vmatpush2.bf16.msra.mxu0 0
  %1075 = vmatprep.subr.bf16.mxu0 0
  %1076 = vmatpush2.bf16.msra.mxu0 0
  %1077 = vmatprep.subr.bf16.mxu0 0
  %1078 = vmatpush2.bf16.msra.mxu0 0
  %1079 = vmatprep.subr.bf16.mxu0 0
  %1080 = vmatpush2.bf16.msra.mxu0 0
  %1081 = vmatprep.subr.bf16.mxu0 0
  %1082 = vmatpush2.bf16.msra.mxu0 0
  %1083 = vmatprep.mubr.bf16.mxu0 0
  %1084 = vmatmul.mubr.bf16.gmra.mxu0 %v1000
  %v1085 = vpop.f32.mrf.mxu0
  %v1086 = vadd.f32 0.0, %v1085
  %v1087 = vpop.f32.mrf.mxu0
  %v1088 = vpop.f32.mrf.mxu0
  %v1089 = vadd.f32 0.0, %v1088
  %v1090 = vpop.f32.mrf.mxu0
  %1091 = vmatprep.mubr.bf16.mxu0 0
  %1092 = vmatmul.mubr.bf16.gmra.mxu0 %v999
  %v1093 = vpop.f32.mrf.mxu0
  %v1094 = vadd.f32 0.0, %v1093
  %v1095 = vpop.f32.mrf.mxu0
  %v1096 = vpop.f32.mrf.mxu0
  %v1097 = vpop.f32.mrf.mxu0
  %1098 = vdwg.mxu0
  %v1099 = vadd.f32 %v959, %v1086
  %v1100 = vadd.f32 %v960, %v1089
  %v1101 = vadd.f32 %v961, %v1094
  %v1102 = vld [vmem:[%s0 + $0x4] sm:$0x8]
  %s1103 = scalar_lea.vmem %s1, 512
  %v1104 = vld [vmem:[%s1103] sm:$0xf]
  %v1105 = vld [vmem:[%s1103 + $0x4] sm:$0xf]
  %v1106 = vld [vmem:[%s1103 + $0x8] sm:$0xf]
  %v1107 = vld [vmem:[%s1103 + $0xc] sm:$0xf]
  %v1108 = vld [vmem:[%s1103 + $0x10] sm:$0xf]
  %v1109 = vld [vmem:[%s1103 + $0x14] sm:$0xf]
  %v1110 = vld [vmem:[%s1103 + $0x18] sm:$0xf]
  %v1111 = vld [vmem:[%s1103 + $0x1c] sm:$0xf]
  %v1112 = vld [vmem:[%s1103 + $0x20] sm:$0xf]
  %v1113 = vld [vmem:[%s1103 + $0x24] sm:$0xf]
  %v1114 = vld [vmem:[%s1103 + $0x28] sm:$0xf]
  %v1115 = vld [vmem:[%s1103 + $0x2c] sm:$0xf]
  %v1116 = vld [vmem:[%s1103 + $0x30] sm:$0xf]
  %v1117 = vld [vmem:[%s1103 + $0x34] sm:$0xf]
  %v1118 = vld [vmem:[%s1103 + $0x38] sm:$0xf]
  %v1119 = vld [vmem:[%s1103 + $0x3c] sm:$0xf]
  %v1121 = vunpack.c.l.b16 %v1102
  %v1122 = vpack.c.b16 %v852, %v1121
  %v1123 = vrot.slane %v1122, 3
  %v1124 = vrot.slane %v982, 3
  %v1125 = vsel %vm461, %v1123, %v1124
  %v1144 = vunpack.c.l.b16 %v1104
  %v1145 = vunpack.c.l.b16 %v1105
  %v1146 = vunpack.c.l.b16 %v1106
  %v1147 = vunpack.c.l.b16 %v1107
  %v1148 = vunpack.c.l.b16 %v1108
  %v1149 = vunpack.c.l.b16 %v1109
  %v1150 = vunpack.c.l.b16 %v1110
  %v1151 = vunpack.c.l.b16 %v1111
  %v1152 = vunpack.c.l.b16 %v1112
  %v1153 = vunpack.c.l.b16 %v1113
  %v1154 = vunpack.c.l.b16 %v1114
  %v1155 = vunpack.c.l.b16 %v1115
  %v1156 = vunpack.c.l.b16 %v1116
  %v1157 = vunpack.c.l.b16 %v1117
  %v1158 = vunpack.c.l.b16 %v1118
  %v1159 = vunpack.c.l.b16 %v1119
  %v1160 = vpack.c.b16 %v1145, %v1144
  %v1161 = vpack.c.b16 %v1147, %v1146
  %v1162 = vpack.c.b16 %v1149, %v1148
  %v1163 = vpack.c.b16 %v1151, %v1150
  %v1164 = vpack.c.b16 %v1153, %v1152
  %v1165 = vpack.c.b16 %v1155, %v1154
  %v1166 = vpack.c.b16 %v1157, %v1156
  %v1167 = vpack.c.b16 %v1159, %v1158
  %1176 = vmatprep.subr.bf16.mxu0 0
  %1177 = vmatpush1.bf16.msra.mxu0 %v1167
  %1178 = vmatprep.subr.bf16.mxu0 0
  %1179 = vmatpush1.bf16.msra.mxu0 %v1166
  %1180 = vmatprep.subr.bf16.mxu0 0
  %1181 = vmatpush1.bf16.msra.mxu0 %v1165
  %1182 = vmatprep.subr.bf16.mxu0 0
  %1183 = vmatpush1.bf16.msra.mxu0 %v1164
  %1184 = vmatprep.subr.bf16.mxu0 0
  %1185 = vmatpush1.bf16.msra.mxu0 %v1163
  %1186 = vmatprep.subr.bf16.mxu0 0
  %1187 = vmatpush1.bf16.msra.mxu0 %v1162
  %1188 = vmatprep.subr.bf16.mxu0 0
  %1189 = vmatpush1.bf16.msra.mxu0 %v1161
  %1190 = vmatprep.subr.bf16.mxu0 0
  %1191 = vmatpush1.bf16.msra.mxu0 %v1160
  %1192 = vmatprep.subr.bf16.mxu0 0
  %1193 = vmatpush2.bf16.msra.mxu0 0
  %1194 = vmatprep.subr.bf16.mxu0 0
  %1195 = vmatpush2.bf16.msra.mxu0 0
  %1196 = vmatprep.subr.bf16.mxu0 0
  %1197 = vmatpush2.bf16.msra.mxu0 0
  %1198 = vmatprep.subr.bf16.mxu0 0
  %1199 = vmatpush2.bf16.msra.mxu0 0
  %1200 = vmatprep.subr.bf16.mxu0 0
  %1201 = vmatpush2.bf16.msra.mxu0 0
  %1202 = vmatprep.subr.bf16.mxu0 0
  %1203 = vmatpush2.bf16.msra.mxu0 0
  %1204 = vmatprep.subr.bf16.mxu0 0
  %1205 = vmatpush2.bf16.msra.mxu0 0
  %1206 = vmatprep.subr.bf16.mxu0 0
  %1207 = vmatpush2.bf16.msra.mxu0 0
  %1208 = vmatprep.mubr.bf16.mxu0 0
  %1209 = vmatmul.mubr.bf16.gmra.mxu0 %v1125
  %v1210 = vpop.f32.mrf.mxu0
  %v1211 = vadd.f32 0.0, %v1210
  %v1212 = vpop.f32.mrf.mxu0
  %v1213 = vpop.f32.mrf.mxu0
  %v1214 = vadd.f32 0.0, %v1213
  %v1215 = vpop.f32.mrf.mxu0
  %1216 = vmatprep.mubr.bf16.mxu0 0
  %1217 = vmatmul.mubr.bf16.gmra.mxu0 %v1124
  %v1218 = vpop.f32.mrf.mxu0
  %v1219 = vadd.f32 0.0, %v1218
  %v1220 = vpop.f32.mrf.mxu0
  %v1221 = vpop.f32.mrf.mxu0
  %v1222 = vpop.f32.mrf.mxu0
  %1223 = vdwg.mxu0
  %v1224 = vadd.f32 %v1099, %v1211
  %v1225 = vadd.f32 %v1100, %v1214
  %v1226 = vadd.f32 %v1101, %v1219
  %1227 = vst [vmem:[#allocation2] sm:$0xff] %v1224
  %1228 = vst [vmem:[#allocation2 + $0x8] sm:$0xff] %v1225
  %1229 = vst [vmem:[#allocation2 + $0x10] sm:$0xff] %v1226
  %s1230 = scalar_lea.vmem [#allocation2], 24
  %v1231 = vld [vmem:[%s1230] sm:$0xff]
  %v1232 = vld [vmem:[%s1230 + $0x8] sm:$0xff]
  %v1233 = vld [vmem:[%s1230 + $0x10] sm:$0xff]
  %s1234 = scalar_lea.vmem %s0, 24
  %v1235 = vld [vmem:[%s1234] sm:$0xf]
  %v1236 = vld [vmem:[%s1234 + $0x4] sm:$0xf]
  %v1237 = vld [vmem:[%s1234 + $0x8] sm:$0xf]
  %v1238 = vld [vmem:[%s1] sm:$0xf]
  %v1239 = vld [vmem:[%s1 + $0x4] sm:$0xf]
  %v1240 = vld [vmem:[%s1 + $0x8] sm:$0xf]
  %v1241 = vld [vmem:[%s1 + $0xc] sm:$0xf]
  %v1242 = vld [vmem:[%s1 + $0x10] sm:$0xf]
  %v1243 = vld [vmem:[%s1 + $0x14] sm:$0xf]
  %v1244 = vld [vmem:[%s1 + $0x18] sm:$0xf]
  %v1245 = vld [vmem:[%s1 + $0x1c] sm:$0xf]
  %v1246 = vld [vmem:[%s1 + $0x20] sm:$0xf]
  %v1247 = vld [vmem:[%s1 + $0x24] sm:$0xf]
  %v1248 = vld [vmem:[%s1 + $0x28] sm:$0xf]
  %v1249 = vld [vmem:[%s1 + $0x2c] sm:$0xf]
  %v1250 = vld [vmem:[%s1 + $0x30] sm:$0xf]
  %v1251 = vld [vmem:[%s1 + $0x34] sm:$0xf]
  %v1252 = vld [vmem:[%s1 + $0x38] sm:$0xf]
  %v1253 = vld [vmem:[%s1 + $0x3c] sm:$0xf]
  %v1257 = vunpack.c.l.b16 %v1235
  %v1258 = vunpack.c.l.b16 %v1236
  %v1259 = vunpack.c.l.b16 %v1237
  %v1260 = vpack.c.b16 %v1258, %v1257
  %v1261 = vpack.c.b16 %v1259, %v1259
  %v1280 = vunpack.c.l.b16 %v1238
  %v1281 = vunpack.c.l.b16 %v1239
  %v1282 = vunpack.c.l.b16 %v1240
  %v1283 = vunpack.c.l.b16 %v1241
  %v1284 = vunpack.c.l.b16 %v1242
  %v1285 = vunpack.c.l.b16 %v1243
  %v1286 = vunpack.c.l.b16 %v1244
  %v1287 = vunpack.c.l.b16 %v1245
  %v1288 = vunpack.c.l.b16 %v1246
  %v1289 = vunpack.c.l.b16 %v1247
  %v1290 = vunpack.c.l.b16 %v1248
  %v1291 = vunpack.c.l.b16 %v1249
  %v1292 = vunpack.c.l.b16 %v1250
  %v1293 = vunpack.c.l.b16 %v1251
  %v1294 = vunpack.c.l.b16 %v1252
  %v1295 = vunpack.c.l.b16 %v1253
  %v1296 = vpack.c.b16 %v1281, %v1280
  %v1297 = vpack.c.b16 %v1283, %v1282
  %v1298 = vpack.c.b16 %v1285, %v1284
  %v1299 = vpack.c.b16 %v1287, %v1286
  %v1300 = vpack.c.b16 %v1289, %v1288
  %v1301 = vpack.c.b16 %v1291, %v1290
  %v1302 = vpack.c.b16 %v1293, %v1292
  %v1303 = vpack.c.b16 %v1295, %v1294
  %1312 = vmatprep.subr.bf16.mxu0 0
  %1313 = vmatpush1.bf16.msra.mxu0 %v1303
  %1314 = vmatprep.subr.bf16.mxu0 0
  %1315 = vmatpush1.bf16.msra.mxu0 %v1302
  %1316 = vmatprep.subr.bf16.mxu0 0
  %1317 = vmatpush1.bf16.msra.mxu0 %v1301
  %1318 = vmatprep.subr.bf16.mxu0 0
  %1319 = vmatpush1.bf16.msra.mxu0 %v1300
  %1320 = vmatprep.subr.bf16.mxu0 0
  %1321 = vmatpush1.bf16.msra.mxu0 %v1299
  %1322 = vmatprep.subr.bf16.mxu0 0
  %1323 = vmatpush1.bf16.msra.mxu0 %v1298
  %1324 = vmatprep.subr.bf16.mxu0 0
  %1325 = vmatpush1.bf16.msra.mxu0 %v1297
  %1326 = vmatprep.subr.bf16.mxu0 0
  %1327 = vmatpush1.bf16.msra.mxu0 %v1296
  %1328 = vmatprep.subr.bf16.mxu0 0
  %1329 = vmatpush2.bf16.msra.mxu0 0
  %1330 = vmatprep.subr.bf16.mxu0 0
  %1331 = vmatpush2.bf16.msra.mxu0 0
  %1332 = vmatprep.subr.bf16.mxu0 0
  %1333 = vmatpush2.bf16.msra.mxu0 0
  %1334 = vmatprep.subr.bf16.mxu0 0
  %1335 = vmatpush2.bf16.msra.mxu0 0
  %1336 = vmatprep.subr.bf16.mxu0 0
  %1337 = vmatpush2.bf16.msra.mxu0 0
  %1338 = vmatprep.subr.bf16.mxu0 0
  %1339 = vmatpush2.bf16.msra.mxu0 0
  %1340 = vmatprep.subr.bf16.mxu0 0
  %1341 = vmatpush2.bf16.msra.mxu0 0
  %1342 = vmatprep.subr.bf16.mxu0 0
  %1343 = vmatpush2.bf16.msra.mxu0 0
  %1344 = vmatprep.mubr.bf16.mxu0 0
  %1345 = vmatmul.mubr.bf16.gmra.mxu0 %v1260
  %v1346 = vpop.f32.mrf.mxu0
  %v1347 = vadd.f32 0.0, %v1346
  %v1348 = vpop.f32.mrf.mxu0
  %v1349 = vpop.f32.mrf.mxu0
  %v1350 = vadd.f32 0.0, %v1349
  %v1351 = vpop.f32.mrf.mxu0
  %1352 = vmatprep.mubr.bf16.mxu0 0
  %1353 = vmatmul.mubr.bf16.gmra.mxu0 %v1261
  %v1354 = vpop.f32.mrf.mxu0
  %v1355 = vadd.f32 0.0, %v1354
  %v1356 = vpop.f32.mrf.mxu0
  %v1357 = vpop.f32.mrf.mxu0
  %v1358 = vpop.f32.mrf.mxu0
  %1359 = vdwg.mxu0
  %v1360 = vadd.f32 %v1231, %v1347
  %v1361 = vadd.f32 %v1232, %v1350
  %v1362 = vadd.f32 %v1233, %v1355
  %v1363 = vld [vmem:[%s1234] sm:$0xf]
  %v1364 = vld [vmem:[%s1234 + $0x4] sm:$0xf]
  %v1365 = vld [vmem:[%s1234 + $0x8] sm:$0xf]
  %v1366 = vld [vmem:[%s1234 + $0xc] sm:$0x1]
  %v1367 = vld [vmem:[%s166] sm:$0xf]
  %v1368 = vld [vmem:[%s166 + $0x4] sm:$0xf]
  %v1369 = vld [vmem:[%s166 + $0x8] sm:$0xf]
  %v1370 = vld [vmem:[%s166 + $0xc] sm:$0xf]
  %v1371 = vld [vmem:[%s166 + $0x10] sm:$0xf]
  %v1372 = vld [vmem:[%s166 + $0x14] sm:$0xf]
  %v1373 = vld [vmem:[%s166 + $0x18] sm:$0xf]
  %v1374 = vld [vmem:[%s166 + $0x1c] sm:$0xf]
  %v1375 = vld [vmem:[%s166 + $0x20] sm:$0xf]
  %v1376 = vld [vmem:[%s166 + $0x24] sm:$0xf]
  %v1377 = vld [vmem:[%s166 + $0x28] sm:$0xf]
  %v1378 = vld [vmem:[%s166 + $0x2c] sm:$0xf]
  %v1379 = vld [vmem:[%s166 + $0x30] sm:$0xf]
  %v1380 = vld [vmem:[%s166 + $0x34] sm:$0xf]
  %v1381 = vld [vmem:[%s166 + $0x38] sm:$0xf]
  %v1382 = vld [vmem:[%s166 + $0x3c] sm:$0xf]
  %v1387 = vunpack.c.l.b16 %v1363
  %v1388 = vunpack.c.l.b16 %v1364
  %v1389 = vunpack.c.l.b16 %v1365
  %v1390 = vunpack.c.l.b16 %v1366
  %v1391 = vpack.c.b16 %v1388, %v1387
  %v1392 = vpack.c.b16 %v1390, %v1389
  %v1394 = vshrl.u32 %v1391, 16
  %v1396 = vshll.u32 %v1391, 16
  %v1398 = vrot.slane %v1396, 1
  %v1399 = vor.u32 %v1394, %v1398
  %v1401 = vshll.u32 %v1392, 16
  %v1403 = vrot.slane %v1401, 1
  %v1404 = vsel %vm193, %v1399, %v1403
  %v1405 = vshrl.u32 %v1392, 16
  %v1407 = vor.u32 %v1405, %v1403
  %v1426 = vunpack.c.l.b16 %v1367
  %v1427 = vunpack.c.l.b16 %v1368
  %v1428 = vunpack.c.l.b16 %v1369
  %v1429 = vunpack.c.l.b16 %v1370
  %v1430 = vunpack.c.l.b16 %v1371
  %v1431 = vunpack.c.l.b16 %v1372
  %v1432 = vunpack.c.l.b16 %v1373
  %v1433 = vunpack.c.l.b16 %v1374
  %v1434 = vunpack.c.l.b16 %v1375
  %v1435 = vunpack.c.l.b16 %v1376
  %v1436 = vunpack.c.l.b16 %v1377
  %v1437 = vunpack.c.l.b16 %v1378
  %v1438 = vunpack.c.l.b16 %v1379
  %v1439 = vunpack.c.l.b16 %v1380
  %v1440 = vunpack.c.l.b16 %v1381
  %v1441 = vunpack.c.l.b16 %v1382
  %v1442 = vpack.c.b16 %v1427, %v1426
  %v1443 = vpack.c.b16 %v1429, %v1428
  %v1444 = vpack.c.b16 %v1431, %v1430
  %v1445 = vpack.c.b16 %v1433, %v1432
  %v1446 = vpack.c.b16 %v1435, %v1434
  %v1447 = vpack.c.b16 %v1437, %v1436
  %v1448 = vpack.c.b16 %v1439, %v1438
  %v1449 = vpack.c.b16 %v1441, %v1440
  %1458 = vmatprep.subr.bf16.mxu0 0
  %1459 = vmatpush1.bf16.msra.mxu0 %v1449
  %1460 = vmatprep.subr.bf16.mxu0 0
  %1461 = vmatpush1.bf16.msra.mxu0 %v1448
  %1462 = vmatprep.subr.bf16.mxu0 0
  %1463 = vmatpush1.bf16.msra.mxu0 %v1447
  %1464 = vmatprep.subr.bf16.mxu0 0
  %1465 = vmatpush1.bf16.msra.mxu0 %v1446
  %1466 = vmatprep.subr.bf16.mxu0 0
  %1467 = vmatpush1.bf16.msra.mxu0 %v1445
  %1468 = vmatprep.subr.bf16.mxu0 0
  %1469 = vmatpush1.bf16.msra.mxu0 %v1444
  %1470 = vmatprep.subr.bf16.mxu0 0
  %1471 = vmatpush1.bf16.msra.mxu0 %v1443
  %1472 = vmatprep.subr.bf16.mxu0 0
  %1473 = vmatpush1.bf16.msra.mxu0 %v1442
  %1474 = vmatprep.subr.bf16.mxu0 0
  %1475 = vmatpush2.bf16.msra.mxu0 0
  %1476 = vmatprep.subr.bf16.mxu0 0
  %1477 = vmatpush2.bf16.msra.mxu0 0
  %1478 = vmatprep.subr.bf16.mxu0 0
  %1479 = vmatpush2.bf16.msra.mxu0 0
  %1480 = vmatprep.subr.bf16.mxu0 0
  %1481 = vmatpush2.bf16.msra.mxu0 0
  %1482 = vmatprep.subr.bf16.mxu0 0
  %1483 = vmatpush2.bf16.msra.mxu0 0
  %1484 = vmatprep.subr.bf16.mxu0 0
  %1485 = vmatpush2.bf16.msra.mxu0 0
  %1486 = vmatprep.subr.bf16.mxu0 0
  %1487 = vmatpush2.bf16.msra.mxu0 0
  %1488 = vmatprep.subr.bf16.mxu0 0
  %1489 = vmatpush2.bf16.msra.mxu0 0
  %1490 = vmatprep.mubr.bf16.mxu0 0
  %1491 = vmatmul.mubr.bf16.gmra.mxu0 %v1404
  %v1492 = vpop.f32.mrf.mxu0
  %v1493 = vadd.f32 0.0, %v1492
  %v1494 = vpop.f32.mrf.mxu0
  %v1495 = vpop.f32.mrf.mxu0
  %v1496 = vadd.f32 0.0, %v1495
  %v1497 = vpop.f32.mrf.mxu0
  %1498 = vmatprep.mubr.bf16.mxu0 0
  %1499 = vmatmul.mubr.bf16.gmra.mxu0 %v1407
  %v1500 = vpop.f32.mrf.mxu0
  %v1501 = vadd.f32 0.0, %v1500
  %v1502 = vpop.f32.mrf.mxu0
  %v1503 = vpop.f32.mrf.mxu0
  %v1504 = vpop.f32.mrf.mxu0
  %1505 = vdwg.mxu0
  %v1506 = vadd.f32 %v1360, %v1493
  %v1507 = vadd.f32 %v1361, %v1496
  %v1508 = vadd.f32 %v1362, %v1501
  %v1509 = vld [vmem:[%s1234] sm:$0xe]
  %v1510 = vld [vmem:[%s311] sm:$0xf]
  %v1511 = vld [vmem:[%s311 + $0x4] sm:$0xf]
  %v1512 = vld [vmem:[%s311 + $0x8] sm:$0xf]
  %v1513 = vld [vmem:[%s311 + $0xc] sm:$0xf]
  %v1514 = vld [vmem:[%s311 + $0x10] sm:$0xf]
  %v1515 = vld [vmem:[%s311 + $0x14] sm:$0xf]
  %v1516 = vld [vmem:[%s311 + $0x18] sm:$0xf]
  %v1517 = vld [vmem:[%s311 + $0x1c] sm:$0xf]
  %v1518 = vld [vmem:[%s311 + $0x20] sm:$0xf]
  %v1519 = vld [vmem:[%s311 + $0x24] sm:$0xf]
  %v1520 = vld [vmem:[%s311 + $0x28] sm:$0xf]
  %v1521 = vld [vmem:[%s311 + $0x2c] sm:$0xf]
  %v1522 = vld [vmem:[%s311 + $0x30] sm:$0xf]
  %v1523 = vld [vmem:[%s311 + $0x34] sm:$0xf]
  %v1524 = vld [vmem:[%s311 + $0x38] sm:$0xf]
  %v1525 = vld [vmem:[%s311 + $0x3c] sm:$0xf]
  %v1527 = vunpack.c.l.b16 %v1509
  %v1528 = vpack.c.b16 %v1388, %v1527
  %v1529 = vrot.slane %v1528, 1
  %v1530 = vrot.slane %v1392, 1
  %v1531 = vsel %vm331, %v1529, %v1530
  %v1550 = vunpack.c.l.b16 %v1510
  %v1551 = vunpack.c.l.b16 %v1511
  %v1552 = vunpack.c.l.b16 %v1512
  %v1553 = vunpack.c.l.b16 %v1513
  %v1554 = vunpack.c.l.b16 %v1514
  %v1555 = vunpack.c.l.b16 %v1515
  %v1556 = vunpack.c.l.b16 %v1516
  %v1557 = vunpack.c.l.b16 %v1517
  %v1558 = vunpack.c.l.b16 %v1518
  %v1559 = vunpack.c.l.b16 %v1519
  %v1560 = vunpack.c.l.b16 %v1520
  %v1561 = vunpack.c.l.b16 %v1521
  %v1562 = vunpack.c.l.b16 %v1522
  %v1563 = vunpack.c.l.b16 %v1523
  %v1564 = vunpack.c.l.b16 %v1524
  %v1565 = vunpack.c.l.b16 %v1525
  %v1566 = vpack.c.b16 %v1551, %v1550
  %v1567 = vpack.c.b16 %v1553, %v1552
  %v1568 = vpack.c.b16 %v1555, %v1554
  %v1569 = vpack.c.b16 %v1557, %v1556
  %v1570 = vpack.c.b16 %v1559, %v1558
  %v1571 = vpack.c.b16 %v1561, %v1560
  %v1572 = vpack.c.b16 %v1563, %v1562
  %v1573 = vpack.c.b16 %v1565, %v1564
  %1582 = vmatprep.subr.bf16.mxu0 0
  %1583 = vmatpush1.bf16.msra.mxu0 %v1573
  %1584 = vmatprep.subr.bf16.mxu0 0
  %1585 = vmatpush1.bf16.msra.mxu0 %v1572
  %1586 = vmatprep.subr.bf16.mxu0 0
  %1587 = vmatpush1.bf16.msra.mxu0 %v1571
  %1588 = vmatprep.subr.bf16.mxu0 0
  %1589 = vmatpush1.bf16.msra.mxu0 %v1570
  %1590 = vmatprep.subr.bf16.mxu0 0
  %1591 = vmatpush1.bf16.msra.mxu0 %v1569
  %1592 = vmatprep.subr.bf16.mxu0 0
  %1593 = vmatpush1.bf16.msra.mxu0 %v1568
  %1594 = vmatprep.subr.bf16.mxu0 0
  %1595 = vmatpush1.bf16.msra.mxu0 %v1567
  %1596 = vmatprep.subr.bf16.mxu0 0
  %1597 = vmatpush1.bf16.msra.mxu0 %v1566
  %1598 = vmatprep.subr.bf16.mxu0 0
  %1599 = vmatpush2.bf16.msra.mxu0 0
  %1600 = vmatprep.subr.bf16.mxu0 0
  %1601 = vmatpush2.bf16.msra.mxu0 0
  %1602 = vmatprep.subr.bf16.mxu0 0
  %1603 = vmatpush2.bf16.msra.mxu0 0
  %1604 = vmatprep.subr.bf16.mxu0 0
  %1605 = vmatpush2.bf16.msra.mxu0 0
  %1606 = vmatprep.subr.bf16.mxu0 0
  %1607 = vmatpush2.bf16.msra.mxu0 0
  %1608 = vmatprep.subr.bf16.mxu0 0
  %1609 = vmatpush2.bf16.msra.mxu0 0
  %1610 = vmatprep.subr.bf16.mxu0 0
  %1611 = vmatpush2.bf16.msra.mxu0 0
  %1612 = vmatprep.subr.bf16.mxu0 0
  %1613 = vmatpush2.bf16.msra.mxu0 0
  %1614 = vmatprep.mubr.bf16.mxu0 0
  %1615 = vmatmul.mubr.bf16.gmra.mxu0 %v1531
  %v1616 = vpop.f32.mrf.mxu0
  %v1617 = vadd.f32 0.0, %v1616
  %v1618 = vpop.f32.mrf.mxu0
  %v1619 = vpop.f32.mrf.mxu0
  %v1620 = vadd.f32 0.0, %v1619
  %v1621 = vpop.f32.mrf.mxu0
  %1622 = vmatprep.mubr.bf16.mxu0 0
  %1623 = vmatmul.mubr.bf16.gmra.mxu0 %v1530
  %v1624 = vpop.f32.mrf.mxu0
  %v1625 = vadd.f32 0.0, %v1624
  %v1626 = vpop.f32.mrf.mxu0
  %v1627 = vpop.f32.mrf.mxu0
  %v1628 = vpop.f32.mrf.mxu0
  %1629 = vdwg.mxu0
  %v1630 = vadd.f32 %v1506, %v1617
  %v1631 = vadd.f32 %v1507, %v1620
  %v1632 = vadd.f32 %v1508, %v1625
  %v1633 = vld [vmem:[%s1234] sm:$0x8]
  %v1634 = vld [vmem:[%s1234 + $0xc] sm:$0x7]
  %v1635 = vld [vmem:[%s438] sm:$0xf]
  %v1636 = vld [vmem:[%s438 + $0x4] sm:$0xf]
  %v1637 = vld [vmem:[%s438 + $0x8] sm:$0xf]
  %v1638 = vld [vmem:[%s438 + $0xc] sm:$0xf]
  %v1639 = vld [vmem:[%s438 + $0x10] sm:$0xf]
  %v1640 = vld [vmem:[%s438 + $0x14] sm:$0xf]
  %v1641 = vld [vmem:[%s438 + $0x18] sm:$0xf]
  %v1642 = vld [vmem:[%s438 + $0x1c] sm:$0xf]
  %v1643 = vld [vmem:[%s438 + $0x20] sm:$0xf]
  %v1644 = vld [vmem:[%s438 + $0x24] sm:$0xf]
  %v1645 = vld [vmem:[%s438 + $0x28] sm:$0xf]
  %v1646 = vld [vmem:[%s438 + $0x2c] sm:$0xf]
  %v1647 = vld [vmem:[%s438 + $0x30] sm:$0xf]
  %v1648 = vld [vmem:[%s438 + $0x34] sm:$0xf]
  %v1649 = vld [vmem:[%s438 + $0x38] sm:$0xf]
  %v1650 = vld [vmem:[%s438 + $0x3c] sm:$0xf]
  %v1653 = vunpack.c.l.b16 %v1633
  %v1654 = vunpack.c.l.b16 %v1634
  %v1655 = vpack.c.b16 %v1388, %v1653
  %v1656 = vpack.c.b16 %v1654, %v1389
  %v1657 = vrot.slane %v1655, 3
  %v1658 = vrot.slane %v1656, 3
  %v1659 = vsel %vm461, %v1657, %v1658
  %v1678 = vunpack.c.l.b16 %v1635
  %v1679 = vunpack.c.l.b16 %v1636
  %v1680 = vunpack.c.l.b16 %v1637
  %v1681 = vunpack.c.l.b16 %v1638
  %v1682 = vunpack.c.l.b16 %v1639
  %v1683 = vunpack.c.l.b16 %v1640
  %v1684 = vunpack.c.l.b16 %v1641
  %v1685 = vunpack.c.l.b16 %v1642
  %v1686 = vunpack.c.l.b16 %v1643
  %v1687 = vunpack.c.l.b16 %v1644
  %v1688 = vunpack.c.l.b16 %v1645
  %v1689 = vunpack.c.l.b16 %v1646
  %v1690 = vunpack.c.l.b16 %v1647
  %v1691 = vunpack.c.l.b16 %v1648
  %v1692 = vunpack.c.l.b16 %v1649
  %v1693 = vunpack.c.l.b16 %v1650
  %v1694 = vpack.c.b16 %v1679, %v1678
  %v1695 = vpack.c.b16 %v1681, %v1680
  %v1696 = vpack.c.b16 %v1683, %v1682
  %v1697 = vpack.c.b16 %v1685, %v1684
  %v1698 = vpack.c.b16 %v1687, %v1686
  %v1699 = vpack.c.b16 %v1689, %v1688
  %v1700 = vpack.c.b16 %v1691, %v1690
  %v1701 = vpack.c.b16 %v1693, %v1692
  %1710 = vmatprep.subr.bf16.mxu0 0
  %1711 = vmatpush1.bf16.msra.mxu0 %v1701
  %1712 = vmatprep.subr.bf16.mxu0 0
  %1713 = vmatpush1.bf16.msra.mxu0 %v1700
  %1714 = vmatprep.subr.bf16.mxu0 0
  %1715 = vmatpush1.bf16.msra.mxu0 %v1699
  %1716 = vmatprep.subr.bf16.mxu0 0
  %1717 = vmatpush1.bf16.msra.mxu0 %v1698
  %1718 = vmatprep.subr.bf16.mxu0 0
  %1719 = vmatpush1.bf16.msra.mxu0 %v1697
  %1720 = vmatprep.subr.bf16.mxu0 0
  %1721 = vmatpush1.bf16.msra.mxu0 %v1696
  %1722 = vmatprep.subr.bf16.mxu0 0
  %1723 = vmatpush1.bf16.msra.mxu0 %v1695
  %1724 = vmatprep.subr.bf16.mxu0 0
  %1725 = vmatpush1.bf16.msra.mxu0 %v1694
  %1726 = vmatprep.subr.bf16.mxu0 0
  %1727 = vmatpush2.bf16.msra.mxu0 0
  %1728 = vmatprep.subr.bf16.mxu0 0
  %1729 = vmatpush2.bf16.msra.mxu0 0
  %1730 = vmatprep.subr.bf16.mxu0 0
  %1731 = vmatpush2.bf16.msra.mxu0 0
  %1732 = vmatprep.subr.bf16.mxu0 0
  %1733 = vmatpush2.bf16.msra.mxu0 0
  %1734 = vmatprep.subr.bf16.mxu0 0
  %1735 = vmatpush2.bf16.msra.mxu0 0
  %1736 = vmatprep.subr.bf16.mxu0 0
  %1737 = vmatpush2.bf16.msra.mxu0 0
  %1738 = vmatprep.subr.bf16.mxu0 0
  %1739 = vmatpush2.bf16.msra.mxu0 0
  %1740 = vmatprep.subr.bf16.mxu0 0
  %1741 = vmatpush2.bf16.msra.mxu0 0
  %1742 = vmatprep.mubr.bf16.mxu0 0
  %1743 = vmatmul.mubr.bf16.gmra.mxu0 %v1659
  %v1744 = vpop.f32.mrf.mxu0
  %v1745 = vadd.f32 0.0, %v1744
  %v1746 = vpop.f32.mrf.mxu0
  %v1747 = vpop.f32.mrf.mxu0
  %v1748 = vadd.f32 0.0, %v1747
  %v1749 = vpop.f32.mrf.mxu0
  %1750 = vmatprep.mubr.bf16.mxu0 0
  %1751 = vmatmul.mubr.bf16.gmra.mxu0 %v1658
  %v1752 = vpop.f32.mrf.mxu0
  %v1753 = vadd.f32 0.0, %v1752
  %v1754 = vpop.f32.mrf.mxu0
  %v1755 = vpop.f32.mrf.mxu0
  %v1756 = vpop.f32.mrf.mxu0
  %1757 = vdwg.mxu0
  %v1758 = vadd.f32 %v1630, %v1745
  %v1759 = vadd.f32 %v1631, %v1748
  %v1760 = vadd.f32 %v1632, %v1753
  %v1761 = vld [vmem:[%s1234 + $0xc] sm:$0xf]
  %v1762 = vld [vmem:[%s567] sm:$0xf]
  %v1763 = vld [vmem:[%s567 + $0x4] sm:$0xf]
  %v1764 = vld [vmem:[%s567 + $0x8] sm:$0xf]
  %v1765 = vld [vmem:[%s567 + $0xc] sm:$0xf]
  %v1766 = vld [vmem:[%s567 + $0x10] sm:$0xf]
  %v1767 = vld [vmem:[%s567 + $0x14] sm:$0xf]
  %v1768 = vld [vmem:[%s567 + $0x18] sm:$0xf]
  %v1769 = vld [vmem:[%s567 + $0x1c] sm:$0xf]
  %v1770 = vld [vmem:[%s567 + $0x20] sm:$0xf]
  %v1771 = vld [vmem:[%s567 + $0x24] sm:$0xf]
  %v1772 = vld [vmem:[%s567 + $0x28] sm:$0xf]
  %v1773 = vld [vmem:[%s567 + $0x2c] sm:$0xf]
  %v1774 = vld [vmem:[%s567 + $0x30] sm:$0xf]
  %v1775 = vld [vmem:[%s567 + $0x34] sm:$0xf]
  %v1776 = vld [vmem:[%s567 + $0x38] sm:$0xf]
  %v1777 = vld [vmem:[%s567 + $0x3c] sm:$0xf]
  %v1779 = vunpack.c.l.b16 %v1761
  %v1780 = vpack.c.b16 %v1779, %v1389
  %v1782 = vshrl.u32 %v1655, 16
  %v1784 = vrot.slane %v1782, 3
  %v1785 = vshll.u32 %v1655, 16
  %v1787 = vrot.slane %v1785, 4
  %v1788 = vor.u32 %v1784, %v1787
  %v1790 = vshrl.u32 %v1780, 16
  %v1792 = vrot.slane %v1790, 3
  %v1793 = vshll.u32 %v1780, 16
  %v1795 = vrot.slane %v1793, 4
  %v1796 = vor.u32 %v1792, %v1795
  %v1797 = vsel %vm587, %v1788, %v1796
  %v1816 = vunpack.c.l.b16 %v1762
  %v1817 = vunpack.c.l.b16 %v1763
  %v1818 = vunpack.c.l.b16 %v1764
  %v1819 = vunpack.c.l.b16 %v1765
  %v1820 = vunpack.c.l.b16 %v1766
  %v1821 = vunpack.c.l.b16 %v1767
  %v1822 = vunpack.c.l.b16 %v1768
  %v1823 = vunpack.c.l.b16 %v1769
  %v1824 = vunpack.c.l.b16 %v1770
  %v1825 = vunpack.c.l.b16 %v1771
  %v1826 = vunpack.c.l.b16 %v1772
  %v1827 = vunpack.c.l.b16 %v1773
  %v1828 = vunpack.c.l.b16 %v1774
  %v1829 = vunpack.c.l.b16 %v1775
  %v1830 = vunpack.c.l.b16 %v1776
  %v1831 = vunpack.c.l.b16 %v1777
  %v1832 = vpack.c.b16 %v1817, %v1816
  %v1833 = vpack.c.b16 %v1819, %v1818
  %v1834 = vpack.c.b16 %v1821, %v1820
  %v1835 = vpack.c.b16 %v1823, %v1822
  %v1836 = vpack.c.b16 %v1825, %v1824
  %v1837 = vpack.c.b16 %v1827, %v1826
  %v1838 = vpack.c.b16 %v1829, %v1828
  %v1839 = vpack.c.b16 %v1831, %v1830
  %1848 = vmatprep.subr.bf16.mxu0 0
  %1849 = vmatpush1.bf16.msra.mxu0 %v1839
  %1850 = vmatprep.subr.bf16.mxu0 0
  %1851 = vmatpush1.bf16.msra.mxu0 %v1838
  %1852 = vmatprep.subr.bf16.mxu0 0
  %1853 = vmatpush1.bf16.msra.mxu0 %v1837
  %1854 = vmatprep.subr.bf16.mxu0 0
  %1855 = vmatpush1.bf16.msra.mxu0 %v1836
  %1856 = vmatprep.subr.bf16.mxu0 0
  %1857 = vmatpush1.bf16.msra.mxu0 %v1835
  %1858 = vmatprep.subr.bf16.mxu0 0
  %1859 = vmatpush1.bf16.msra.mxu0 %v1834
  %1860 = vmatprep.subr.bf16.mxu0 0
  %1861 = vmatpush1.bf16.msra.mxu0 %v1833
  %1862 = vmatprep.subr.bf16.mxu0 0
  %1863 = vmatpush1.bf16.msra.mxu0 %v1832
  %1864 = vmatprep.subr.bf16.mxu0 0
  %1865 = vmatpush2.bf16.msra.mxu0 0
  %1866 = vmatprep.subr.bf16.mxu0 0
  %1867 = vmatpush2.bf16.msra.mxu0 0
  %1868 = vmatprep.subr.bf16.mxu0 0
  %1869 = vmatpush2.bf16.msra.mxu0 0
  %1870 = vmatprep.subr.bf16.mxu0 0
  %1871 = vmatpush2.bf16.msra.mxu0 0
  %1872 = vmatprep.subr.bf16.mxu0 0
  %1873 = vmatpush2.bf16.msra.mxu0 0
  %1874 = vmatprep.subr.bf16.mxu0 0
  %1875 = vmatpush2.bf16.msra.mxu0 0
  %1876 = vmatprep.subr.bf16.mxu0 0
  %1877 = vmatpush2.bf16.msra.mxu0 0
  %1878 = vmatprep.subr.bf16.mxu0 0
  %1879 = vmatpush2.bf16.msra.mxu0 0
  %1880 = vmatprep.mubr.bf16.mxu0 0
  %1881 = vmatmul.mubr.bf16.gmra.mxu0 %v1797
  %v1882 = vpop.f32.mrf.mxu0
  %v1883 = vadd.f32 0.0, %v1882
  %v1884 = vpop.f32.mrf.mxu0
  %v1885 = vpop.f32.mrf.mxu0
  %v1886 = vadd.f32 0.0, %v1885
  %v1887 = vpop.f32.mrf.mxu0
  %1888 = vmatprep.mubr.bf16.mxu0 0
  %1889 = vmatmul.mubr.bf16.gmra.mxu0 %v1796
  %v1890 = vpop.f32.mrf.mxu0
  %v1891 = vadd.f32 0.0, %v1890
  %v1892 = vpop.f32.mrf.mxu0
  %v1893 = vpop.f32.mrf.mxu0
  %v1894 = vpop.f32.mrf.mxu0
  %1895 = vdwg.mxu0
  %v1896 = vadd.f32 %v1758, %v1883
  %v1897 = vadd.f32 %v1759, %v1886
  %v1898 = vadd.f32 %v1760, %v1891
  %v1899 = vld [vmem:[%s706] sm:$0xf]
  %v1900 = vld [vmem:[%s706 + $0x4] sm:$0xf]
  %v1901 = vld [vmem:[%s706 + $0x8] sm:$0xf]
  %v1902 = vld [vmem:[%s706 + $0xc] sm:$0xf]
  %v1903 = vld [vmem:[%s706 + $0x10] sm:$0xf]
  %v1904 = vld [vmem:[%s706 + $0x14] sm:$0xf]
  %v1905 = vld [vmem:[%s706 + $0x18] sm:$0xf]
  %v1906 = vld [vmem:[%s706 + $0x1c] sm:$0xf]
  %v1907 = vld [vmem:[%s706 + $0x20] sm:$0xf]
  %v1908 = vld [vmem:[%s706 + $0x24] sm:$0xf]
  %v1909 = vld [vmem:[%s706 + $0x28] sm:$0xf]
  %v1910 = vld [vmem:[%s706 + $0x2c] sm:$0xf]
  %v1911 = vld [vmem:[%s706 + $0x30] sm:$0xf]
  %v1912 = vld [vmem:[%s706 + $0x34] sm:$0xf]
  %v1913 = vld [vmem:[%s706 + $0x38] sm:$0xf]
  %v1914 = vld [vmem:[%s706 + $0x3c] sm:$0xf]
  %v1915 = vpack.c.b16 %v1389, %v1388
  %v1916 = vpack.c.b16 %v1779, %v1779
  %v1935 = vunpack.c.l.b16 %v1899
  %v1936 = vunpack.c.l.b16 %v1900
  %v1937 = vunpack.c.l.b16 %v1901
  %v1938 = vunpack.c.l.b16 %v1902
  %v1939 = vunpack.c.l.b16 %v1903
  %v1940 = vunpack.c.l.b16 %v1904
  %v1941 = vunpack.c.l.b16 %v1905
  %v1942 = vunpack.c.l.b16 %v1906
  %v1943 = vunpack.c.l.b16 %v1907
  %v1944 = vunpack.c.l.b16 %v1908
  %v1945 = vunpack.c.l.b16 %v1909
  %v1946 = vunpack.c.l.b16 %v1910
  %v1947 = vunpack.c.l.b16 %v1911
  %v1948 = vunpack.c.l.b16 %v1912
  %v1949 = vunpack.c.l.b16 %v1913
  %v1950 = vunpack.c.l.b16 %v1914
  %v1951 = vpack.c.b16 %v1936, %v1935
  %v1952 = vpack.c.b16 %v1938, %v1937
  %v1953 = vpack.c.b16 %v1940, %v1939
  %v1954 = vpack.c.b16 %v1942, %v1941
  %v1955 = vpack.c.b16 %v1944, %v1943
  %v1956 = vpack.c.b16 %v1946, %v1945
  %v1957 = vpack.c.b16 %v1948, %v1947
  %v1958 = vpack.c.b16 %v1950, %v1949
  %1967 = vmatprep.subr.bf16.mxu0 0
  %1968 = vmatpush1.bf16.msra.mxu0 %v1958
  %1969 = vmatprep.subr.bf16.mxu0 0
  %1970 = vmatpush1.bf16.msra.mxu0 %v1957
  %1971 = vmatprep.subr.bf16.mxu0 0
  %1972 = vmatpush1.bf16.msra.mxu0 %v1956
  %1973 = vmatprep.subr.bf16.mxu0 0
  %1974 = vmatpush1.bf16.msra.mxu0 %v1955
  %1975 = vmatprep.subr.bf16.mxu0 0
  %1976 = vmatpush1.bf16.msra.mxu0 %v1954
  %1977 = vmatprep.subr.bf16.mxu0 0
  %1978 = vmatpush1.bf16.msra.mxu0 %v1953
  %1979 = vmatprep.subr.bf16.mxu0 0
  %1980 = vmatpush1.bf16.msra.mxu0 %v1952
  %1981 = vmatprep.subr.bf16.mxu0 0
  %1982 = vmatpush1.bf16.msra.mxu0 %v1951
  %1983 = vmatprep.subr.bf16.mxu0 0
  %1984 = vmatpush2.bf16.msra.mxu0 0
  %1985 = vmatprep.subr.bf16.mxu0 0
  %1986 = vmatpush2.bf16.msra.mxu0 0
  %1987 = vmatprep.subr.bf16.mxu0 0
  %1988 = vmatpush2.bf16.msra.mxu0 0
  %1989 = vmatprep.subr.bf16.mxu0 0
  %1990 = vmatpush2.bf16.msra.mxu0 0
  %1991 = vmatprep.subr.bf16.mxu0 0
  %1992 = vmatpush2.bf16.msra.mxu0 0
  %1993 = vmatprep.subr.bf16.mxu0 0
  %1994 = vmatpush2.bf16.msra.mxu0 0
  %1995 = vmatprep.subr.bf16.mxu0 0
  %1996 = vmatpush2.bf16.msra.mxu0 0
  %1997 = vmatprep.subr.bf16.mxu0 0
  %1998 = vmatpush2.bf16.msra.mxu0 0
  %1999 = vmatprep.mubr.bf16.mxu0 0
  %2000 = vmatmul.mubr.bf16.gmra.mxu0 %v1915
  %v2001 = vpop.f32.mrf.mxu0
  %v2002 = vadd.f32 0.0, %v2001
  %v2003 = vpop.f32.mrf.mxu0
  %v2004 = vpop.f32.mrf.mxu0
  %v2005 = vadd.f32 0.0, %v2004
  %v2006 = vpop.f32.mrf.mxu0
  %2007 = vmatprep.mubr.bf16.mxu0 0
  %2008 = vmatmul.mubr.bf16.gmra.mxu0 %v1916
  %v2009 = vpop.f32.mrf.mxu0
  %v2010 = vadd.f32 0.0, %v2009
  %v2011 = vpop.f32.mrf.mxu0
  %v2012 = vpop.f32.mrf.mxu0
  %v2013 = vpop.f32.mrf.mxu0
  %2014 = vdwg.mxu0
  %v2015 = vadd.f32 %v1896, %v2002
  %v2016 = vadd.f32 %v1897, %v2005
  %v2017 = vadd.f32 %v1898, %v2010
  %v2018 = vld [vmem:[%s1234 + $0x4] sm:$0xc]
  %v2019 = vld [vmem:[%s1234 + $0x8] sm:$0xf]
  %v2020 = vld [vmem:[%s1234 + $0xc] sm:$0xf]
  %v2021 = vld [vmem:[%s1234 + $0x10] sm:$0x3]
  %v2022 = vld [vmem:[%s830] sm:$0xf]
  %v2023 = vld [vmem:[%s830 + $0x4] sm:$0xf]
  %v2024 = vld [vmem:[%s830 + $0x8] sm:$0xf]
  %v2025 = vld [vmem:[%s830 + $0xc] sm:$0xf]
  %v2026 = vld [vmem:[%s830 + $0x10] sm:$0xf]
  %v2027 = vld [vmem:[%s830 + $0x14] sm:$0xf]
  %v2028 = vld [vmem:[%s830 + $0x18] sm:$0xf]
  %v2029 = vld [vmem:[%s830 + $0x1c] sm:$0xf]
  %v2030 = vld [vmem:[%s830 + $0x20] sm:$0xf]
  %v2031 = vld [vmem:[%s830 + $0x24] sm:$0xf]
  %v2032 = vld [vmem:[%s830 + $0x28] sm:$0xf]
  %v2033 = vld [vmem:[%s830 + $0x2c] sm:$0xf]
  %v2034 = vld [vmem:[%s830 + $0x30] sm:$0xf]
  %v2035 = vld [vmem:[%s830 + $0x34] sm:$0xf]
  %v2036 = vld [vmem:[%s830 + $0x38] sm:$0xf]
  %v2037 = vld [vmem:[%s830 + $0x3c] sm:$0xf]
  %v2042 = vunpack.c.l.b16 %v2018
  %v2043 = vunpack.c.l.b16 %v2019
  %v2044 = vunpack.c.l.b16 %v2020
  %v2045 = vunpack.c.l.b16 %v2021
  %v2046 = vpack.c.b16 %v2043, %v2042
  %v2047 = vpack.c.b16 %v2045, %v2044
  %v2048 = vrot.slane %v2046, 2
  %v2049 = vrot.slane %v2047, 2
  %v2050 = vsel %vm857, %v2048, %v2049
  %v2069 = vunpack.c.l.b16 %v2022
  %v2070 = vunpack.c.l.b16 %v2023
  %v2071 = vunpack.c.l.b16 %v2024
  %v2072 = vunpack.c.l.b16 %v2025
  %v2073 = vunpack.c.l.b16 %v2026
  %v2074 = vunpack.c.l.b16 %v2027
  %v2075 = vunpack.c.l.b16 %v2028
  %v2076 = vunpack.c.l.b16 %v2029
  %v2077 = vunpack.c.l.b16 %v2030
  %v2078 = vunpack.c.l.b16 %v2031
  %v2079 = vunpack.c.l.b16 %v2032
  %v2080 = vunpack.c.l.b16 %v2033
  %v2081 = vunpack.c.l.b16 %v2034
  %v2082 = vunpack.c.l.b16 %v2035
  %v2083 = vunpack.c.l.b16 %v2036
  %v2084 = vunpack.c.l.b16 %v2037
  %v2085 = vpack.c.b16 %v2070, %v2069
  %v2086 = vpack.c.b16 %v2072, %v2071
  %v2087 = vpack.c.b16 %v2074, %v2073
  %v2088 = vpack.c.b16 %v2076, %v2075
  %v2089 = vpack.c.b16 %v2078, %v2077
  %v2090 = vpack.c.b16 %v2080, %v2079
  %v2091 = vpack.c.b16 %v2082, %v2081
  %v2092 = vpack.c.b16 %v2084, %v2083
  %2101 = vmatprep.subr.bf16.mxu0 0
  %2102 = vmatpush1.bf16.msra.mxu0 %v2092
  %2103 = vmatprep.subr.bf16.mxu0 0
  %2104 = vmatpush1.bf16.msra.mxu0 %v2091
  %2105 = vmatprep.subr.bf16.mxu0 0
  %2106 = vmatpush1.bf16.msra.mxu0 %v2090
  %2107 = vmatprep.subr.bf16.mxu0 0
  %2108 = vmatpush1.bf16.msra.mxu0 %v2089
  %2109 = vmatprep.subr.bf16.mxu0 0
  %2110 = vmatpush1.bf16.msra.mxu0 %v2088
  %2111 = vmatprep.subr.bf16.mxu0 0
  %2112 = vmatpush1.bf16.msra.mxu0 %v2087
  %2113 = vmatprep.subr.bf16.mxu0 0
  %2114 = vmatpush1.bf16.msra.mxu0 %v2086
  %2115 = vmatprep.subr.bf16.mxu0 0
  %2116 = vmatpush1.bf16.msra.mxu0 %v2085
  %2117 = vmatprep.subr.bf16.mxu0 0
  %2118 = vmatpush2.bf16.msra.mxu0 0
  %2119 = vmatprep.subr.bf16.mxu0 0
  %2120 = vmatpush2.bf16.msra.mxu0 0
  %2121 = vmatprep.subr.bf16.mxu0 0
  %2122 = vmatpush2.bf16.msra.mxu0 0
  %2123 = vmatprep.subr.bf16.mxu0 0
  %2124 = vmatpush2.bf16.msra.mxu0 0
  %2125 = vmatprep.subr.bf16.mxu0 0
  %2126 = vmatpush2.bf16.msra.mxu0 0
  %2127 = vmatprep.subr.bf16.mxu0 0
  %2128 = vmatpush2.bf16.msra.mxu0 0
  %2129 = vmatprep.subr.bf16.mxu0 0
  %2130 = vmatpush2.bf16.msra.mxu0 0
  %2131 = vmatprep.subr.bf16.mxu0 0
  %2132 = vmatpush2.bf16.msra.mxu0 0
  %2133 = vmatprep.mubr.bf16.mxu0 0
  %2134 = vmatmul.mubr.bf16.gmra.mxu0 %v2050
  %v2135 = vpop.f32.mrf.mxu0
  %v2136 = vadd.f32 0.0, %v2135
  %v2137 = vpop.f32.mrf.mxu0
  %v2138 = vpop.f32.mrf.mxu0
  %v2139 = vadd.f32 0.0, %v2138
  %v2140 = vpop.f32.mrf.mxu0
  %2141 = vmatprep.mubr.bf16.mxu0 0
  %2142 = vmatmul.mubr.bf16.gmra.mxu0 %v2049
  %v2143 = vpop.f32.mrf.mxu0
  %v2144 = vadd.f32 0.0, %v2143
  %v2145 = vpop.f32.mrf.mxu0
  %v2146 = vpop.f32.mrf.mxu0
  %v2147 = vpop.f32.mrf.mxu0
  %2148 = vdwg.mxu0
  %v2149 = vadd.f32 %v2015, %v2136
  %v2150 = vadd.f32 %v2016, %v2139
  %v2151 = vadd.f32 %v2017, %v2144
  %v2152 = vld [vmem:[%s1234 + $0x10] sm:$0x7]
  %v2153 = vld [vmem:[%s963] sm:$0xf]
  %v2154 = vld [vmem:[%s963 + $0x4] sm:$0xf]
  %v2155 = vld [vmem:[%s963 + $0x8] sm:$0xf]
  %v2156 = vld [vmem:[%s963 + $0xc] sm:$0xf]
  %v2157 = vld [vmem:[%s963 + $0x10] sm:$0xf]
  %v2158 = vld [vmem:[%s963 + $0x14] sm:$0xf]
  %v2159 = vld [vmem:[%s963 + $0x18] sm:$0xf]
  %v2160 = vld [vmem:[%s963 + $0x1c] sm:$0xf]
  %v2161 = vld [vmem:[%s963 + $0x20] sm:$0xf]
  %v2162 = vld [vmem:[%s963 + $0x24] sm:$0xf]
  %v2163 = vld [vmem:[%s963 + $0x28] sm:$0xf]
  %v2164 = vld [vmem:[%s963 + $0x2c] sm:$0xf]
  %v2165 = vld [vmem:[%s963 + $0x30] sm:$0xf]
  %v2166 = vld [vmem:[%s963 + $0x34] sm:$0xf]
  %v2167 = vld [vmem:[%s963 + $0x38] sm:$0xf]
  %v2168 = vld [vmem:[%s963 + $0x3c] sm:$0xf]
  %v2170 = vunpack.c.l.b16 %v2152
  %v2171 = vpack.c.b16 %v2170, %v2044
  %v2173 = vshrl.u32 %v2046, 16
  %v2175 = vrot.slane %v2173, 2
  %v2176 = vshll.u32 %v2046, 16
  %v2178 = vrot.slane %v2176, 3
  %v2179 = vor.u32 %v2175, %v2178
  %v2181 = vshrl.u32 %v2171, 16
  %v2183 = vrot.slane %v2181, 2
  %v2184 = vshll.u32 %v2171, 16
  %v2186 = vrot.slane %v2184, 3
  %v2187 = vor.u32 %v2183, %v2186
  %v2188 = vsel %vm983, %v2179, %v2187
  %v2207 = vunpack.c.l.b16 %v2153
  %v2208 = vunpack.c.l.b16 %v2154
  %v2209 = vunpack.c.l.b16 %v2155
  %v2210 = vunpack.c.l.b16 %v2156
  %v2211 = vunpack.c.l.b16 %v2157
  %v2212 = vunpack.c.l.b16 %v2158
  %v2213 = vunpack.c.l.b16 %v2159
  %v2214 = vunpack.c.l.b16 %v2160
  %v2215 = vunpack.c.l.b16 %v2161
  %v2216 = vunpack.c.l.b16 %v2162
  %v2217 = vunpack.c.l.b16 %v2163
  %v2218 = vunpack.c.l.b16 %v2164
  %v2219 = vunpack.c.l.b16 %v2165
  %v2220 = vunpack.c.l.b16 %v2166
  %v2221 = vunpack.c.l.b16 %v2167
  %v2222 = vunpack.c.l.b16 %v2168
  %v2223 = vpack.c.b16 %v2208, %v2207
  %v2224 = vpack.c.b16 %v2210, %v2209
  %v2225 = vpack.c.b16 %v2212, %v2211
  %v2226 = vpack.c.b16 %v2214, %v2213
  %v2227 = vpack.c.b16 %v2216, %v2215
  %v2228 = vpack.c.b16 %v2218, %v2217
  %v2229 = vpack.c.b16 %v2220, %v2219
  %v2230 = vpack.c.b16 %v2222, %v2221
  %2239 = vmatprep.subr.bf16.mxu0 0
  %2240 = vmatpush1.bf16.msra.mxu0 %v2230
  %2241 = vmatprep.subr.bf16.mxu0 0
  %2242 = vmatpush1.bf16.msra.mxu0 %v2229
  %2243 = vmatprep.subr.bf16.mxu0 0
  %2244 = vmatpush1.bf16.msra.mxu0 %v2228
  %2245 = vmatprep.subr.bf16.mxu0 0
  %2246 = vmatpush1.bf16.msra.mxu0 %v2227
  %2247 = vmatprep.subr.bf16.mxu0 0
  %2248 = vmatpush1.bf16.msra.mxu0 %v2226
  %2249 = vmatprep.subr.bf16.mxu0 0
  %2250 = vmatpush1.bf16.msra.mxu0 %v2225
  %2251 = vmatprep.subr.bf16.mxu0 0
  %2252 = vmatpush1.bf16.msra.mxu0 %v2224
  %2253 = vmatprep.subr.bf16.mxu0 0
  %2254 = vmatpush1.bf16.msra.mxu0 %v2223
  %2255 = vmatprep.subr.bf16.mxu0 0
  %2256 = vmatpush2.bf16.msra.mxu0 0
  %2257 = vmatprep.subr.bf16.mxu0 0
  %2258 = vmatpush2.bf16.msra.mxu0 0
  %2259 = vmatprep.subr.bf16.mxu0 0
  %2260 = vmatpush2.bf16.msra.mxu0 0
  %2261 = vmatprep.subr.bf16.mxu0 0
  %2262 = vmatpush2.bf16.msra.mxu0 0
  %2263 = vmatprep.subr.bf16.mxu0 0
  %2264 = vmatpush2.bf16.msra.mxu0 0
  %2265 = vmatprep.subr.bf16.mxu0 0
  %2266 = vmatpush2.bf16.msra.mxu0 0
  %2267 = vmatprep.subr.bf16.mxu0 0
  %2268 = vmatpush2.bf16.msra.mxu0 0
  %2269 = vmatprep.subr.bf16.mxu0 0
  %2270 = vmatpush2.bf16.msra.mxu0 0
  %2271 = vmatprep.mubr.bf16.mxu0 0
  %2272 = vmatmul.mubr.bf16.gmra.mxu0 %v2188
  %v2273 = vpop.f32.mrf.mxu0
  %v2274 = vadd.f32 0.0, %v2273
  %v2275 = vpop.f32.mrf.mxu0
  %v2276 = vpop.f32.mrf.mxu0
  %v2277 = vadd.f32 0.0, %v2276
  %v2278 = vpop.f32.mrf.mxu0
  %2279 = vmatprep.mubr.bf16.mxu0 0
  %2280 = vmatmul.mubr.bf16.gmra.mxu0 %v2187
  %v2281 = vpop.f32.mrf.mxu0
  %v2282 = vadd.f32 0.0, %v2281
  %v2283 = vpop.f32.mrf.mxu0
  %v2284 = vpop.f32.mrf.mxu0
  %v2285 = vpop.f32.mrf.mxu0
  %2286 = vdwg.mxu0
  %v2287 = vadd.f32 %v2149, %v2274
  %v2288 = vadd.f32 %v2150, %v2277
  %v2289 = vadd.f32 %v2151, %v2282
  %v2290 = vld [vmem:[%s1234 + $0x4] sm:$0x8]
  %v2291 = vld [vmem:[%s1103] sm:$0xf]
  %v2292 = vld [vmem:[%s1103 + $0x4] sm:$0xf]
  %v2293 = vld [vmem:[%s1103 + $0x8] sm:$0xf]
  %v2294 = vld [vmem:[%s1103 + $0xc] sm:$0xf]
  %v2295 = vld [vmem:[%s1103 + $0x10] sm:$0xf]
  %v2296 = vld [vmem:[%s1103 + $0x14] sm:$0xf]
  %v2297 = vld [vmem:[%s1103 + $0x18] sm:$0xf]
  %v2298 = vld [vmem:[%s1103 + $0x1c] sm:$0xf]
  %v2299 = vld [vmem:[%s1103 + $0x20] sm:$0xf]
  %v2300 = vld [vmem:[%s1103 + $0x24] sm:$0xf]
  %v2301 = vld [vmem:[%s1103 + $0x28] sm:$0xf]
  %v2302 = vld [vmem:[%s1103 + $0x2c] sm:$0xf]
  %v2303 = vld [vmem:[%s1103 + $0x30] sm:$0xf]
  %v2304 = vld [vmem:[%s1103 + $0x34] sm:$0xf]
  %v2305 = vld [vmem:[%s1103 + $0x38] sm:$0xf]
  %v2306 = vld [vmem:[%s1103 + $0x3c] sm:$0xf]
  %v2308 = vunpack.c.l.b16 %v2290
  %v2309 = vpack.c.b16 %v2043, %v2308
  %v2310 = vrot.slane %v2309, 3
  %v2311 = vrot.slane %v2171, 3
  %v2312 = vsel %vm461, %v2310, %v2311
  %v2331 = vunpack.c.l.b16 %v2291
  %v2332 = vunpack.c.l.b16 %v2292
  %v2333 = vunpack.c.l.b16 %v2293
  %v2334 = vunpack.c.l.b16 %v2294
  %v2335 = vunpack.c.l.b16 %v2295
  %v2336 = vunpack.c.l.b16 %v2296
  %v2337 = vunpack.c.l.b16 %v2297
  %v2338 = vunpack.c.l.b16 %v2298
  %v2339 = vunpack.c.l.b16 %v2299
  %v2340 = vunpack.c.l.b16 %v2300
  %v2341 = vunpack.c.l.b16 %v2301
  %v2342 = vunpack.c.l.b16 %v2302
  %v2343 = vunpack.c.l.b16 %v2303
  %v2344 = vunpack.c.l.b16 %v2304
  %v2345 = vunpack.c.l.b16 %v2305
  %v2346 = vunpack.c.l.b16 %v2306
  %v2347 = vpack.c.b16 %v2332, %v2331
  %v2348 = vpack.c.b16 %v2334, %v2333
  %v2349 = vpack.c.b16 %v2336, %v2335
  %v2350 = vpack.c.b16 %v2338, %v2337
  %v2351 = vpack.c.b16 %v2340, %v2339
  %v2352 = vpack.c.b16 %v2342, %v2341
  %v2353 = vpack.c.b16 %v2344, %v2343
  %v2354 = vpack.c.b16 %v2346, %v2345
  %2363 = vmatprep.subr.bf16.mxu0 0
  %2364 = vmatpush1.bf16.msra.mxu0 %v2354
  %2365 = vmatprep.subr.bf16.mxu0 0
  %2366 = vmatpush1.bf16.msra.mxu0 %v2353
  %2367 = vmatprep.subr.bf16.mxu0 0
  %2368 = vmatpush1.bf16.msra.mxu0 %v2352
  %2369 = vmatprep.subr.bf16.mxu0 0
  %2370 = vmatpush1.bf16.msra.mxu0 %v2351
  %2371 = vmatprep.subr.bf16.mxu0 0
  %2372 = vmatpush1.bf16.msra.mxu0 %v2350
  %2373 = vmatprep.subr.bf16.mxu0 0
  %2374 = vmatpush1.bf16.msra.mxu0 %v2349
  %2375 = vmatprep.subr.bf16.mxu0 0
  %2376 = vmatpush1.bf16.msra.mxu0 %v2348
  %2377 = vmatprep.subr.bf16.mxu0 0
  %2378 = vmatpush1.bf16.msra.mxu0 %v2347
  %2379 = vmatprep.subr.bf16.mxu0 0
  %2380 = vmatpush2.bf16.msra.mxu0 0
  %2381 = vmatprep.subr.bf16.mxu0 0
  %2382 = vmatpush2.bf16.msra.mxu0 0
  %2383 = vmatprep.subr.bf16.mxu0 0
  %2384 = vmatpush2.bf16.msra.mxu0 0
  %2385 = vmatprep.subr.bf16.mxu0 0
  %2386 = vmatpush2.bf16.msra.mxu0 0
  %2387 = vmatprep.subr.bf16.mxu0 0
  %2388 = vmatpush2.bf16.msra.mxu0 0
  %2389 = vmatprep.subr.bf16.mxu0 0
  %2390 = vmatpush2.bf16.msra.mxu0 0
  %2391 = vmatprep.subr.bf16.mxu0 0
  %2392 = vmatpush2.bf16.msra.mxu0 0
  %2393 = vmatprep.subr.bf16.mxu0 0
  %2394 = vmatpush2.bf16.msra.mxu0 0
  %2395 = vmatprep.mubr.bf16.mxu0 0
  %2396 = vmatmul.mubr.bf16.gmra.mxu0 %v2312
  %v2397 = vpop.f32.mrf.mxu0
  %v2398 = vadd.f32 0.0, %v2397
  %v2399 = vpop.f32.mrf.mxu0
  %v2400 = vpop.f32.mrf.mxu0
  %v2401 = vadd.f32 0.0, %v2400
  %v2402 = vpop.f32.mrf.mxu0
  %2403 = vmatprep.mubr.bf16.mxu0 0
  %2404 = vmatmul.mubr.bf16.gmra.mxu0 %v2311
  %v2405 = vpop.f32.mrf.mxu0
  %v2406 = vadd.f32 0.0, %v2405
  %v2407 = vpop.f32.mrf.mxu0
  %v2408 = vpop.f32.mrf.mxu0
  %v2409 = vpop.f32.mrf.mxu0
  %2410 = vdwg.mxu0
  %v2411 = vadd.f32 %v2287, %v2398
  %v2412 = vadd.f32 %v2288, %v2401
  %v2413 = vadd.f32 %v2289, %v2406
  %2414 = vst [vmem:[%s1230] sm:$0xff] %v2411
  %2415 = vst [vmem:[%s1230 + $0x8] sm:$0xff] %v2412
  %2416 = vst [vmem:[%s1230 + $0x10] sm:$0xff] %v2413
  %s2417 = scalar_lea.vmem [#allocation2], 48
  %v2418 = vld [vmem:[%s2417] sm:$0xff]
  %v2419 = vld [vmem:[%s2417 + $0x8] sm:$0xff]
  %v2420 = vld [vmem:[%s2417 + $0x10] sm:$0xff]
  %s2421 = scalar_lea.vmem %s0, 48
  %v2422 = vld [vmem:[%s2421] sm:$0xf]
  %v2423 = vld [vmem:[%s2421 + $0x4] sm:$0xf]
  %v2424 = vld [vmem:[%s2421 + $0x8] sm:$0xf]
  %v2425 = vld [vmem:[%s1] sm:$0xf]
  %v2426 = vld [vmem:[%s1 + $0x4] sm:$0xf]
  %v2427 = vld [vmem:[%s1 + $0x8] sm:$0xf]
  %v2428 = vld [vmem:[%s1 + $0xc] sm:$0xf]
  %v2429 = vld [vmem:[%s1 + $0x10] sm:$0xf]
  %v2430 = vld [vmem:[%s1 + $0x14] sm:$0xf]
  %v2431 = vld [vmem:[%s1 + $0x18] sm:$0xf]
  %v2432 = vld [vmem:[%s1 + $0x1c] sm:$0xf]
  %v2433 = vld [vmem:[%s1 + $0x20] sm:$0xf]
  %v2434 = vld [vmem:[%s1 + $0x24] sm:$0xf]
  %v2435 = vld [vmem:[%s1 + $0x28] sm:$0xf]
  %v2436 = vld [vmem:[%s1 + $0x2c] sm:$0xf]
  %v2437 = vld [vmem:[%s1 + $0x30] sm:$0xf]
  %v2438 = vld [vmem:[%s1 + $0x34] sm:$0xf]
  %v2439 = vld [vmem:[%s1 + $0x38] sm:$0xf]
  %v2440 = vld [vmem:[%s1 + $0x3c] sm:$0xf]
  %v2444 = vunpack.c.l.b16 %v2422
  %v2445 = vunpack.c.l.b16 %v2423
  %v2446 = vunpack.c.l.b16 %v2424
  %v2447 = vpack.c.b16 %v2445, %v2444
  %v2448 = vpack.c.b16 %v2446, %v2446
  %v2467 = vunpack.c.l.b16 %v2425
  %v2468 = vunpack.c.l.b16 %v2426
  %v2469 = vunpack.c.l.b16 %v2427
  %v2470 = vunpack.c.l.b16 %v2428
  %v2471 = vunpack.c.l.b16 %v2429
  %v2472 = vunpack.c.l.b16 %v2430
  %v2473 = vunpack.c.l.b16 %v2431
  %v2474 = vunpack.c.l.b16 %v2432
  %v2475 = vunpack.c.l.b16 %v2433
  %v2476 = vunpack.c.l.b16 %v2434
  %v2477 = vunpack.c.l.b16 %v2435
  %v2478 = vunpack.c.l.b16 %v2436
  %v2479 = vunpack.c.l.b16 %v2437
  %v2480 = vunpack.c.l.b16 %v2438
  %v2481 = vunpack.c.l.b16 %v2439
  %v2482 = vunpack.c.l.b16 %v2440
  %v2483 = vpack.c.b16 %v2468, %v2467
  %v2484 = vpack.c.b16 %v2470, %v2469
  %v2485 = vpack.c.b16 %v2472, %v2471
  %v2486 = vpack.c.b16 %v2474, %v2473
  %v2487 = vpack.c.b16 %v2476, %v2475
  %v2488 = vpack.c.b16 %v2478, %v2477
  %v2489 = vpack.c.b16 %v2480, %v2479
  %v2490 = vpack.c.b16 %v2482, %v2481
  %2499 = vmatprep.subr.bf16.mxu0 0
  %2500 = vmatpush1.bf16.msra.mxu0 %v2490
  %2501 = vmatprep.subr.bf16.mxu0 0
  %2502 = vmatpush1.bf16.msra.mxu0 %v2489
  %2503 = vmatprep.subr.bf16.mxu0 0
  %2504 = vmatpush1.bf16.msra.mxu0 %v2488
  %2505 = vmatprep.subr.bf16.mxu0 0
  %2506 = vmatpush1.bf16.msra.mxu0 %v2487
  %2507 = vmatprep.subr.bf16.mxu0 0
  %2508 = vmatpush1.bf16.msra.mxu0 %v2486
  %2509 = vmatprep.subr.bf16.mxu0 0
  %2510 = vmatpush1.bf16.msra.mxu0 %v2485
  %2511 = vmatprep.subr.bf16.mxu0 0
  %2512 = vmatpush1.bf16.msra.mxu0 %v2484
  %2513 = vmatprep.subr.bf16.mxu0 0
  %2514 = vmatpush1.bf16.msra.mxu0 %v2483
  %2515 = vmatprep.subr.bf16.mxu0 0
  %2516 = vmatpush2.bf16.msra.mxu0 0
  %2517 = vmatprep.subr.bf16.mxu0 0
  %2518 = vmatpush2.bf16.msra.mxu0 0
  %2519 = vmatprep.subr.bf16.mxu0 0
  %2520 = vmatpush2.bf16.msra.mxu0 0
  %2521 = vmatprep.subr.bf16.mxu0 0
  %2522 = vmatpush2.bf16.msra.mxu0 0
  %2523 = vmatprep.subr.bf16.mxu0 0
  %2524 = vmatpush2.bf16.msra.mxu0 0
  %2525 = vmatprep.subr.bf16.mxu0 0
  %2526 = vmatpush2.bf16.msra.mxu0 0
  %2527 = vmatprep.subr.bf16.mxu0 0
  %2528 = vmatpush2.bf16.msra.mxu0 0
  %2529 = vmatprep.subr.bf16.mxu0 0
  %2530 = vmatpush2.bf16.msra.mxu0 0
  %2531 = vmatprep.mubr.bf16.mxu0 0
  %2532 = vmatmul.mubr.bf16.gmra.mxu0 %v2447
  %v2533 = vpop.f32.mrf.mxu0
  %v2534 = vadd.f32 0.0, %v2533
  %v2535 = vpop.f32.mrf.mxu0
  %v2536 = vpop.f32.mrf.mxu0
  %v2537 = vadd.f32 0.0, %v2536
  %v2538 = vpop.f32.mrf.mxu0
  %2539 = vmatprep.mubr.bf16.mxu0 0
  %2540 = vmatmul.mubr.bf16.gmra.mxu0 %v2448
  %v2541 = vpop.f32.mrf.mxu0
  %v2542 = vadd.f32 0.0, %v2541
  %v2543 = vpop.f32.mrf.mxu0
  %v2544 = vpop.f32.mrf.mxu0
  %v2545 = vpop.f32.mrf.mxu0
  %2546 = vdwg.mxu0
  %v2547 = vadd.f32 %v2418, %v2534
  %v2548 = vadd.f32 %v2419, %v2537
  %v2549 = vadd.f32 %v2420, %v2542
  %v2550 = vld [vmem:[%s2421] sm:$0xf]
  %v2551 = vld [vmem:[%s2421 + $0x4] sm:$0xf]
  %v2552 = vld [vmem:[%s2421 + $0x8] sm:$0xf]
  %v2553 = vld [vmem:[%s2421 + $0xc] sm:$0x1]
  %v2554 = vld [vmem:[%s166] sm:$0xf]
  %v2555 = vld [vmem:[%s166 + $0x4] sm:$0xf]
  %v2556 = vld [vmem:[%s166 + $0x8] sm:$0xf]
  %v2557 = vld [vmem:[%s166 + $0xc] sm:$0xf]
  %v2558 = vld [vmem:[%s166 + $0x10] sm:$0xf]
  %v2559 = vld [vmem:[%s166 + $0x14] sm:$0xf]
  %v2560 = vld [vmem:[%s166 + $0x18] sm:$0xf]
  %v2561 = vld [vmem:[%s166 + $0x1c] sm:$0xf]
  %v2562 = vld [vmem:[%s166 + $0x20] sm:$0xf]
  %v2563 = vld [vmem:[%s166 + $0x24] sm:$0xf]
  %v2564 = vld [vmem:[%s166 + $0x28] sm:$0xf]
  %v2565 = vld [vmem:[%s166 + $0x2c] sm:$0xf]
  %v2566 = vld [vmem:[%s166 + $0x30] sm:$0xf]
  %v2567 = vld [vmem:[%s166 + $0x34] sm:$0xf]
  %v2568 = vld [vmem:[%s166 + $0x38] sm:$0xf]
  %v2569 = vld [vmem:[%s166 + $0x3c] sm:$0xf]
  %v2574 = vunpack.c.l.b16 %v2550
  %v2575 = vunpack.c.l.b16 %v2551
  %v2576 = vunpack.c.l.b16 %v2552
  %v2577 = vunpack.c.l.b16 %v2553
  %v2578 = vpack.c.b16 %v2575, %v2574
  %v2579 = vpack.c.b16 %v2577, %v2576
  %v2581 = vshrl.u32 %v2578, 16
  %v2583 = vshll.u32 %v2578, 16
  %v2585 = vrot.slane %v2583, 1
  %v2586 = vor.u32 %v2581, %v2585
  %v2588 = vshll.u32 %v2579, 16
  %v2590 = vrot.slane %v2588, 1
  %v2591 = vsel %vm193, %v2586, %v2590
  %v2592 = vshrl.u32 %v2579, 16
  %v2594 = vor.u32 %v2592, %v2590
  %v2613 = vunpack.c.l.b16 %v2554
  %v2614 = vunpack.c.l.b16 %v2555
  %v2615 = vunpack.c.l.b16 %v2556
  %v2616 = vunpack.c.l.b16 %v2557
  %v2617 = vunpack.c.l.b16 %v2558
  %v2618 = vunpack.c.l.b16 %v2559
  %v2619 = vunpack.c.l.b16 %v2560
  %v2620 = vunpack.c.l.b16 %v2561
  %v2621 = vunpack.c.l.b16 %v2562
  %v2622 = vunpack.c.l.b16 %v2563
  %v2623 = vunpack.c.l.b16 %v2564
  %v2624 = vunpack.c.l.b16 %v2565
  %v2625 = vunpack.c.l.b16 %v2566
  %v2626 = vunpack.c.l.b16 %v2567
  %v2627 = vunpack.c.l.b16 %v2568
  %v2628 = vunpack.c.l.b16 %v2569
  %v2629 = vpack.c.b16 %v2614, %v2613
  %v2630 = vpack.c.b16 %v2616, %v2615
  %v2631 = vpack.c.b16 %v2618, %v2617
  %v2632 = vpack.c.b16 %v2620, %v2619
  %v2633 = vpack.c.b16 %v2622, %v2621
  %v2634 = vpack.c.b16 %v2624, %v2623
  %v2635 = vpack.c.b16 %v2626, %v2625
  %v2636 = vpack.c.b16 %v2628, %v2627
  %2645 = vmatprep.subr.bf16.mxu0 0
  %2646 = vmatpush1.bf16.msra.mxu0 %v2636
  %2647 = vmatprep.subr.bf16.mxu0 0
  %2648 = vmatpush1.bf16.msra.mxu0 %v2635
  %2649 = vmatprep.subr.bf16.mxu0 0
  %2650 = vmatpush1.bf16.msra.mxu0 %v2634
  %2651 = vmatprep.subr.bf16.mxu0 0
  %2652 = vmatpush1.bf16.msra.mxu0 %v2633
  %2653 = vmatprep.subr.bf16.mxu0 0
  %2654 = vmatpush1.bf16.msra.mxu0 %v2632
  %2655 = vmatprep.subr.bf16.mxu0 0
  %2656 = vmatpush1.bf16.msra.mxu0 %v2631
  %2657 = vmatprep.subr.bf16.mxu0 0
  %2658 = vmatpush1.bf16.msra.mxu0 %v2630
  %2659 = vmatprep.subr.bf16.mxu0 0
  %2660 = vmatpush1.bf16.msra.mxu0 %v2629
  %2661 = vmatprep.subr.bf16.mxu0 0
  %2662 = vmatpush2.bf16.msra.mxu0 0
  %2663 = vmatprep.subr.bf16.mxu0 0
  %2664 = vmatpush2.bf16.msra.mxu0 0
  %2665 = vmatprep.subr.bf16.mxu0 0
  %2666 = vmatpush2.bf16.msra.mxu0 0
  %2667 = vmatprep.subr.bf16.mxu0 0
  %2668 = vmatpush2.bf16.msra.mxu0 0
  %2669 = vmatprep.subr.bf16.mxu0 0
  %2670 = vmatpush2.bf16.msra.mxu0 0
  %2671 = vmatprep.subr.bf16.mxu0 0
  %2672 = vmatpush2.bf16.msra.mxu0 0
  %2673 = vmatprep.subr.bf16.mxu0 0
  %2674 = vmatpush2.bf16.msra.mxu0 0
  %2675 = vmatprep.subr.bf16.mxu0 0
  %2676 = vmatpush2.bf16.msra.mxu0 0
  %2677 = vmatprep.mubr.bf16.mxu0 0
  %2678 = vmatmul.mubr.bf16.gmra.mxu0 %v2591
  %v2679 = vpop.f32.mrf.mxu0
  %v2680 = vadd.f32 0.0, %v2679
  %v2681 = vpop.f32.mrf.mxu0
  %v2682 = vpop.f32.mrf.mxu0
  %v2683 = vadd.f32 0.0, %v2682
  %v2684 = vpop.f32.mrf.mxu0
  %2685 = vmatprep.mubr.bf16.mxu0 0
  %2686 = vmatmul.mubr.bf16.gmra.mxu0 %v2594
  %v2687 = vpop.f32.mrf.mxu0
  %v2688 = vadd.f32 0.0, %v2687
  %v2689 = vpop.f32.mrf.mxu0
  %v2690 = vpop.f32.mrf.mxu0
  %v2691 = vpop.f32.mrf.mxu0
  %2692 = vdwg.mxu0
  %v2693 = vadd.f32 %v2547, %v2680
  %v2694 = vadd.f32 %v2548, %v2683
  %v2695 = vadd.f32 %v2549, %v2688
  %v2696 = vld [vmem:[%s2421] sm:$0xe]
  %v2697 = vld [vmem:[%s311] sm:$0xf]
  %v2698 = vld [vmem:[%s311 + $0x4] sm:$0xf]
  %v2699 = vld [vmem:[%s311 + $0x8] sm:$0xf]
  %v2700 = vld [vmem:[%s311 + $0xc] sm:$0xf]
  %v2701 = vld [vmem:[%s311 + $0x10] sm:$0xf]
  %v2702 = vld [vmem:[%s311 + $0x14] sm:$0xf]
  %v2703 = vld [vmem:[%s311 + $0x18] sm:$0xf]
  %v2704 = vld [vmem:[%s311 + $0x1c] sm:$0xf]
  %v2705 = vld [vmem:[%s311 + $0x20] sm:$0xf]
  %v2706 = vld [vmem:[%s311 + $0x24] sm:$0xf]
  %v2707 = vld [vmem:[%s311 + $0x28] sm:$0xf]
  %v2708 = vld [vmem:[%s311 + $0x2c] sm:$0xf]
  %v2709 = vld [vmem:[%s311 + $0x30] sm:$0xf]
  %v2710 = vld [vmem:[%s311 + $0x34] sm:$0xf]
  %v2711 = vld [vmem:[%s311 + $0x38] sm:$0xf]
  %v2712 = vld [vmem:[%s311 + $0x3c] sm:$0xf]
  %v2714 = vunpack.c.l.b16 %v2696
  %v2715 = vpack.c.b16 %v2575, %v2714
  %v2716 = vrot.slane %v2715, 1
  %v2717 = vrot.slane %v2579, 1
  %v2718 = vsel %vm331, %v2716, %v2717
  %v2737 = vunpack.c.l.b16 %v2697
  %v2738 = vunpack.c.l.b16 %v2698
  %v2739 = vunpack.c.l.b16 %v2699
  %v2740 = vunpack.c.l.b16 %v2700
  %v2741 = vunpack.c.l.b16 %v2701
  %v2742 = vunpack.c.l.b16 %v2702
  %v2743 = vunpack.c.l.b16 %v2703
  %v2744 = vunpack.c.l.b16 %v2704
  %v2745 = vunpack.c.l.b16 %v2705
  %v2746 = vunpack.c.l.b16 %v2706
  %v2747 = vunpack.c.l.b16 %v2707
  %v2748 = vunpack.c.l.b16 %v2708
  %v2749 = vunpack.c.l.b16 %v2709
  %v2750 = vunpack.c.l.b16 %v2710
  %v2751 = vunpack.c.l.b16 %v2711
  %v2752 = vunpack.c.l.b16 %v2712
  %v2753 = vpack.c.b16 %v2738, %v2737
  %v2754 = vpack.c.b16 %v2740, %v2739
  %v2755 = vpack.c.b16 %v2742, %v2741
  %v2756 = vpack.c.b16 %v2744, %v2743
  %v2757 = vpack.c.b16 %v2746, %v2745
  %v2758 = vpack.c.b16 %v2748, %v2747
  %v2759 = vpack.c.b16 %v2750, %v2749
  %v2760 = vpack.c.b16 %v2752, %v2751
  %2769 = vmatprep.subr.bf16.mxu0 0
  %2770 = vmatpush1.bf16.msra.mxu0 %v2760
  %2771 = vmatprep.subr.bf16.mxu0 0
  %2772 = vmatpush1.bf16.msra.mxu0 %v2759
  %2773 = vmatprep.subr.bf16.mxu0 0
  %2774 = vmatpush1.bf16.msra.mxu0 %v2758
  %2775 = vmatprep.subr.bf16.mxu0 0
  %2776 = vmatpush1.bf16.msra.mxu0 %v2757
  %2777 = vmatprep.subr.bf16.mxu0 0
  %2778 = vmatpush1.bf16.msra.mxu0 %v2756
  %2779 = vmatprep.subr.bf16.mxu0 0
  %2780 = vmatpush1.bf16.msra.mxu0 %v2755
  %2781 = vmatprep.subr.bf16.mxu0 0
  %2782 = vmatpush1.bf16.msra.mxu0 %v2754
  %2783 = vmatprep.subr.bf16.mxu0 0
  %2784 = vmatpush1.bf16.msra.mxu0 %v2753
  %2785 = vmatprep.subr.bf16.mxu0 0
  %2786 = vmatpush2.bf16.msra.mxu0 0
  %2787 = vmatprep.subr.bf16.mxu0 0
  %2788 = vmatpush2.bf16.msra.mxu0 0
  %2789 = vmatprep.subr.bf16.mxu0 0
  %2790 = vmatpush2.bf16.msra.mxu0 0
  %2791 = vmatprep.subr.bf16.mxu0 0
  %2792 = vmatpush2.bf16.msra.mxu0 0
  %2793 = vmatprep.subr.bf16.mxu0 0
  %2794 = vmatpush2.bf16.msra.mxu0 0
  %2795 = vmatprep.subr.bf16.mxu0 0
  %2796 = vmatpush2.bf16.msra.mxu0 0
  %2797 = vmatprep.subr.bf16.mxu0 0
  %2798 = vmatpush2.bf16.msra.mxu0 0
  %2799 = vmatprep.subr.bf16.mxu0 0
  %2800 = vmatpush2.bf16.msra.mxu0 0
  %2801 = vmatprep.mubr.bf16.mxu0 0
  %2802 = vmatmul.mubr.bf16.gmra.mxu0 %v2718
  %v2803 = vpop.f32.mrf.mxu0
  %v2804 = vadd.f32 0.0, %v2803
  %v2805 = vpop.f32.mrf.mxu0
  %v2806 = vpop.f32.mrf.mxu0
  %v2807 = vadd.f32 0.0, %v2806
  %v2808 = vpop.f32.mrf.mxu0
  %2809 = vmatprep.mubr.bf16.mxu0 0
  %2810 = vmatmul.mubr.bf16.gmra.mxu0 %v2717
  %v2811 = vpop.f32.mrf.mxu0
  %v2812 = vadd.f32 0.0, %v2811
  %v2813 = vpop.f32.mrf.mxu0
  %v2814 = vpop.f32.mrf.mxu0
  %v2815 = vpop.f32.mrf.mxu0
  %2816 = vdwg.mxu0
  %v2817 = vadd.f32 %v2693, %v2804
  %v2818 = vadd.f32 %v2694, %v2807
  %v2819 = vadd.f32 %v2695, %v2812
  %v2820 = vld [vmem:[%s2421] sm:$0x8]
  %v2821 = vld [vmem:[%s2421 + $0xc] sm:$0x7]
  %v2822 = vld [vmem:[%s438] sm:$0xf]
  %v2823 = vld [vmem:[%s438 + $0x4] sm:$0xf]
  %v2824 = vld [vmem:[%s438 + $0x8] sm:$0xf]
  %v2825 = vld [vmem:[%s438 + $0xc] sm:$0xf]
  %v2826 = vld [vmem:[%s438 + $0x10] sm:$0xf]
  %v2827 = vld [vmem:[%s438 + $0x14] sm:$0xf]
  %v2828 = vld [vmem:[%s438 + $0x18] sm:$0xf]
  %v2829 = vld [vmem:[%s438 + $0x1c] sm:$0xf]
  %v2830 = vld [vmem:[%s438 + $0x20] sm:$0xf]
  %v2831 = vld [vmem:[%s438 + $0x24] sm:$0xf]
  %v2832 = vld [vmem:[%s438 + $0x28] sm:$0xf]
  %v2833 = vld [vmem:[%s438 + $0x2c] sm:$0xf]
  %v2834 = vld [vmem:[%s438 + $0x30] sm:$0xf]
  %v2835 = vld [vmem:[%s438 + $0x34] sm:$0xf]
  %v2836 = vld [vmem:[%s438 + $0x38] sm:$0xf]
  %v2837 = vld [vmem:[%s438 + $0x3c] sm:$0xf]
  %v2840 = vunpack.c.l.b16 %v2820
  %v2841 = vunpack.c.l.b16 %v2821
  %v2842 = vpack.c.b16 %v2575, %v2840
  %v2843 = vpack.c.b16 %v2841, %v2576
  %v2844 = vrot.slane %v2842, 3
  %v2845 = vrot.slane %v2843, 3
  %v2846 = vsel %vm461, %v2844, %v2845
  %v2865 = vunpack.c.l.b16 %v2822
  %v2866 = vunpack.c.l.b16 %v2823
  %v2867 = vunpack.c.l.b16 %v2824
  %v2868 = vunpack.c.l.b16 %v2825
  %v2869 = vunpack.c.l.b16 %v2826
  %v2870 = vunpack.c.l.b16 %v2827
  %v2871 = vunpack.c.l.b16 %v2828
  %v2872 = vunpack.c.l.b16 %v2829
  %v2873 = vunpack.c.l.b16 %v2830
  %v2874 = vunpack.c.l.b16 %v2831
  %v2875 = vunpack.c.l.b16 %v2832
  %v2876 = vunpack.c.l.b16 %v2833
  %v2877 = vunpack.c.l.b16 %v2834
  %v2878 = vunpack.c.l.b16 %v2835
  %v2879 = vunpack.c.l.b16 %v2836
  %v2880 = vunpack.c.l.b16 %v2837
  %v2881 = vpack.c.b16 %v2866, %v2865
  %v2882 = vpack.c.b16 %v2868, %v2867
  %v2883 = vpack.c.b16 %v2870, %v2869
  %v2884 = vpack.c.b16 %v2872, %v2871
  %v2885 = vpack.c.b16 %v2874, %v2873
  %v2886 = vpack.c.b16 %v2876, %v2875
  %v2887 = vpack.c.b16 %v2878, %v2877
  %v2888 = vpack.c.b16 %v2880, %v2879
  %2897 = vmatprep.subr.bf16.mxu0 0
  %2898 = vmatpush1.bf16.msra.mxu0 %v2888
  %2899 = vmatprep.subr.bf16.mxu0 0
  %2900 = vmatpush1.bf16.msra.mxu0 %v2887
  %2901 = vmatprep.subr.bf16.mxu0 0
  %2902 = vmatpush1.bf16.msra.mxu0 %v2886
  %2903 = vmatprep.subr.bf16.mxu0 0
  %2904 = vmatpush1.bf16.msra.mxu0 %v2885
  %2905 = vmatprep.subr.bf16.mxu0 0
  %2906 = vmatpush1.bf16.msra.mxu0 %v2884
  %2907 = vmatprep.subr.bf16.mxu0 0
  %2908 = vmatpush1.bf16.msra.mxu0 %v2883
  %2909 = vmatprep.subr.bf16.mxu0 0
  %2910 = vmatpush1.bf16.msra.mxu0 %v2882
  %2911 = vmatprep.subr.bf16.mxu0 0
  %2912 = vmatpush1.bf16.msra.mxu0 %v2881
  %2913 = vmatprep.subr.bf16.mxu0 0
  %2914 = vmatpush2.bf16.msra.mxu0 0
  %2915 = vmatprep.subr.bf16.mxu0 0
  %2916 = vmatpush2.bf16.msra.mxu0 0
  %2917 = vmatprep.subr.bf16.mxu0 0
  %2918 = vmatpush2.bf16.msra.mxu0 0
  %2919 = vmatprep.subr.bf16.mxu0 0
  %2920 = vmatpush2.bf16.msra.mxu0 0
  %2921 = vmatprep.subr.bf16.mxu0 0
  %2922 = vmatpush2.bf16.msra.mxu0 0
  %2923 = vmatprep.subr.bf16.mxu0 0
  %2924 = vmatpush2.bf16.msra.mxu0 0
  %2925 = vmatprep.subr.bf16.mxu0 0
  %2926 = vmatpush2.bf16.msra.mxu0 0
  %2927 = vmatprep.subr.bf16.mxu0 0
  %2928 = vmatpush2.bf16.msra.mxu0 0
  %2929 = vmatprep.mubr.bf16.mxu0 0
  %2930 = vmatmul.mubr.bf16.gmra.mxu0 %v2846
  %v2931 = vpop.f32.mrf.mxu0
  %v2932 = vadd.f32 0.0, %v2931
  %v2933 = vpop.f32.mrf.mxu0
  %v2934 = vpop.f32.mrf.mxu0
  %v2935 = vadd.f32 0.0, %v2934
  %v2936 = vpop.f32.mrf.mxu0
  %2937 = vmatprep.mubr.bf16.mxu0 0
  %2938 = vmatmul.mubr.bf16.gmra.mxu0 %v2845
  %v2939 = vpop.f32.mrf.mxu0
  %v2940 = vadd.f32 0.0, %v2939
  %v2941 = vpop.f32.mrf.mxu0
  %v2942 = vpop.f32.mrf.mxu0
  %v2943 = vpop.f32.mrf.mxu0
  %2944 = vdwg.mxu0
  %v2945 = vadd.f32 %v2817, %v2932
  %v2946 = vadd.f32 %v2818, %v2935
  %v2947 = vadd.f32 %v2819, %v2940
  %v2948 = vld [vmem:[%s2421 + $0xc] sm:$0xf]
  %v2949 = vld [vmem:[%s567] sm:$0xf]
  %v2950 = vld [vmem:[%s567 + $0x4] sm:$0xf]
  %v2951 = vld [vmem:[%s567 + $0x8] sm:$0xf]
  %v2952 = vld [vmem:[%s567 + $0xc] sm:$0xf]
  %v2953 = vld [vmem:[%s567 + $0x10] sm:$0xf]
  %v2954 = vld [vmem:[%s567 + $0x14] sm:$0xf]
  %v2955 = vld [vmem:[%s567 + $0x18] sm:$0xf]
  %v2956 = vld [vmem:[%s567 + $0x1c] sm:$0xf]
  %v2957 = vld [vmem:[%s567 + $0x20] sm:$0xf]
  %v2958 = vld [vmem:[%s567 + $0x24] sm:$0xf]
  %v2959 = vld [vmem:[%s567 + $0x28] sm:$0xf]
  %v2960 = vld [vmem:[%s567 + $0x2c] sm:$0xf]
  %v2961 = vld [vmem:[%s567 + $0x30] sm:$0xf]
  %v2962 = vld [vmem:[%s567 + $0x34] sm:$0xf]
  %v2963 = vld [vmem:[%s567 + $0x38] sm:$0xf]
  %v2964 = vld [vmem:[%s567 + $0x3c] sm:$0xf]
  %v2966 = vunpack.c.l.b16 %v2948
  %v2967 = vpack.c.b16 %v2966, %v2576
  %v2969 = vshrl.u32 %v2842, 16
  %v2971 = vrot.slane %v2969, 3
  %v2972 = vshll.u32 %v2842, 16
  %v2974 = vrot.slane %v2972, 4
  %v2975 = vor.u32 %v2971, %v2974
  %v2977 = vshrl.u32 %v2967, 16
  %v2979 = vrot.slane %v2977, 3
  %v2980 = vshll.u32 %v2967, 16
  %v2982 = vrot.slane %v2980, 4
  %v2983 = vor.u32 %v2979, %v2982
  %v2984 = vsel %vm587, %v2975, %v2983
  %v3003 = vunpack.c.l.b16 %v2949
  %v3004 = vunpack.c.l.b16 %v2950
  %v3005 = vunpack.c.l.b16 %v2951
  %v3006 = vunpack.c.l.b16 %v2952
  %v3007 = vunpack.c.l.b16 %v2953
  %v3008 = vunpack.c.l.b16 %v2954
  %v3009 = vunpack.c.l.b16 %v2955
  %v3010 = vunpack.c.l.b16 %v2956
  %v3011 = vunpack.c.l.b16 %v2957
  %v3012 = vunpack.c.l.b16 %v2958
  %v3013 = vunpack.c.l.b16 %v2959
  %v3014 = vunpack.c.l.b16 %v2960
  %v3015 = vunpack.c.l.b16 %v2961
  %v3016 = vunpack.c.l.b16 %v2962
  %v3017 = vunpack.c.l.b16 %v2963
  %v3018 = vunpack.c.l.b16 %v2964
  %v3019 = vpack.c.b16 %v3004, %v3003
  %v3020 = vpack.c.b16 %v3006, %v3005
  %v3021 = vpack.c.b16 %v3008, %v3007
  %v3022 = vpack.c.b16 %v3010, %v3009
  %v3023 = vpack.c.b16 %v3012, %v3011
  %v3024 = vpack.c.b16 %v3014, %v3013
  %v3025 = vpack.c.b16 %v3016, %v3015
  %v3026 = vpack.c.b16 %v3018, %v3017
  %3035 = vmatprep.subr.bf16.mxu0 0
  %3036 = vmatpush1.bf16.msra.mxu0 %v3026
  %3037 = vmatprep.subr.bf16.mxu0 0
  %3038 = vmatpush1.bf16.msra.mxu0 %v3025
  %3039 = vmatprep.subr.bf16.mxu0 0
  %3040 = vmatpush1.bf16.msra.mxu0 %v3024
  %3041 = vmatprep.subr.bf16.mxu0 0
  %3042 = vmatpush1.bf16.msra.mxu0 %v3023
  %3043 = vmatprep.subr.bf16.mxu0 0
  %3044 = vmatpush1.bf16.msra.mxu0 %v3022
  %3045 = vmatprep.subr.bf16.mxu0 0
  %3046 = vmatpush1.bf16.msra.mxu0 %v3021
  %3047 = vmatprep.subr.bf16.mxu0 0
  %3048 = vmatpush1.bf16.msra.mxu0 %v3020
  %3049 = vmatprep.subr.bf16.mxu0 0
  %3050 = vmatpush1.bf16.msra.mxu0 %v3019
  %3051 = vmatprep.subr.bf16.mxu0 0
  %3052 = vmatpush2.bf16.msra.mxu0 0
  %3053 = vmatprep.subr.bf16.mxu0 0
  %3054 = vmatpush2.bf16.msra.mxu0 0
  %3055 = vmatprep.subr.bf16.mxu0 0
  %3056 = vmatpush2.bf16.msra.mxu0 0
  %3057 = vmatprep.subr.bf16.mxu0 0
  %3058 = vmatpush2.bf16.msra.mxu0 0
  %3059 = vmatprep.subr.bf16.mxu0 0
  %3060 = vmatpush2.bf16.msra.mxu0 0
  %3061 = vmatprep.subr.bf16.mxu0 0
  %3062 = vmatpush2.bf16.msra.mxu0 0
  %3063 = vmatprep.subr.bf16.mxu0 0
  %3064 = vmatpush2.bf16.msra.mxu0 0
  %3065 = vmatprep.subr.bf16.mxu0 0
  %3066 = vmatpush2.bf16.msra.mxu0 0
  %3067 = vmatprep.mubr.bf16.mxu0 0
  %3068 = vmatmul.mubr.bf16.gmra.mxu0 %v2984
  %v3069 = vpop.f32.mrf.mxu0
  %v3070 = vadd.f32 0.0, %v3069
  %v3071 = vpop.f32.mrf.mxu0
  %v3072 = vpop.f32.mrf.mxu0
  %v3073 = vadd.f32 0.0, %v3072
  %v3074 = vpop.f32.mrf.mxu0
  %3075 = vmatprep.mubr.bf16.mxu0 0
  %3076 = vmatmul.mubr.bf16.gmra.mxu0 %v2983
  %v3077 = vpop.f32.mrf.mxu0
  %v3078 = vadd.f32 0.0, %v3077
  %v3079 = vpop.f32.mrf.mxu0
  %v3080 = vpop.f32.mrf.mxu0
  %v3081 = vpop.f32.mrf.mxu0
  %3082 = vdwg.mxu0
  %v3083 = vadd.f32 %v2945, %v3070
  %v3084 = vadd.f32 %v2946, %v3073
  %v3085 = vadd.f32 %v2947, %v3078
  %v3086 = vld [vmem:[%s706] sm:$0xf]
  %v3087 = vld [vmem:[%s706 + $0x4] sm:$0xf]
  %v3088 = vld [vmem:[%s706 + $0x8] sm:$0xf]
  %v3089 = vld [vmem:[%s706 + $0xc] sm:$0xf]
  %v3090 = vld [vmem:[%s706 + $0x10] sm:$0xf]
  %v3091 = vld [vmem:[%s706 + $0x14] sm:$0xf]
  %v3092 = vld [vmem:[%s706 + $0x18] sm:$0xf]
  %v3093 = vld [vmem:[%s706 + $0x1c] sm:$0xf]
  %v3094 = vld [vmem:[%s706 + $0x20] sm:$0xf]
  %v3095 = vld [vmem:[%s706 + $0x24] sm:$0xf]
  %v3096 = vld [vmem:[%s706 + $0x28] sm:$0xf]
  %v3097 = vld [vmem:[%s706 + $0x2c] sm:$0xf]
  %v3098 = vld [vmem:[%s706 + $0x30] sm:$0xf]
  %v3099 = vld [vmem:[%s706 + $0x34] sm:$0xf]
  %v3100 = vld [vmem:[%s706 + $0x38] sm:$0xf]
  %v3101 = vld [vmem:[%s706 + $0x3c] sm:$0xf]
  %v3102 = vpack.c.b16 %v2576, %v2575
  %v3103 = vpack.c.b16 %v2966, %v2966
  %v3122 = vunpack.c.l.b16 %v3086
  %v3123 = vunpack.c.l.b16 %v3087
  %v3124 = vunpack.c.l.b16 %v3088
  %v3125 = vunpack.c.l.b16 %v3089
  %v3126 = vunpack.c.l.b16 %v3090
  %v3127 = vunpack.c.l.b16 %v3091
  %v3128 = vunpack.c.l.b16 %v3092
  %v3129 = vunpack.c.l.b16 %v3093
  %v3130 = vunpack.c.l.b16 %v3094
  %v3131 = vunpack.c.l.b16 %v3095
  %v3132 = vunpack.c.l.b16 %v3096
  %v3133 = vunpack.c.l.b16 %v3097
  %v3134 = vunpack.c.l.b16 %v3098
  %v3135 = vunpack.c.l.b16 %v3099
  %v3136 = vunpack.c.l.b16 %v3100
  %v3137 = vunpack.c.l.b16 %v3101
  %v3138 = vpack.c.b16 %v3123, %v3122
  %v3139 = vpack.c.b16 %v3125, %v3124
  %v3140 = vpack.c.b16 %v3127, %v3126
  %v3141 = vpack.c.b16 %v3129, %v3128
  %v3142 = vpack.c.b16 %v3131, %v3130
  %v3143 = vpack.c.b16 %v3133, %v3132
  %v3144 = vpack.c.b16 %v3135, %v3134
  %v3145 = vpack.c.b16 %v3137, %v3136
  %3154 = vmatprep.subr.bf16.mxu0 0
  %3155 = vmatpush1.bf16.msra.mxu0 %v3145
  %3156 = vmatprep.subr.bf16.mxu0 0
  %3157 = vmatpush1.bf16.msra.mxu0 %v3144
  %3158 = vmatprep.subr.bf16.mxu0 0
  %3159 = vmatpush1.bf16.msra.mxu0 %v3143
  %3160 = vmatprep.subr.bf16.mxu0 0
  %3161 = vmatpush1.bf16.msra.mxu0 %v3142
  %3162 = vmatprep.subr.bf16.mxu0 0
  %3163 = vmatpush1.bf16.msra.mxu0 %v3141
  %3164 = vmatprep.subr.bf16.mxu0 0
  %3165 = vmatpush1.bf16.msra.mxu0 %v3140
  %3166 = vmatprep.subr.bf16.mxu0 0
  %3167 = vmatpush1.bf16.msra.mxu0 %v3139
  %3168 = vmatprep.subr.bf16.mxu0 0
  %3169 = vmatpush1.bf16.msra.mxu0 %v3138
  %3170 = vmatprep.subr.bf16.mxu0 0
  %3171 = vmatpush2.bf16.msra.mxu0 0
  %3172 = vmatprep.subr.bf16.mxu0 0
  %3173 = vmatpush2.bf16.msra.mxu0 0
  %3174 = vmatprep.subr.bf16.mxu0 0
  %3175 = vmatpush2.bf16.msra.mxu0 0
  %3176 = vmatprep.subr.bf16.mxu0 0
  %3177 = vmatpush2.bf16.msra.mxu0 0
  %3178 = vmatprep.subr.bf16.mxu0 0
  %3179 = vmatpush2.bf16.msra.mxu0 0
  %3180 = vmatprep.subr.bf16.mxu0 0
  %3181 = vmatpush2.bf16.msra.mxu0 0
  %3182 = vmatprep.subr.bf16.mxu0 0
  %3183 = vmatpush2.bf16.msra.mxu0 0
  %3184 = vmatprep.subr.bf16.mxu0 0
  %3185 = vmatpush2.bf16.msra.mxu0 0
  %3186 = vmatprep.mubr.bf16.mxu0 0
  %3187 = vmatmul.mubr.bf16.gmra.mxu0 %v3102
  %v3188 = vpop.f32.mrf.mxu0
  %v3189 = vadd.f32 0.0, %v3188
  %v3190 = vpop.f32.mrf.mxu0
  %v3191 = vpop.f32.mrf.mxu0
  %v3192 = vadd.f32 0.0, %v3191
  %v3193 = vpop.f32.mrf.mxu0
  %3194 = vmatprep.mubr.bf16.mxu0 0
  %3195 = vmatmul.mubr.bf16.gmra.mxu0 %v3103
  %v3196 = vpop.f32.mrf.mxu0
  %v3197 = vadd.f32 0.0, %v3196
  %v3198 = vpop.f32.mrf.mxu0
  %v3199 = vpop.f32.mrf.mxu0
  %v3200 = vpop.f32.mrf.mxu0
  %3201 = vdwg.mxu0
  %v3202 = vadd.f32 %v3083, %v3189
  %v3203 = vadd.f32 %v3084, %v3192
  %v3204 = vadd.f32 %v3085, %v3197
  %v3205 = vld [vmem:[%s2421 + $0x4] sm:$0xc]
  %v3206 = vld [vmem:[%s2421 + $0x8] sm:$0xf]
  %v3207 = vld [vmem:[%s2421 + $0xc] sm:$0xf]
  %v3208 = vld [vmem:[%s2421 + $0x10] sm:$0x3]
  %v3209 = vld [vmem:[%s830] sm:$0xf]
  %v3210 = vld [vmem:[%s830 + $0x4] sm:$0xf]
  %v3211 = vld [vmem:[%s830 + $0x8] sm:$0xf]
  %v3212 = vld [vmem:[%s830 + $0xc] sm:$0xf]
  %v3213 = vld [vmem:[%s830 + $0x10] sm:$0xf]
  %v3214 = vld [vmem:[%s830 + $0x14] sm:$0xf]
  %v3215 = vld [vmem:[%s830 + $0x18] sm:$0xf]
  %v3216 = vld [vmem:[%s830 + $0x1c] sm:$0xf]
  %v3217 = vld [vmem:[%s830 + $0x20] sm:$0xf]
  %v3218 = vld [vmem:[%s830 + $0x24] sm:$0xf]
  %v3219 = vld [vmem:[%s830 + $0x28] sm:$0xf]
  %v3220 = vld [vmem:[%s830 + $0x2c] sm:$0xf]
  %v3221 = vld [vmem:[%s830 + $0x30] sm:$0xf]
  %v3222 = vld [vmem:[%s830 + $0x34] sm:$0xf]
  %v3223 = vld [vmem:[%s830 + $0x38] sm:$0xf]
  %v3224 = vld [vmem:[%s830 + $0x3c] sm:$0xf]
  %v3229 = vunpack.c.l.b16 %v3205
  %v3230 = vunpack.c.l.b16 %v3206
  %v3231 = vunpack.c.l.b16 %v3207
  %v3232 = vunpack.c.l.b16 %v3208
  %v3233 = vpack.c.b16 %v3230, %v3229
  %v3234 = vpack.c.b16 %v3232, %v3231
  %v3235 = vrot.slane %v3233, 2
  %v3236 = vrot.slane %v3234, 2
  %v3237 = vsel %vm857, %v3235, %v3236
  %v3256 = vunpack.c.l.b16 %v3209
  %v3257 = vunpack.c.l.b16 %v3210
  %v3258 = vunpack.c.l.b16 %v3211
  %v3259 = vunpack.c.l.b16 %v3212
  %v3260 = vunpack.c.l.b16 %v3213
  %v3261 = vunpack.c.l.b16 %v3214
  %v3262 = vunpack.c.l.b16 %v3215
  %v3263 = vunpack.c.l.b16 %v3216
  %v3264 = vunpack.c.l.b16 %v3217
  %v3265 = vunpack.c.l.b16 %v3218
  %v3266 = vunpack.c.l.b16 %v3219
  %v3267 = vunpack.c.l.b16 %v3220
  %v3268 = vunpack.c.l.b16 %v3221
  %v3269 = vunpack.c.l.b16 %v3222
  %v3270 = vunpack.c.l.b16 %v3223
  %v3271 = vunpack.c.l.b16 %v3224
  %v3272 = vpack.c.b16 %v3257, %v3256
  %v3273 = vpack.c.b16 %v3259, %v3258
  %v3274 = vpack.c.b16 %v3261, %v3260
  %v3275 = vpack.c.b16 %v3263, %v3262
  %v3276 = vpack.c.b16 %v3265, %v3264
  %v3277 = vpack.c.b16 %v3267, %v3266
  %v3278 = vpack.c.b16 %v3269, %v3268
  %v3279 = vpack.c.b16 %v3271, %v3270
  %3288 = vmatprep.subr.bf16.mxu0 0
  %3289 = vmatpush1.bf16.msra.mxu0 %v3279
  %3290 = vmatprep.subr.bf16.mxu0 0
  %3291 = vmatpush1.bf16.msra.mxu0 %v3278
  %3292 = vmatprep.subr.bf16.mxu0 0
  %3293 = vmatpush1.bf16.msra.mxu0 %v3277
  %3294 = vmatprep.subr.bf16.mxu0 0
  %3295 = vmatpush1.bf16.msra.mxu0 %v3276
  %3296 = vmatprep.subr.bf16.mxu0 0
  %3297 = vmatpush1.bf16.msra.mxu0 %v3275
  %3298 = vmatprep.subr.bf16.mxu0 0
  %3299 = vmatpush1.bf16.msra.mxu0 %v3274
  %3300 = vmatprep.subr.bf16.mxu0 0
  %3301 = vmatpush1.bf16.msra.mxu0 %v3273
  %3302 = vmatprep.subr.bf16.mxu0 0
  %3303 = vmatpush1.bf16.msra.mxu0 %v3272
  %3304 = vmatprep.subr.bf16.mxu0 0
  %3305 = vmatpush2.bf16.msra.mxu0 0
  %3306 = vmatprep.subr.bf16.mxu0 0
  %3307 = vmatpush2.bf16.msra.mxu0 0
  %3308 = vmatprep.subr.bf16.mxu0 0
  %3309 = vmatpush2.bf16.msra.mxu0 0
  %3310 = vmatprep.subr.bf16.mxu0 0
  %3311 = vmatpush2.bf16.msra.mxu0 0
  %3312 = vmatprep.subr.bf16.mxu0 0
  %3313 = vmatpush2.bf16.msra.mxu0 0
  %3314 = vmatprep.subr.bf16.mxu0 0
  %3315 = vmatpush2.bf16.msra.mxu0 0
  %3316 = vmatprep.subr.bf16.mxu0 0
  %3317 = vmatpush2.bf16.msra.mxu0 0
  %3318 = vmatprep.subr.bf16.mxu0 0
  %3319 = vmatpush2.bf16.msra.mxu0 0
  %3320 = vmatprep.mubr.bf16.mxu0 0
  %3321 = vmatmul.mubr.bf16.gmra.mxu0 %v3237
  %v3322 = vpop.f32.mrf.mxu0
  %v3323 = vadd.f32 0.0, %v3322
  %v3324 = vpop.f32.mrf.mxu0
  %v3325 = vpop.f32.mrf.mxu0
  %v3326 = vadd.f32 0.0, %v3325
  %v3327 = vpop.f32.mrf.mxu0
  %3328 = vmatprep.mubr.bf16.mxu0 0
  %3329 = vmatmul.mubr.bf16.gmra.mxu0 %v3236
  %v3330 = vpop.f32.mrf.mxu0
  %v3331 = vadd.f32 0.0, %v3330
  %v3332 = vpop.f32.mrf.mxu0
  %v3333 = vpop.f32.mrf.mxu0
  %v3334 = vpop.f32.mrf.mxu0
  %3335 = vdwg.mxu0
  %v3336 = vadd.f32 %v3202, %v3323
  %v3337 = vadd.f32 %v3203, %v3326
  %v3338 = vadd.f32 %v3204, %v3331
  %v3339 = vld [vmem:[%s2421 + $0x10] sm:$0x7]
  %v3340 = vld [vmem:[%s963] sm:$0xf]
  %v3341 = vld [vmem:[%s963 + $0x4] sm:$0xf]
  %v3342 = vld [vmem:[%s963 + $0x8] sm:$0xf]
  %v3343 = vld [vmem:[%s963 + $0xc] sm:$0xf]
  %v3344 = vld [vmem:[%s963 + $0x10] sm:$0xf]
  %v3345 = vld [vmem:[%s963 + $0x14] sm:$0xf]
  %v3346 = vld [vmem:[%s963 + $0x18] sm:$0xf]
  %v3347 = vld [vmem:[%s963 + $0x1c] sm:$0xf]
  %v3348 = vld [vmem:[%s963 + $0x20] sm:$0xf]
  %v3349 = vld [vmem:[%s963 + $0x24] sm:$0xf]
  %v3350 = vld [vmem:[%s963 + $0x28] sm:$0xf]
  %v3351 = vld [vmem:[%s963 + $0x2c] sm:$0xf]
  %v3352 = vld [vmem:[%s963 + $0x30] sm:$0xf]
  %v3353 = vld [vmem:[%s963 + $0x34] sm:$0xf]
  %v3354 = vld [vmem:[%s963 + $0x38] sm:$0xf]
  %v3355 = vld [vmem:[%s963 + $0x3c] sm:$0xf]
  %v3357 = vunpack.c.l.b16 %v3339
  %v3358 = vpack.c.b16 %v3357, %v3231
  %v3360 = vshrl.u32 %v3233, 16
  %v3362 = vrot.slane %v3360, 2
  %v3363 = vshll.u32 %v3233, 16
  %v3365 = vrot.slane %v3363, 3
  %v3366 = vor.u32 %v3362, %v3365
  %v3368 = vshrl.u32 %v3358, 16
  %v3370 = vrot.slane %v3368, 2
  %v3371 = vshll.u32 %v3358, 16
  %v3373 = vrot.slane %v3371, 3
  %v3374 = vor.u32 %v3370, %v3373
  %v3375 = vsel %vm983, %v3366, %v3374
  %v3394 = vunpack.c.l.b16 %v3340
  %v3395 = vunpack.c.l.b16 %v3341
  %v3396 = vunpack.c.l.b16 %v3342
  %v3397 = vunpack.c.l.b16 %v3343
  %v3398 = vunpack.c.l.b16 %v3344
  %v3399 = vunpack.c.l.b16 %v3345
  %v3400 = vunpack.c.l.b16 %v3346
  %v3401 = vunpack.c.l.b16 %v3347
  %v3402 = vunpack.c.l.b16 %v3348
  %v3403 = vunpack.c.l.b16 %v3349
  %v3404 = vunpack.c.l.b16 %v3350
  %v3405 = vunpack.c.l.b16 %v3351
  %v3406 = vunpack.c.l.b16 %v3352
  %v3407 = vunpack.c.l.b16 %v3353
  %v3408 = vunpack.c.l.b16 %v3354
  %v3409 = vunpack.c.l.b16 %v3355
  %v3410 = vpack.c.b16 %v3395, %v3394
  %v3411 = vpack.c.b16 %v3397, %v3396
  %v3412 = vpack.c.b16 %v3399, %v3398
  %v3413 = vpack.c.b16 %v3401, %v3400
  %v3414 = vpack.c.b16 %v3403, %v3402
  %v3415 = vpack.c.b16 %v3405, %v3404
  %v3416 = vpack.c.b16 %v3407, %v3406
  %v3417 = vpack.c.b16 %v3409, %v3408
  %3426 = vmatprep.subr.bf16.mxu0 0
  %3427 = vmatpush1.bf16.msra.mxu0 %v3417
  %3428 = vmatprep.subr.bf16.mxu0 0
  %3429 = vmatpush1.bf16.msra.mxu0 %v3416
  %3430 = vmatprep.subr.bf16.mxu0 0
  %3431 = vmatpush1.bf16.msra.mxu0 %v3415
  %3432 = vmatprep.subr.bf16.mxu0 0
  %3433 = vmatpush1.bf16.msra.mxu0 %v3414
  %3434 = vmatprep.subr.bf16.mxu0 0
  %3435 = vmatpush1.bf16.msra.mxu0 %v3413
  %3436 = vmatprep.subr.bf16.mxu0 0
  %3437 = vmatpush1.bf16.msra.mxu0 %v3412
  %3438 = vmatprep.subr.bf16.mxu0 0
  %3439 = vmatpush1.bf16.msra.mxu0 %v3411
  %3440 = vmatprep.subr.bf16.mxu0 0
  %3441 = vmatpush1.bf16.msra.mxu0 %v3410
  %3442 = vmatprep.subr.bf16.mxu0 0
  %3443 = vmatpush2.bf16.msra.mxu0 0
  %3444 = vmatprep.subr.bf16.mxu0 0
  %3445 = vmatpush2.bf16.msra.mxu0 0
  %3446 = vmatprep.subr.bf16.mxu0 0
  %3447 = vmatpush2.bf16.msra.mxu0 0
  %3448 = vmatprep.subr.bf16.mxu0 0
  %3449 = vmatpush2.bf16.msra.mxu0 0
  %3450 = vmatprep.subr.bf16.mxu0 0
  %3451 = vmatpush2.bf16.msra.mxu0 0
  %3452 = vmatprep.subr.bf16.mxu0 0
  %3453 = vmatpush2.bf16.msra.mxu0 0
  %3454 = vmatprep.subr.bf16.mxu0 0
  %3455 = vmatpush2.bf16.msra.mxu0 0
  %3456 = vmatprep.subr.bf16.mxu0 0
  %3457 = vmatpush2.bf16.msra.mxu0 0
  %3458 = vmatprep.mubr.bf16.mxu0 0
  %3459 = vmatmul.mubr.bf16.gmra.mxu0 %v3375
  %v3460 = vpop.f32.mrf.mxu0
  %v3461 = vadd.f32 0.0, %v3460
  %v3462 = vpop.f32.mrf.mxu0
  %v3463 = vpop.f32.mrf.mxu0
  %v3464 = vadd.f32 0.0, %v3463
  %v3465 = vpop.f32.mrf.mxu0
  %3466 = vmatprep.mubr.bf16.mxu0 0
  %3467 = vmatmul.mubr.bf16.gmra.mxu0 %v3374
  %v3468 = vpop.f32.mrf.mxu0
  %v3469 = vadd.f32 0.0, %v3468
  %v3470 = vpop.f32.mrf.mxu0
  %v3471 = vpop.f32.mrf.mxu0
  %v3472 = vpop.f32.mrf.mxu0
  %3473 = vdwg.mxu0
  %v3474 = vadd.f32 %v3336, %v3461
  %v3475 = vadd.f32 %v3337, %v3464
  %v3476 = vadd.f32 %v3338, %v3469
  %v3477 = vld [vmem:[%s2421 + $0x4] sm:$0x8]
  %v3478 = vld [vmem:[%s1103] sm:$0xf]
  %v3479 = vld [vmem:[%s1103 + $0x4] sm:$0xf]
  %v3480 = vld [vmem:[%s1103 + $0x8] sm:$0xf]
  %v3481 = vld [vmem:[%s1103 + $0xc] sm:$0xf]
  %v3482 = vld [vmem:[%s1103 + $0x10] sm:$0xf]
  %v3483 = vld [vmem:[%s1103 + $0x14] sm:$0xf]
  %v3484 = vld [vmem:[%s1103 + $0x18] sm:$0xf]
  %v3485 = vld [vmem:[%s1103 + $0x1c] sm:$0xf]
  %v3486 = vld [vmem:[%s1103 + $0x20] sm:$0xf]
  %v3487 = vld [vmem:[%s1103 + $0x24] sm:$0xf]
  %v3488 = vld [vmem:[%s1103 + $0x28] sm:$0xf]
  %v3489 = vld [vmem:[%s1103 + $0x2c] sm:$0xf]
  %v3490 = vld [vmem:[%s1103 + $0x30] sm:$0xf]
  %v3491 = vld [vmem:[%s1103 + $0x34] sm:$0xf]
  %v3492 = vld [vmem:[%s1103 + $0x38] sm:$0xf]
  %v3493 = vld [vmem:[%s1103 + $0x3c] sm:$0xf]
  %v3495 = vunpack.c.l.b16 %v3477
  %v3496 = vpack.c.b16 %v3230, %v3495
  %v3497 = vrot.slane %v3496, 3
  %v3498 = vrot.slane %v3358, 3
  %v3499 = vsel %vm461, %v3497, %v3498
  %v3518 = vunpack.c.l.b16 %v3478
  %v3519 = vunpack.c.l.b16 %v3479
  %v3520 = vunpack.c.l.b16 %v3480
  %v3521 = vunpack.c.l.b16 %v3481
  %v3522 = vunpack.c.l.b16 %v3482
  %v3523 = vunpack.c.l.b16 %v3483
  %v3524 = vunpack.c.l.b16 %v3484
  %v3525 = vunpack.c.l.b16 %v3485
  %v3526 = vunpack.c.l.b16 %v3486
  %v3527 = vunpack.c.l.b16 %v3487
  %v3528 = vunpack.c.l.b16 %v3488
  %v3529 = vunpack.c.l.b16 %v3489
  %v3530 = vunpack.c.l.b16 %v3490
  %v3531 = vunpack.c.l.b16 %v3491
  %v3532 = vunpack.c.l.b16 %v3492
  %v3533 = vunpack.c.l.b16 %v3493
  %v3534 = vpack.c.b16 %v3519, %v3518
  %v3535 = vpack.c.b16 %v3521, %v3520
  %v3536 = vpack.c.b16 %v3523, %v3522
  %v3537 = vpack.c.b16 %v3525, %v3524
  %v3538 = vpack.c.b16 %v3527, %v3526
  %v3539 = vpack.c.b16 %v3529, %v3528
  %v3540 = vpack.c.b16 %v3531, %v3530
  %v3541 = vpack.c.b16 %v3533, %v3532
  %3550 = vmatprep.subr.bf16.mxu0 0
  %3551 = vmatpush1.bf16.msra.mxu0 %v3541
  %3552 = vmatprep.subr.bf16.mxu0 0
  %3553 = vmatpush1.bf16.msra.mxu0 %v3540
  %3554 = vmatprep.subr.bf16.mxu0 0
  %3555 = vmatpush1.bf16.msra.mxu0 %v3539
  %3556 = vmatprep.subr.bf16.mxu0 0
  %3557 = vmatpush1.bf16.msra.mxu0 %v3538
  %3558 = vmatprep.subr.bf16.mxu0 0
  %3559 = vmatpush1.bf16.msra.mxu0 %v3537
  %3560 = vmatprep.subr.bf16.mxu0 0
  %3561 = vmatpush1.bf16.msra.mxu0 %v3536
  %3562 = vmatprep.subr.bf16.mxu0 0
  %3563 = vmatpush1.bf16.msra.mxu0 %v3535
  %3564 = vmatprep.subr.bf16.mxu0 0
  %3565 = vmatpush1.bf16.msra.mxu0 %v3534
  %3566 = vmatprep.subr.bf16.mxu0 0
  %3567 = vmatpush2.bf16.msra.mxu0 0
  %3568 = vmatprep.subr.bf16.mxu0 0
  %3569 = vmatpush2.bf16.msra.mxu0 0
  %3570 = vmatprep.subr.bf16.mxu0 0
  %3571 = vmatpush2.bf16.msra.mxu0 0
  %3572 = vmatprep.subr.bf16.mxu0 0
  %3573 = vmatpush2.bf16.msra.mxu0 0
  %3574 = vmatprep.subr.bf16.mxu0 0
  %3575 = vmatpush2.bf16.msra.mxu0 0
  %3576 = vmatprep.subr.bf16.mxu0 0
  %3577 = vmatpush2.bf16.msra.mxu0 0
  %3578 = vmatprep.subr.bf16.mxu0 0
  %3579 = vmatpush2.bf16.msra.mxu0 0
  %3580 = vmatprep.subr.bf16.mxu0 0
  %3581 = vmatpush2.bf16.msra.mxu0 0
  %3582 = vmatprep.mubr.bf16.mxu0 0
  %3583 = vmatmul.mubr.bf16.gmra.mxu0 %v3499
  %v3584 = vpop.f32.mrf.mxu0
  %v3585 = vadd.f32 0.0, %v3584
  %v3586 = vpop.f32.mrf.mxu0
  %v3587 = vpop.f32.mrf.mxu0
  %v3588 = vadd.f32 0.0, %v3587
  %v3589 = vpop.f32.mrf.mxu0
  %3590 = vmatprep.mubr.bf16.mxu0 0
  %3591 = vmatmul.mubr.bf16.gmra.mxu0 %v3498
  %v3592 = vpop.f32.mrf.mxu0
  %v3593 = vadd.f32 0.0, %v3592
  %v3594 = vpop.f32.mrf.mxu0
  %v3595 = vpop.f32.mrf.mxu0
  %v3596 = vpop.f32.mrf.mxu0
  %3597 = vdwg.mxu0
  %v3598 = vadd.f32 %v3474, %v3585
  %v3599 = vadd.f32 %v3475, %v3588
  %v3600 = vadd.f32 %v3476, %v3593
  %3601 = vst [vmem:[%s2417] sm:$0xff] %v3598
  %3602 = vst [vmem:[%s2417 + $0x8] sm:$0xff] %v3599
  %3603 = vst [vmem:[%s2417 + $0x10] sm:$0xff] %v3600
  %s3604 = scalar_lea.vmem [#allocation2], 72
  %v3605 = vld [vmem:[%s3604] sm:$0xff]
  %v3606 = vld [vmem:[%s3604 + $0x8] sm:$0xff]
  %v3607 = vld [vmem:[%s3604 + $0x10] sm:$0xff]
  %s3608 = scalar_lea.vmem %s0, 72
  %v3609 = vld [vmem:[%s3608] sm:$0xf]
  %v3610 = vld [vmem:[%s3608 + $0x4] sm:$0xf]
  %v3611 = vld [vmem:[%s3608 + $0x8] sm:$0xf]
  %v3612 = vld [vmem:[%s1] sm:$0xf]
  %v3613 = vld [vmem:[%s1 + $0x4] sm:$0xf]
  %v3614 = vld [vmem:[%s1 + $0x8] sm:$0xf]
  %v3615 = vld [vmem:[%s1 + $0xc] sm:$0xf]
  %v3616 = vld [vmem:[%s1 + $0x10] sm:$0xf]
  %v3617 = vld [vmem:[%s1 + $0x14] sm:$0xf]
  %v3618 = vld [vmem:[%s1 + $0x18] sm:$0xf]
  %v3619 = vld [vmem:[%s1 + $0x1c] sm:$0xf]
  %v3620 = vld [vmem:[%s1 + $0x20] sm:$0xf]
  %v3621 = vld [vmem:[%s1 + $0x24] sm:$0xf]
  %v3622 = vld [vmem:[%s1 + $0x28] sm:$0xf]
  %v3623 = vld [vmem:[%s1 + $0x2c] sm:$0xf]
  %v3624 = vld [vmem:[%s1 + $0x30] sm:$0xf]
  %v3625 = vld [vmem:[%s1 + $0x34] sm:$0xf]
  %v3626 = vld [vmem:[%s1 + $0x38] sm:$0xf]
  %v3627 = vld [vmem:[%s1 + $0x3c] sm:$0xf]
  %v3631 = vunpack.c.l.b16 %v3609
  %v3632 = vunpack.c.l.b16 %v3610
  %v3633 = vunpack.c.l.b16 %v3611
  %v3634 = vpack.c.b16 %v3632, %v3631
  %v3635 = vpack.c.b16 %v3633, %v3633
  %v3654 = vunpack.c.l.b16 %v3612
  %v3655 = vunpack.c.l.b16 %v3613
  %v3656 = vunpack.c.l.b16 %v3614
  %v3657 = vunpack.c.l.b16 %v3615
  %v3658 = vunpack.c.l.b16 %v3616
  %v3659 = vunpack.c.l.b16 %v3617
  %v3660 = vunpack.c.l.b16 %v3618
  %v3661 = vunpack.c.l.b16 %v3619
  %v3662 = vunpack.c.l.b16 %v3620
  %v3663 = vunpack.c.l.b16 %v3621
  %v3664 = vunpack.c.l.b16 %v3622
  %v3665 = vunpack.c.l.b16 %v3623
  %v3666 = vunpack.c.l.b16 %v3624
  %v3667 = vunpack.c.l.b16 %v3625
  %v3668 = vunpack.c.l.b16 %v3626
  %v3669 = vunpack.c.l.b16 %v3627
  %v3670 = vpack.c.b16 %v3655, %v3654
  %v3671 = vpack.c.b16 %v3657, %v3656
  %v3672 = vpack.c.b16 %v3659, %v3658
  %v3673 = vpack.c.b16 %v3661, %v3660
  %v3674 = vpack.c.b16 %v3663, %v3662
  %v3675 = vpack.c.b16 %v3665, %v3664
  %v3676 = vpack.c.b16 %v3667, %v3666
  %v3677 = vpack.c.b16 %v3669, %v3668
  %3686 = vmatprep.subr.bf16.mxu0 0
  %3687 = vmatpush1.bf16.msra.mxu0 %v3677
  %3688 = vmatprep.subr.bf16.mxu0 0
  %3689 = vmatpush1.bf16.msra.mxu0 %v3676
  %3690 = vmatprep.subr.bf16.mxu0 0
  %3691 = vmatpush1.bf16.msra.mxu0 %v3675
  %3692 = vmatprep.subr.bf16.mxu0 0
  %3693 = vmatpush1.bf16.msra.mxu0 %v3674
  %3694 = vmatprep.subr.bf16.mxu0 0
  %3695 = vmatpush1.bf16.msra.mxu0 %v3673
  %3696 = vmatprep.subr.bf16.mxu0 0
  %3697 = vmatpush1.bf16.msra.mxu0 %v3672
  %3698 = vmatprep.subr.bf16.mxu0 0
  %3699 = vmatpush1.bf16.msra.mxu0 %v3671
  %3700 = vmatprep.subr.bf16.mxu0 0
  %3701 = vmatpush1.bf16.msra.mxu0 %v3670
  %3702 = vmatprep.subr.bf16.mxu0 0
  %3703 = vmatpush2.bf16.msra.mxu0 0
  %3704 = vmatprep.subr.bf16.mxu0 0
  %3705 = vmatpush2.bf16.msra.mxu0 0
  %3706 = vmatprep.subr.bf16.mxu0 0
  %3707 = vmatpush2.bf16.msra.mxu0 0
  %3708 = vmatprep.subr.bf16.mxu0 0
  %3709 = vmatpush2.bf16.msra.mxu0 0
  %3710 = vmatprep.subr.bf16.mxu0 0
  %3711 = vmatpush2.bf16.msra.mxu0 0
  %3712 = vmatprep.subr.bf16.mxu0 0
  %3713 = vmatpush2.bf16.msra.mxu0 0
  %3714 = vmatprep.subr.bf16.mxu0 0
  %3715 = vmatpush2.bf16.msra.mxu0 0
  %3716 = vmatprep.subr.bf16.mxu0 0
  %3717 = vmatpush2.bf16.msra.mxu0 0
  %3718 = vmatprep.mubr.bf16.mxu0 0
  %3719 = vmatmul.mubr.bf16.gmra.mxu0 %v3634
  %v3720 = vpop.f32.mrf.mxu0
  %v3721 = vadd.f32 0.0, %v3720
  %v3722 = vpop.f32.mrf.mxu0
  %v3723 = vpop.f32.mrf.mxu0
  %v3724 = vadd.f32 0.0, %v3723
  %v3725 = vpop.f32.mrf.mxu0
  %3726 = vmatprep.mubr.bf16.mxu0 0
  %3727 = vmatmul.mubr.bf16.gmra.mxu0 %v3635
  %v3728 = vpop.f32.mrf.mxu0
  %v3729 = vadd.f32 0.0, %v3728
  %v3730 = vpop.f32.mrf.mxu0
  %v3731 = vpop.f32.mrf.mxu0
  %v3732 = vpop.f32.mrf.mxu0
  %3733 = vdwg.mxu0
  %v3734 = vadd.f32 %v3605, %v3721
  %v3735 = vadd.f32 %v3606, %v3724
  %v3736 = vadd.f32 %v3607, %v3729
  %v3737 = vld [vmem:[%s3608] sm:$0xf]
  %v3738 = vld [vmem:[%s3608 + $0x4] sm:$0xf]
  %v3739 = vld [vmem:[%s3608 + $0x8] sm:$0xf]
  %v3740 = vld [vmem:[%s3608 + $0xc] sm:$0x1]
  %v3741 = vld [vmem:[%s166] sm:$0xf]
  %v3742 = vld [vmem:[%s166 + $0x4] sm:$0xf]
  %v3743 = vld [vmem:[%s166 + $0x8] sm:$0xf]
  %v3744 = vld [vmem:[%s166 + $0xc] sm:$0xf]
  %v3745 = vld [vmem:[%s166 + $0x10] sm:$0xf]
  %v3746 = vld [vmem:[%s166 + $0x14] sm:$0xf]
  %v3747 = vld [vmem:[%s166 + $0x18] sm:$0xf]
  %v3748 = vld [vmem:[%s166 + $0x1c] sm:$0xf]
  %v3749 = vld [vmem:[%s166 + $0x20] sm:$0xf]
  %v3750 = vld [vmem:[%s166 + $0x24] sm:$0xf]
  %v3751 = vld [vmem:[%s166 + $0x28] sm:$0xf]
  %v3752 = vld [vmem:[%s166 + $0x2c] sm:$0xf]
  %v3753 = vld [vmem:[%s166 + $0x30] sm:$0xf]
  %v3754 = vld [vmem:[%s166 + $0x34] sm:$0xf]
  %v3755 = vld [vmem:[%s166 + $0x38] sm:$0xf]
  %v3756 = vld [vmem:[%s166 + $0x3c] sm:$0xf]
  %v3761 = vunpack.c.l.b16 %v3737
  %v3762 = vunpack.c.l.b16 %v3738
  %v3763 = vunpack.c.l.b16 %v3739
  %v3764 = vunpack.c.l.b16 %v3740
  %v3765 = vpack.c.b16 %v3762, %v3761
  %v3766 = vpack.c.b16 %v3764, %v3763
  %v3768 = vshrl.u32 %v3765, 16
  %v3770 = vshll.u32 %v3765, 16
  %v3772 = vrot.slane %v3770, 1
  %v3773 = vor.u32 %v3768, %v3772
  %v3775 = vshll.u32 %v3766, 16
  %v3777 = vrot.slane %v3775, 1
  %v3778 = vsel %vm193, %v3773, %v3777
  %v3779 = vshrl.u32 %v3766, 16
  %v3781 = vor.u32 %v3779, %v3777
  %v3800 = vunpack.c.l.b16 %v3741
  %v3801 = vunpack.c.l.b16 %v3742
  %v3802 = vunpack.c.l.b16 %v3743
  %v3803 = vunpack.c.l.b16 %v3744
  %v3804 = vunpack.c.l.b16 %v3745
  %v3805 = vunpack.c.l.b16 %v3746
  %v3806 = vunpack.c.l.b16 %v3747
  %v3807 = vunpack.c.l.b16 %v3748
  %v3808 = vunpack.c.l.b16 %v3749
  %v3809 = vunpack.c.l.b16 %v3750
  %v3810 = vunpack.c.l.b16 %v3751
  %v3811 = vunpack.c.l.b16 %v3752
  %v3812 = vunpack.c.l.b16 %v3753
  %v3813 = vunpack.c.l.b16 %v3754
  %v3814 = vunpack.c.l.b16 %v3755
  %v3815 = vunpack.c.l.b16 %v3756
  %v3816 = vpack.c.b16 %v3801, %v3800
  %v3817 = vpack.c.b16 %v3803, %v3802
  %v3818 = vpack.c.b16 %v3805, %v3804
  %v3819 = vpack.c.b16 %v3807, %v3806
  %v3820 = vpack.c.b16 %v3809, %v3808
  %v3821 = vpack.c.b16 %v3811, %v3810
  %v3822 = vpack.c.b16 %v3813, %v3812
  %v3823 = vpack.c.b16 %v3815, %v3814
  %3832 = vmatprep.subr.bf16.mxu0 0
  %3833 = vmatpush1.bf16.msra.mxu0 %v3823
  %3834 = vmatprep.subr.bf16.mxu0 0
  %3835 = vmatpush1.bf16.msra.mxu0 %v3822
  %3836 = vmatprep.subr.bf16.mxu0 0
  %3837 = vmatpush1.bf16.msra.mxu0 %v3821
  %3838 = vmatprep.subr.bf16.mxu0 0
  %3839 = vmatpush1.bf16.msra.mxu0 %v3820
  %3840 = vmatprep.subr.bf16.mxu0 0
  %3841 = vmatpush1.bf16.msra.mxu0 %v3819
  %3842 = vmatprep.subr.bf16.mxu0 0
  %3843 = vmatpush1.bf16.msra.mxu0 %v3818
  %3844 = vmatprep.subr.bf16.mxu0 0
  %3845 = vmatpush1.bf16.msra.mxu0 %v3817
  %3846 = vmatprep.subr.bf16.mxu0 0
  %3847 = vmatpush1.bf16.msra.mxu0 %v3816
  %3848 = vmatprep.subr.bf16.mxu0 0
  %3849 = vmatpush2.bf16.msra.mxu0 0
  %3850 = vmatprep.subr.bf16.mxu0 0
  %3851 = vmatpush2.bf16.msra.mxu0 0
  %3852 = vmatprep.subr.bf16.mxu0 0
  %3853 = vmatpush2.bf16.msra.mxu0 0
  %3854 = vmatprep.subr.bf16.mxu0 0
  %3855 = vmatpush2.bf16.msra.mxu0 0
  %3856 = vmatprep.subr.bf16.mxu0 0
  %3857 = vmatpush2.bf16.msra.mxu0 0
  %3858 = vmatprep.subr.bf16.mxu0 0
  %3859 = vmatpush2.bf16.msra.mxu0 0
  %3860 = vmatprep.subr.bf16.mxu0 0
  %3861 = vmatpush2.bf16.msra.mxu0 0
  %3862 = vmatprep.subr.bf16.mxu0 0
  %3863 = vmatpush2.bf16.msra.mxu0 0
  %3864 = vmatprep.mubr.bf16.mxu0 0
  %3865 = vmatmul.mubr.bf16.gmra.mxu0 %v3778
  %v3866 = vpop.f32.mrf.mxu0
  %v3867 = vadd.f32 0.0, %v3866
  %v3868 = vpop.f32.mrf.mxu0
  %v3869 = vpop.f32.mrf.mxu0
  %v3870 = vadd.f32 0.0, %v3869
  %v3871 = vpop.f32.mrf.mxu0
  %3872 = vmatprep.mubr.bf16.mxu0 0
  %3873 = vmatmul.mubr.bf16.gmra.mxu0 %v3781
  %v3874 = vpop.f32.mrf.mxu0
  %v3875 = vadd.f32 0.0, %v3874
  %v3876 = vpop.f32.mrf.mxu0
  %v3877 = vpop.f32.mrf.mxu0
  %v3878 = vpop.f32.mrf.mxu0
  %3879 = vdwg.mxu0
  %v3880 = vadd.f32 %v3734, %v3867
  %v3881 = vadd.f32 %v3735, %v3870
  %v3882 = vadd.f32 %v3736, %v3875
  %v3883 = vld [vmem:[%s3608] sm:$0xe]
  %v3884 = vld [vmem:[%s311] sm:$0xf]
  %v3885 = vld [vmem:[%s311 + $0x4] sm:$0xf]
  %v3886 = vld [vmem:[%s311 + $0x8] sm:$0xf]
  %v3887 = vld [vmem:[%s311 + $0xc] sm:$0xf]
  %v3888 = vld [vmem:[%s311 + $0x10] sm:$0xf]
  %v3889 = vld [vmem:[%s311 + $0x14] sm:$0xf]
  %v3890 = vld [vmem:[%s311 + $0x18] sm:$0xf]
  %v3891 = vld [vmem:[%s311 + $0x1c] sm:$0xf]
  %v3892 = vld [vmem:[%s311 + $0x20] sm:$0xf]
  %v3893 = vld [vmem:[%s311 + $0x24] sm:$0xf]
  %v3894 = vld [vmem:[%s311 + $0x28] sm:$0xf]
  %v3895 = vld [vmem:[%s311 + $0x2c] sm:$0xf]
  %v3896 = vld [vmem:[%s311 + $0x30] sm:$0xf]
  %v3897 = vld [vmem:[%s311 + $0x34] sm:$0xf]
  %v3898 = vld [vmem:[%s311 + $0x38] sm:$0xf]
  %v3899 = vld [vmem:[%s311 + $0x3c] sm:$0xf]
  %v3901 = vunpack.c.l.b16 %v3883
  %v3902 = vpack.c.b16 %v3762, %v3901
  %v3903 = vrot.slane %v3902, 1
  %v3904 = vrot.slane %v3766, 1
  %v3905 = vsel %vm331, %v3903, %v3904
  %v3924 = vunpack.c.l.b16 %v3884
  %v3925 = vunpack.c.l.b16 %v3885
  %v3926 = vunpack.c.l.b16 %v3886
  %v3927 = vunpack.c.l.b16 %v3887
  %v3928 = vunpack.c.l.b16 %v3888
  %v3929 = vunpack.c.l.b16 %v3889
  %v3930 = vunpack.c.l.b16 %v3890
  %v3931 = vunpack.c.l.b16 %v3891
  %v3932 = vunpack.c.l.b16 %v3892
  %v3933 = vunpack.c.l.b16 %v3893
  %v3934 = vunpack.c.l.b16 %v3894
  %v3935 = vunpack.c.l.b16 %v3895
  %v3936 = vunpack.c.l.b16 %v3896
  %v3937 = vunpack.c.l.b16 %v3897
  %v3938 = vunpack.c.l.b16 %v3898
  %v3939 = vunpack.c.l.b16 %v3899
  %v3940 = vpack.c.b16 %v3925, %v3924
  %v3941 = vpack.c.b16 %v3927, %v3926
  %v3942 = vpack.c.b16 %v3929, %v3928
  %v3943 = vpack.c.b16 %v3931, %v3930
  %v3944 = vpack.c.b16 %v3933, %v3932
  %v3945 = vpack.c.b16 %v3935, %v3934
  %v3946 = vpack.c.b16 %v3937, %v3936
  %v3947 = vpack.c.b16 %v3939, %v3938
  %3956 = vmatprep.subr.bf16.mxu0 0
  %3957 = vmatpush1.bf16.msra.mxu0 %v3947
  %3958 = vmatprep.subr.bf16.mxu0 0
  %3959 = vmatpush1.bf16.msra.mxu0 %v3946
  %3960 = vmatprep.subr.bf16.mxu0 0
  %3961 = vmatpush1.bf16.msra.mxu0 %v3945
  %3962 = vmatprep.subr.bf16.mxu0 0
  %3963 = vmatpush1.bf16.msra.mxu0 %v3944
  %3964 = vmatprep.subr.bf16.mxu0 0
  %3965 = vmatpush1.bf16.msra.mxu0 %v3943
  %3966 = vmatprep.subr.bf16.mxu0 0
  %3967 = vmatpush1.bf16.msra.mxu0 %v3942
  %3968 = vmatprep.subr.bf16.mxu0 0
  %3969 = vmatpush1.bf16.msra.mxu0 %v3941
  %3970 = vmatprep.subr.bf16.mxu0 0
  %3971 = vmatpush1.bf16.msra.mxu0 %v3940
  %3972 = vmatprep.subr.bf16.mxu0 0
  %3973 = vmatpush2.bf16.msra.mxu0 0
  %3974 = vmatprep.subr.bf16.mxu0 0
  %3975 = vmatpush2.bf16.msra.mxu0 0
  %3976 = vmatprep.subr.bf16.mxu0 0
  %3977 = vmatpush2.bf16.msra.mxu0 0
  %3978 = vmatprep.subr.bf16.mxu0 0
  %3979 = vmatpush2.bf16.msra.mxu0 0
  %3980 = vmatprep.subr.bf16.mxu0 0
  %3981 = vmatpush2.bf16.msra.mxu0 0
  %3982 = vmatprep.subr.bf16.mxu0 0
  %3983 = vmatpush2.bf16.msra.mxu0 0
  %3984 = vmatprep.subr.bf16.mxu0 0
  %3985 = vmatpush2.bf16.msra.mxu0 0
  %3986 = vmatprep.subr.bf16.mxu0 0
  %3987 = vmatpush2.bf16.msra.mxu0 0
  %3988 = vmatprep.mubr.bf16.mxu0 0
  %3989 = vmatmul.mubr.bf16.gmra.mxu0 %v3905
  %v3990 = vpop.f32.mrf.mxu0
  %v3991 = vadd.f32 0.0, %v3990
  %v3992 = vpop.f32.mrf.mxu0
  %v3993 = vpop.f32.mrf.mxu0
  %v3994 = vadd.f32 0.0, %v3993
  %v3995 = vpop.f32.mrf.mxu0
  %3996 = vmatprep.mubr.bf16.mxu0 0
  %3997 = vmatmul.mubr.bf16.gmra.mxu0 %v3904
  %v3998 = vpop.f32.mrf.mxu0
  %v3999 = vadd.f32 0.0, %v3998
  %v4000 = vpop.f32.mrf.mxu0
  %v4001 = vpop.f32.mrf.mxu0
  %v4002 = vpop.f32.mrf.mxu0
  %4003 = vdwg.mxu0
  %v4004 = vadd.f32 %v3880, %v3991
  %v4005 = vadd.f32 %v3881, %v3994
  %v4006 = vadd.f32 %v3882, %v3999
  %v4007 = vld [vmem:[%s3608] sm:$0x8]
  %v4008 = vld [vmem:[%s3608 + $0xc] sm:$0x7]
  %v4009 = vld [vmem:[%s438] sm:$0xf]
  %v4010 = vld [vmem:[%s438 + $0x4] sm:$0xf]
  %v4011 = vld [vmem:[%s438 + $0x8] sm:$0xf]
  %v4012 = vld [vmem:[%s438 + $0xc] sm:$0xf]
  %v4013 = vld [vmem:[%s438 + $0x10] sm:$0xf]
  %v4014 = vld [vmem:[%s438 + $0x14] sm:$0xf]
  %v4015 = vld [vmem:[%s438 + $0x18] sm:$0xf]
  %v4016 = vld [vmem:[%s438 + $0x1c] sm:$0xf]
  %v4017 = vld [vmem:[%s438 + $0x20] sm:$0xf]
  %v4018 = vld [vmem:[%s438 + $0x24] sm:$0xf]
  %v4019 = vld [vmem:[%s438 + $0x28] sm:$0xf]
  %v4020 = vld [vmem:[%s438 + $0x2c] sm:$0xf]
  %v4021 = vld [vmem:[%s438 + $0x30] sm:$0xf]
  %v4022 = vld [vmem:[%s438 + $0x34] sm:$0xf]
  %v4023 = vld [vmem:[%s438 + $0x38] sm:$0xf]
  %v4024 = vld [vmem:[%s438 + $0x3c] sm:$0xf]
  %v4027 = vunpack.c.l.b16 %v4007
  %v4028 = vunpack.c.l.b16 %v4008
  %v4029 = vpack.c.b16 %v3762, %v4027
  %v4030 = vpack.c.b16 %v4028, %v3763
  %v4031 = vrot.slane %v4029, 3
  %v4032 = vrot.slane %v4030, 3
  %v4033 = vsel %vm461, %v4031, %v4032
  %v4052 = vunpack.c.l.b16 %v4009
  %v4053 = vunpack.c.l.b16 %v4010
  %v4054 = vunpack.c.l.b16 %v4011
  %v4055 = vunpack.c.l.b16 %v4012
  %v4056 = vunpack.c.l.b16 %v4013
  %v4057 = vunpack.c.l.b16 %v4014
  %v4058 = vunpack.c.l.b16 %v4015
  %v4059 = vunpack.c.l.b16 %v4016
  %v4060 = vunpack.c.l.b16 %v4017
  %v4061 = vunpack.c.l.b16 %v4018
  %v4062 = vunpack.c.l.b16 %v4019
  %v4063 = vunpack.c.l.b16 %v4020
  %v4064 = vunpack.c.l.b16 %v4021
  %v4065 = vunpack.c.l.b16 %v4022
  %v4066 = vunpack.c.l.b16 %v4023
  %v4067 = vunpack.c.l.b16 %v4024
  %v4068 = vpack.c.b16 %v4053, %v4052
  %v4069 = vpack.c.b16 %v4055, %v4054
  %v4070 = vpack.c.b16 %v4057, %v4056
  %v4071 = vpack.c.b16 %v4059, %v4058
  %v4072 = vpack.c.b16 %v4061, %v4060
  %v4073 = vpack.c.b16 %v4063, %v4062
  %v4074 = vpack.c.b16 %v4065, %v4064
  %v4075 = vpack.c.b16 %v4067, %v4066
  %4084 = vmatprep.subr.bf16.mxu0 0
  %4085 = vmatpush1.bf16.msra.mxu0 %v4075
  %4086 = vmatprep.subr.bf16.mxu0 0
  %4087 = vmatpush1.bf16.msra.mxu0 %v4074
  %4088 = vmatprep.subr.bf16.mxu0 0
  %4089 = vmatpush1.bf16.msra.mxu0 %v4073
  %4090 = vmatprep.subr.bf16.mxu0 0
  %4091 = vmatpush1.bf16.msra.mxu0 %v4072
  %4092 = vmatprep.subr.bf16.mxu0 0
  %4093 = vmatpush1.bf16.msra.mxu0 %v4071
  %4094 = vmatprep.subr.bf16.mxu0 0
  %4095 = vmatpush1.bf16.msra.mxu0 %v4070
  %4096 = vmatprep.subr.bf16.mxu0 0
  %4097 = vmatpush1.bf16.msra.mxu0 %v4069
  %4098 = vmatprep.subr.bf16.mxu0 0
  %4099 = vmatpush1.bf16.msra.mxu0 %v4068
  %4100 = vmatprep.subr.bf16.mxu0 0
  %4101 = vmatpush2.bf16.msra.mxu0 0
  %4102 = vmatprep.subr.bf16.mxu0 0
  %4103 = vmatpush2.bf16.msra.mxu0 0
  %4104 = vmatprep.subr.bf16.mxu0 0
  %4105 = vmatpush2.bf16.msra.mxu0 0
  %4106 = vmatprep.subr.bf16.mxu0 0
  %4107 = vmatpush2.bf16.msra.mxu0 0
  %4108 = vmatprep.subr.bf16.mxu0 0
  %4109 = vmatpush2.bf16.msra.mxu0 0
  %4110 = vmatprep.subr.bf16.mxu0 0
  %4111 = vmatpush2.bf16.msra.mxu0 0
  %4112 = vmatprep.subr.bf16.mxu0 0
  %4113 = vmatpush2.bf16.msra.mxu0 0
  %4114 = vmatprep.subr.bf16.mxu0 0
  %4115 = vmatpush2.bf16.msra.mxu0 0
  %4116 = vmatprep.mubr.bf16.mxu0 0
  %4117 = vmatmul.mubr.bf16.gmra.mxu0 %v4033
  %v4118 = vpop.f32.mrf.mxu0
  %v4119 = vadd.f32 0.0, %v4118
  %v4120 = vpop.f32.mrf.mxu0
  %v4121 = vpop.f32.mrf.mxu0
  %v4122 = vadd.f32 0.0, %v4121
  %v4123 = vpop.f32.mrf.mxu0
  %4124 = vmatprep.mubr.bf16.mxu0 0
  %4125 = vmatmul.mubr.bf16.gmra.mxu0 %v4032
  %v4126 = vpop.f32.mrf.mxu0
  %v4127 = vadd.f32 0.0, %v4126
  %v4128 = vpop.f32.mrf.mxu0
  %v4129 = vpop.f32.mrf.mxu0
  %v4130 = vpop.f32.mrf.mxu0
  %4131 = vdwg.mxu0
  %v4132 = vadd.f32 %v4004, %v4119
  %v4133 = vadd.f32 %v4005, %v4122
  %v4134 = vadd.f32 %v4006, %v4127
  %v4135 = vld [vmem:[%s3608 + $0xc] sm:$0xf]
  %v4136 = vld [vmem:[%s567] sm:$0xf]
  %v4137 = vld [vmem:[%s567 + $0x4] sm:$0xf]
  %v4138 = vld [vmem:[%s567 + $0x8] sm:$0xf]
  %v4139 = vld [vmem:[%s567 + $0xc] sm:$0xf]
  %v4140 = vld [vmem:[%s567 + $0x10] sm:$0xf]
  %v4141 = vld [vmem:[%s567 + $0x14] sm:$0xf]
  %v4142 = vld [vmem:[%s567 + $0x18] sm:$0xf]
  %v4143 = vld [vmem:[%s567 + $0x1c] sm:$0xf]
  %v4144 = vld [vmem:[%s567 + $0x20] sm:$0xf]
  %v4145 = vld [vmem:[%s567 + $0x24] sm:$0xf]
  %v4146 = vld [vmem:[%s567 + $0x28] sm:$0xf]
  %v4147 = vld [vmem:[%s567 + $0x2c] sm:$0xf]
  %v4148 = vld [vmem:[%s567 + $0x30] sm:$0xf]
  %v4149 = vld [vmem:[%s567 + $0x34] sm:$0xf]
  %v4150 = vld [vmem:[%s567 + $0x38] sm:$0xf]
  %v4151 = vld [vmem:[%s567 + $0x3c] sm:$0xf]
  %v4153 = vunpack.c.l.b16 %v4135
  %v4154 = vpack.c.b16 %v4153, %v3763
  %v4156 = vshrl.u32 %v4029, 16
  %v4158 = vrot.slane %v4156, 3
  %v4159 = vshll.u32 %v4029, 16
  %v4161 = vrot.slane %v4159, 4
  %v4162 = vor.u32 %v4158, %v4161
  %v4164 = vshrl.u32 %v4154, 16
  %v4166 = vrot.slane %v4164, 3
  %v4167 = vshll.u32 %v4154, 16
  %v4169 = vrot.slane %v4167, 4
  %v4170 = vor.u32 %v4166, %v4169
  %v4171 = vsel %vm587, %v4162, %v4170
  %v4190 = vunpack.c.l.b16 %v4136
  %v4191 = vunpack.c.l.b16 %v4137
  %v4192 = vunpack.c.l.b16 %v4138
  %v4193 = vunpack.c.l.b16 %v4139
  %v4194 = vunpack.c.l.b16 %v4140
  %v4195 = vunpack.c.l.b16 %v4141
  %v4196 = vunpack.c.l.b16 %v4142
  %v4197 = vunpack.c.l.b16 %v4143
  %v4198 = vunpack.c.l.b16 %v4144
  %v4199 = vunpack.c.l.b16 %v4145
  %v4200 = vunpack.c.l.b16 %v4146
  %v4201 = vunpack.c.l.b16 %v4147
  %v4202 = vunpack.c.l.b16 %v4148
  %v4203 = vunpack.c.l.b16 %v4149
  %v4204 = vunpack.c.l.b16 %v4150
  %v4205 = vunpack.c.l.b16 %v4151
  %v4206 = vpack.c.b16 %v4191, %v4190
  %v4207 = vpack.c.b16 %v4193, %v4192
  %v4208 = vpack.c.b16 %v4195, %v4194
  %v4209 = vpack.c.b16 %v4197, %v4196
  %v4210 = vpack.c.b16 %v4199, %v4198
  %v4211 = vpack.c.b16 %v4201, %v4200
  %v4212 = vpack.c.b16 %v4203, %v4202
  %v4213 = vpack.c.b16 %v4205, %v4204
  %4222 = vmatprep.subr.bf16.mxu0 0
  %4223 = vmatpush1.bf16.msra.mxu0 %v4213
  %4224 = vmatprep.subr.bf16.mxu0 0
  %4225 = vmatpush1.bf16.msra.mxu0 %v4212
  %4226 = vmatprep.subr.bf16.mxu0 0
  %4227 = vmatpush1.bf16.msra.mxu0 %v4211
  %4228 = vmatprep.subr.bf16.mxu0 0
  %4229 = vmatpush1.bf16.msra.mxu0 %v4210
  %4230 = vmatprep.subr.bf16.mxu0 0
  %4231 = vmatpush1.bf16.msra.mxu0 %v4209
  %4232 = vmatprep.subr.bf16.mxu0 0
  %4233 = vmatpush1.bf16.msra.mxu0 %v4208
  %4234 = vmatprep.subr.bf16.mxu0 0
  %4235 = vmatpush1.bf16.msra.mxu0 %v4207
  %4236 = vmatprep.subr.bf16.mxu0 0
  %4237 = vmatpush1.bf16.msra.mxu0 %v4206
  %4238 = vmatprep.subr.bf16.mxu0 0
  %4239 = vmatpush2.bf16.msra.mxu0 0
  %4240 = vmatprep.subr.bf16.mxu0 0
  %4241 = vmatpush2.bf16.msra.mxu0 0
  %4242 = vmatprep.subr.bf16.mxu0 0
  %4243 = vmatpush2.bf16.msra.mxu0 0
  %4244 = vmatprep.subr.bf16.mxu0 0
  %4245 = vmatpush2.bf16.msra.mxu0 0
  %4246 = vmatprep.subr.bf16.mxu0 0
  %4247 = vmatpush2.bf16.msra.mxu0 0
  %4248 = vmatprep.subr.bf16.mxu0 0
  %4249 = vmatpush2.bf16.msra.mxu0 0
  %4250 = vmatprep.subr.bf16.mxu0 0
  %4251 = vmatpush2.bf16.msra.mxu0 0
  %4252 = vmatprep.subr.bf16.mxu0 0
  %4253 = vmatpush2.bf16.msra.mxu0 0
  %4254 = vmatprep.mubr.bf16.mxu0 0
  %4255 = vmatmul.mubr.bf16.gmra.mxu0 %v4171
  %v4256 = vpop.f32.mrf.mxu0
  %v4257 = vadd.f32 0.0, %v4256
  %v4258 = vpop.f32.mrf.mxu0
  %v4259 = vpop.f32.mrf.mxu0
  %v4260 = vadd.f32 0.0, %v4259
  %v4261 = vpop.f32.mrf.mxu0
  %4262 = vmatprep.mubr.bf16.mxu0 0
  %4263 = vmatmul.mubr.bf16.gmra.mxu0 %v4170
  %v4264 = vpop.f32.mrf.mxu0
  %v4265 = vadd.f32 0.0, %v4264
  %v4266 = vpop.f32.mrf.mxu0
  %v4267 = vpop.f32.mrf.mxu0
  %v4268 = vpop.f32.mrf.mxu0
  %4269 = vdwg.mxu0
  %v4270 = vadd.f32 %v4132, %v4257
  %v4271 = vadd.f32 %v4133, %v4260
  %v4272 = vadd.f32 %v4134, %v4265
  %v4273 = vld [vmem:[%s706] sm:$0xf]
  %v4274 = vld [vmem:[%s706 + $0x4] sm:$0xf]
  %v4275 = vld [vmem:[%s706 + $0x8] sm:$0xf]
  %v4276 = vld [vmem:[%s706 + $0xc] sm:$0xf]
  %v4277 = vld [vmem:[%s706 + $0x10] sm:$0xf]
  %v4278 = vld [vmem:[%s706 + $0x14] sm:$0xf]
  %v4279 = vld [vmem:[%s706 + $0x18] sm:$0xf]
  %v4280 = vld [vmem:[%s706 + $0x1c] sm:$0xf]
  %v4281 = vld [vmem:[%s706 + $0x20] sm:$0xf]
  %v4282 = vld [vmem:[%s706 + $0x24] sm:$0xf]
  %v4283 = vld [vmem:[%s706 + $0x28] sm:$0xf]
  %v4284 = vld [vmem:[%s706 + $0x2c] sm:$0xf]
  %v4285 = vld [vmem:[%s706 + $0x30] sm:$0xf]
  %v4286 = vld [vmem:[%s706 + $0x34] sm:$0xf]
  %v4287 = vld [vmem:[%s706 + $0x38] sm:$0xf]
  %v4288 = vld [vmem:[%s706 + $0x3c] sm:$0xf]
  %v4289 = vpack.c.b16 %v3763, %v3762
  %v4290 = vpack.c.b16 %v4153, %v4153
  %v4309 = vunpack.c.l.b16 %v4273
  %v4310 = vunpack.c.l.b16 %v4274
  %v4311 = vunpack.c.l.b16 %v4275
  %v4312 = vunpack.c.l.b16 %v4276
  %v4313 = vunpack.c.l.b16 %v4277
  %v4314 = vunpack.c.l.b16 %v4278
  %v4315 = vunpack.c.l.b16 %v4279
  %v4316 = vunpack.c.l.b16 %v4280
  %v4317 = vunpack.c.l.b16 %v4281
  %v4318 = vunpack.c.l.b16 %v4282
  %v4319 = vunpack.c.l.b16 %v4283
  %v4320 = vunpack.c.l.b16 %v4284
  %v4321 = vunpack.c.l.b16 %v4285
  %v4322 = vunpack.c.l.b16 %v4286
  %v4323 = vunpack.c.l.b16 %v4287
  %v4324 = vunpack.c.l.b16 %v4288
  %v4325 = vpack.c.b16 %v4310, %v4309
  %v4326 = vpack.c.b16 %v4312, %v4311
  %v4327 = vpack.c.b16 %v4314, %v4313
  %v4328 = vpack.c.b16 %v4316, %v4315
  %v4329 = vpack.c.b16 %v4318, %v4317
  %v4330 = vpack.c.b16 %v4320, %v4319
  %v4331 = vpack.c.b16 %v4322, %v4321
  %v4332 = vpack.c.b16 %v4324, %v4323
  %4341 = vmatprep.subr.bf16.mxu0 0
  %4342 = vmatpush1.bf16.msra.mxu0 %v4332
  %4343 = vmatprep.subr.bf16.mxu0 0
  %4344 = vmatpush1.bf16.msra.mxu0 %v4331
  %4345 = vmatprep.subr.bf16.mxu0 0
  %4346 = vmatpush1.bf16.msra.mxu0 %v4330
  %4347 = vmatprep.subr.bf16.mxu0 0
  %4348 = vmatpush1.bf16.msra.mxu0 %v4329
  %4349 = vmatprep.subr.bf16.mxu0 0
  %4350 = vmatpush1.bf16.msra.mxu0 %v4328
  %4351 = vmatprep.subr.bf16.mxu0 0
  %4352 = vmatpush1.bf16.msra.mxu0 %v4327
  %4353 = vmatprep.subr.bf16.mxu0 0
  %4354 = vmatpush1.bf16.msra.mxu0 %v4326
  %4355 = vmatprep.subr.bf16.mxu0 0
  %4356 = vmatpush1.bf16.msra.mxu0 %v4325
  %4357 = vmatprep.subr.bf16.mxu0 0
  %4358 = vmatpush2.bf16.msra.mxu0 0
  %4359 = vmatprep.subr.bf16.mxu0 0
  %4360 = vmatpush2.bf16.msra.mxu0 0
  %4361 = vmatprep.subr.bf16.mxu0 0
  %4362 = vmatpush2.bf16.msra.mxu0 0
  %4363 = vmatprep.subr.bf16.mxu0 0
  %4364 = vmatpush2.bf16.msra.mxu0 0
  %4365 = vmatprep.subr.bf16.mxu0 0
  %4366 = vmatpush2.bf16.msra.mxu0 0
  %4367 = vmatprep.subr.bf16.mxu0 0
  %4368 = vmatpush2.bf16.msra.mxu0 0
  %4369 = vmatprep.subr.bf16.mxu0 0
  %4370 = vmatpush2.bf16.msra.mxu0 0
  %4371 = vmatprep.subr.bf16.mxu0 0
  %4372 = vmatpush2.bf16.msra.mxu0 0
  %4373 = vmatprep.mubr.bf16.mxu0 0
  %4374 = vmatmul.mubr.bf16.gmra.mxu0 %v4289
  %v4375 = vpop.f32.mrf.mxu0
  %v4376 = vadd.f32 0.0, %v4375
  %v4377 = vpop.f32.mrf.mxu0
  %v4378 = vpop.f32.mrf.mxu0
  %v4379 = vadd.f32 0.0, %v4378
  %v4380 = vpop.f32.mrf.mxu0
  %4381 = vmatprep.mubr.bf16.mxu0 0
  %4382 = vmatmul.mubr.bf16.gmra.mxu0 %v4290
  %v4383 = vpop.f32.mrf.mxu0
  %v4384 = vadd.f32 0.0, %v4383
  %v4385 = vpop.f32.mrf.mxu0
  %v4386 = vpop.f32.mrf.mxu0
  %v4387 = vpop.f32.mrf.mxu0
  %4388 = vdwg.mxu0
  %v4389 = vadd.f32 %v4270, %v4376
  %v4390 = vadd.f32 %v4271, %v4379
  %v4391 = vadd.f32 %v4272, %v4384
  %v4392 = vld [vmem:[%s3608 + $0x4] sm:$0xc]
  %v4393 = vld [vmem:[%s3608 + $0x8] sm:$0xf]
  %v4394 = vld [vmem:[%s3608 + $0xc] sm:$0xf]
  %v4395 = vld [vmem:[%s3608 + $0x10] sm:$0x3]
  %v4396 = vld [vmem:[%s830] sm:$0xf]
  %v4397 = vld [vmem:[%s830 + $0x4] sm:$0xf]
  %v4398 = vld [vmem:[%s830 + $0x8] sm:$0xf]
  %v4399 = vld [vmem:[%s830 + $0xc] sm:$0xf]
  %v4400 = vld [vmem:[%s830 + $0x10] sm:$0xf]
  %v4401 = vld [vmem:[%s830 + $0x14] sm:$0xf]
  %v4402 = vld [vmem:[%s830 + $0x18] sm:$0xf]
  %v4403 = vld [vmem:[%s830 + $0x1c] sm:$0xf]
  %v4404 = vld [vmem:[%s830 + $0x20] sm:$0xf]
  %v4405 = vld [vmem:[%s830 + $0x24] sm:$0xf]
  %v4406 = vld [vmem:[%s830 + $0x28] sm:$0xf]
  %v4407 = vld [vmem:[%s830 + $0x2c] sm:$0xf]
  %v4408 = vld [vmem:[%s830 + $0x30] sm:$0xf]
  %v4409 = vld [vmem:[%s830 + $0x34] sm:$0xf]
  %v4410 = vld [vmem:[%s830 + $0x38] sm:$0xf]
  %v4411 = vld [vmem:[%s830 + $0x3c] sm:$0xf]
  %v4416 = vunpack.c.l.b16 %v4392
  %v4417 = vunpack.c.l.b16 %v4393
  %v4418 = vunpack.c.l.b16 %v4394
  %v4419 = vunpack.c.l.b16 %v4395
  %v4420 = vpack.c.b16 %v4417, %v4416
  %v4421 = vpack.c.b16 %v4419, %v4418
  %v4422 = vrot.slane %v4420, 2
  %v4423 = vrot.slane %v4421, 2
  %v4424 = vsel %vm857, %v4422, %v4423
  %v4443 = vunpack.c.l.b16 %v4396
  %v4444 = vunpack.c.l.b16 %v4397
  %v4445 = vunpack.c.l.b16 %v4398
  %v4446 = vunpack.c.l.b16 %v4399
  %v4447 = vunpack.c.l.b16 %v4400
  %v4448 = vunpack.c.l.b16 %v4401
  %v4449 = vunpack.c.l.b16 %v4402
  %v4450 = vunpack.c.l.b16 %v4403
  %v4451 = vunpack.c.l.b16 %v4404
  %v4452 = vunpack.c.l.b16 %v4405
  %v4453 = vunpack.c.l.b16 %v4406
  %v4454 = vunpack.c.l.b16 %v4407
  %v4455 = vunpack.c.l.b16 %v4408
  %v4456 = vunpack.c.l.b16 %v4409
  %v4457 = vunpack.c.l.b16 %v4410
  %v4458 = vunpack.c.l.b16 %v4411
  %v4459 = vpack.c.b16 %v4444, %v4443
  %v4460 = vpack.c.b16 %v4446, %v4445
  %v4461 = vpack.c.b16 %v4448, %v4447
  %v4462 = vpack.c.b16 %v4450, %v4449
  %v4463 = vpack.c.b16 %v4452, %v4451
  %v4464 = vpack.c.b16 %v4454, %v4453
  %v4465 = vpack.c.b16 %v4456, %v4455
  %v4466 = vpack.c.b16 %v4458, %v4457
  %4475 = vmatprep.subr.bf16.mxu0 0
  %4476 = vmatpush1.bf16.msra.mxu0 %v4466
  %4477 = vmatprep.subr.bf16.mxu0 0
  %4478 = vmatpush1.bf16.msra.mxu0 %v4465
  %4479 = vmatprep.subr.bf16.mxu0 0
  %4480 = vmatpush1.bf16.msra.mxu0 %v4464
  %4481 = vmatprep.subr.bf16.mxu0 0
  %4482 = vmatpush1.bf16.msra.mxu0 %v4463
  %4483 = vmatprep.subr.bf16.mxu0 0
  %4484 = vmatpush1.bf16.msra.mxu0 %v4462
  %4485 = vmatprep.subr.bf16.mxu0 0
  %4486 = vmatpush1.bf16.msra.mxu0 %v4461
  %4487 = vmatprep.subr.bf16.mxu0 0
  %4488 = vmatpush1.bf16.msra.mxu0 %v4460
  %4489 = vmatprep.subr.bf16.mxu0 0
  %4490 = vmatpush1.bf16.msra.mxu0 %v4459
  %4491 = vmatprep.subr.bf16.mxu0 0
  %4492 = vmatpush2.bf16.msra.mxu0 0
  %4493 = vmatprep.subr.bf16.mxu0 0
  %4494 = vmatpush2.bf16.msra.mxu0 0
  %4495 = vmatprep.subr.bf16.mxu0 0
  %4496 = vmatpush2.bf16.msra.mxu0 0
  %4497 = vmatprep.subr.bf16.mxu0 0
  %4498 = vmatpush2.bf16.msra.mxu0 0
  %4499 = vmatprep.subr.bf16.mxu0 0
  %4500 = vmatpush2.bf16.msra.mxu0 0
  %4501 = vmatprep.subr.bf16.mxu0 0
  %4502 = vmatpush2.bf16.msra.mxu0 0
  %4503 = vmatprep.subr.bf16.mxu0 0
  %4504 = vmatpush2.bf16.msra.mxu0 0
  %4505 = vmatprep.subr.bf16.mxu0 0
  %4506 = vmatpush2.bf16.msra.mxu0 0
  %4507 = vmatprep.mubr.bf16.mxu0 0
  %4508 = vmatmul.mubr.bf16.gmra.mxu0 %v4424
  %v4509 = vpop.f32.mrf.mxu0
  %v4510 = vadd.f32 0.0, %v4509
  %v4511 = vpop.f32.mrf.mxu0
  %v4512 = vpop.f32.mrf.mxu0
  %v4513 = vadd.f32 0.0, %v4512
  %v4514 = vpop.f32.mrf.mxu0
  %4515 = vmatprep.mubr.bf16.mxu0 0
  %4516 = vmatmul.mubr.bf16.gmra.mxu0 %v4423
  %v4517 = vpop.f32.mrf.mxu0
  %v4518 = vadd.f32 0.0, %v4517
  %v4519 = vpop.f32.mrf.mxu0
  %v4520 = vpop.f32.mrf.mxu0
  %v4521 = vpop.f32.mrf.mxu0
  %4522 = vdwg.mxu0
  %v4523 = vadd.f32 %v4389, %v4510
  %v4524 = vadd.f32 %v4390, %v4513
  %v4525 = vadd.f32 %v4391, %v4518
  %v4526 = vld [vmem:[%s3608 + $0x10] sm:$0x7]
  %v4527 = vld [vmem:[%s963] sm:$0xf]
  %v4528 = vld [vmem:[%s963 + $0x4] sm:$0xf]
  %v4529 = vld [vmem:[%s963 + $0x8] sm:$0xf]
  %v4530 = vld [vmem:[%s963 + $0xc] sm:$0xf]
  %v4531 = vld [vmem:[%s963 + $0x10] sm:$0xf]
  %v4532 = vld [vmem:[%s963 + $0x14] sm:$0xf]
  %v4533 = vld [vmem:[%s963 + $0x18] sm:$0xf]
  %v4534 = vld [vmem:[%s963 + $0x1c] sm:$0xf]
  %v4535 = vld [vmem:[%s963 + $0x20] sm:$0xf]
  %v4536 = vld [vmem:[%s963 + $0x24] sm:$0xf]
  %v4537 = vld [vmem:[%s963 + $0x28] sm:$0xf]
  %v4538 = vld [vmem:[%s963 + $0x2c] sm:$0xf]
  %v4539 = vld [vmem:[%s963 + $0x30] sm:$0xf]
  %v4540 = vld [vmem:[%s963 + $0x34] sm:$0xf]
  %v4541 = vld [vmem:[%s963 + $0x38] sm:$0xf]
  %v4542 = vld [vmem:[%s963 + $0x3c] sm:$0xf]
  %v4544 = vunpack.c.l.b16 %v4526
  %v4545 = vpack.c.b16 %v4544, %v4418
  %v4547 = vshrl.u32 %v4420, 16
  %v4549 = vrot.slane %v4547, 2
  %v4550 = vshll.u32 %v4420, 16
  %v4552 = vrot.slane %v4550, 3
  %v4553 = vor.u32 %v4549, %v4552
  %v4555 = vshrl.u32 %v4545, 16
  %v4557 = vrot.slane %v4555, 2
  %v4558 = vshll.u32 %v4545, 16
  %v4560 = vrot.slane %v4558, 3
  %v4561 = vor.u32 %v4557, %v4560
  %v4562 = vsel %vm983, %v4553, %v4561
  %v4581 = vunpack.c.l.b16 %v4527
  %v4582 = vunpack.c.l.b16 %v4528
  %v4583 = vunpack.c.l.b16 %v4529
  %v4584 = vunpack.c.l.b16 %v4530
  %v4585 = vunpack.c.l.b16 %v4531
  %v4586 = vunpack.c.l.b16 %v4532
  %v4587 = vunpack.c.l.b16 %v4533
  %v4588 = vunpack.c.l.b16 %v4534
  %v4589 = vunpack.c.l.b16 %v4535
  %v4590 = vunpack.c.l.b16 %v4536
  %v4591 = vunpack.c.l.b16 %v4537
  %v4592 = vunpack.c.l.b16 %v4538
  %v4593 = vunpack.c.l.b16 %v4539
  %v4594 = vunpack.c.l.b16 %v4540
  %v4595 = vunpack.c.l.b16 %v4541
  %v4596 = vunpack.c.l.b16 %v4542
  %v4597 = vpack.c.b16 %v4582, %v4581
  %v4598 = vpack.c.b16 %v4584, %v4583
  %v4599 = vpack.c.b16 %v4586, %v4585
  %v4600 = vpack.c.b16 %v4588, %v4587
  %v4601 = vpack.c.b16 %v4590, %v4589
  %v4602 = vpack.c.b16 %v4592, %v4591
  %v4603 = vpack.c.b16 %v4594, %v4593
  %v4604 = vpack.c.b16 %v4596, %v4595
  %4613 = vmatprep.subr.bf16.mxu0 0
  %4614 = vmatpush1.bf16.msra.mxu0 %v4604
  %4615 = vmatprep.subr.bf16.mxu0 0
  %4616 = vmatpush1.bf16.msra.mxu0 %v4603
  %4617 = vmatprep.subr.bf16.mxu0 0
  %4618 = vmatpush1.bf16.msra.mxu0 %v4602
  %4619 = vmatprep.subr.bf16.mxu0 0
  %4620 = vmatpush1.bf16.msra.mxu0 %v4601
  %4621 = vmatprep.subr.bf16.mxu0 0
  %4622 = vmatpush1.bf16.msra.mxu0 %v4600
  %4623 = vmatprep.subr.bf16.mxu0 0
  %4624 = vmatpush1.bf16.msra.mxu0 %v4599
  %4625 = vmatprep.subr.bf16.mxu0 0
  %4626 = vmatpush1.bf16.msra.mxu0 %v4598
  %4627 = vmatprep.subr.bf16.mxu0 0
  %4628 = vmatpush1.bf16.msra.mxu0 %v4597
  %4629 = vmatprep.subr.bf16.mxu0 0
  %4630 = vmatpush2.bf16.msra.mxu0 0
  %4631 = vmatprep.subr.bf16.mxu0 0
  %4632 = vmatpush2.bf16.msra.mxu0 0
  %4633 = vmatprep.subr.bf16.mxu0 0
  %4634 = vmatpush2.bf16.msra.mxu0 0
  %4635 = vmatprep.subr.bf16.mxu0 0
  %4636 = vmatpush2.bf16.msra.mxu0 0
  %4637 = vmatprep.subr.bf16.mxu0 0
  %4638 = vmatpush2.bf16.msra.mxu0 0
  %4639 = vmatprep.subr.bf16.mxu0 0
  %4640 = vmatpush2.bf16.msra.mxu0 0
  %4641 = vmatprep.subr.bf16.mxu0 0
  %4642 = vmatpush2.bf16.msra.mxu0 0
  %4643 = vmatprep.subr.bf16.mxu0 0
  %4644 = vmatpush2.bf16.msra.mxu0 0
  %4645 = vmatprep.mubr.bf16.mxu0 0
  %4646 = vmatmul.mubr.bf16.gmra.mxu0 %v4562
  %v4647 = vpop.f32.mrf.mxu0
  %v4648 = vadd.f32 0.0, %v4647
  %v4649 = vpop.f32.mrf.mxu0
  %v4650 = vpop.f32.mrf.mxu0
  %v4651 = vadd.f32 0.0, %v4650
  %v4652 = vpop.f32.mrf.mxu0
  %4653 = vmatprep.mubr.bf16.mxu0 0
  %4654 = vmatmul.mubr.bf16.gmra.mxu0 %v4561
  %v4655 = vpop.f32.mrf.mxu0
  %v4656 = vadd.f32 0.0, %v4655
  %v4657 = vpop.f32.mrf.mxu0
  %v4658 = vpop.f32.mrf.mxu0
  %v4659 = vpop.f32.mrf.mxu0
  %4660 = vdwg.mxu0
  %v4661 = vadd.f32 %v4523, %v4648
  %v4662 = vadd.f32 %v4524, %v4651
  %v4663 = vadd.f32 %v4525, %v4656
  %v4664 = vld [vmem:[%s3608 + $0x4] sm:$0x8]
  %v4665 = vld [vmem:[%s1103] sm:$0xf]
  %v4666 = vld [vmem:[%s1103 + $0x4] sm:$0xf]
  %v4667 = vld [vmem:[%s1103 + $0x8] sm:$0xf]
  %v4668 = vld [vmem:[%s1103 + $0xc] sm:$0xf]
  %v4669 = vld [vmem:[%s1103 + $0x10] sm:$0xf]
  %v4670 = vld [vmem:[%s1103 + $0x14] sm:$0xf]
  %v4671 = vld [vmem:[%s1103 + $0x18] sm:$0xf]
  %v4672 = vld [vmem:[%s1103 + $0x1c] sm:$0xf]
  %v4673 = vld [vmem:[%s1103 + $0x20] sm:$0xf]
  %v4674 = vld [vmem:[%s1103 + $0x24] sm:$0xf]
  %v4675 = vld [vmem:[%s1103 + $0x28] sm:$0xf]
  %v4676 = vld [vmem:[%s1103 + $0x2c] sm:$0xf]
  %v4677 = vld [vmem:[%s1103 + $0x30] sm:$0xf]
  %v4678 = vld [vmem:[%s1103 + $0x34] sm:$0xf]
  %v4679 = vld [vmem:[%s1103 + $0x38] sm:$0xf]
  %v4680 = vld [vmem:[%s1103 + $0x3c] sm:$0xf]
  %v4682 = vunpack.c.l.b16 %v4664
  %v4683 = vpack.c.b16 %v4417, %v4682
  %v4684 = vrot.slane %v4683, 3
  %v4685 = vrot.slane %v4545, 3
  %v4686 = vsel %vm461, %v4684, %v4685
  %v4705 = vunpack.c.l.b16 %v4665
  %v4706 = vunpack.c.l.b16 %v4666
  %v4707 = vunpack.c.l.b16 %v4667
  %v4708 = vunpack.c.l.b16 %v4668
  %v4709 = vunpack.c.l.b16 %v4669
  %v4710 = vunpack.c.l.b16 %v4670
  %v4711 = vunpack.c.l.b16 %v4671
  %v4712 = vunpack.c.l.b16 %v4672
  %v4713 = vunpack.c.l.b16 %v4673
  %v4714 = vunpack.c.l.b16 %v4674
  %v4715 = vunpack.c.l.b16 %v4675
  %v4716 = vunpack.c.l.b16 %v4676
  %v4717 = vunpack.c.l.b16 %v4677
  %v4718 = vunpack.c.l.b16 %v4678
  %v4719 = vunpack.c.l.b16 %v4679
  %v4720 = vunpack.c.l.b16 %v4680
  %v4721 = vpack.c.b16 %v4706, %v4705
  %v4722 = vpack.c.b16 %v4708, %v4707
  %v4723 = vpack.c.b16 %v4710, %v4709
  %v4724 = vpack.c.b16 %v4712, %v4711
  %v4725 = vpack.c.b16 %v4714, %v4713
  %v4726 = vpack.c.b16 %v4716, %v4715
  %v4727 = vpack.c.b16 %v4718, %v4717
  %v4728 = vpack.c.b16 %v4720, %v4719
  %4737 = vmatprep.subr.bf16.mxu0 0
  %4738 = vmatpush1.bf16.msra.mxu0 %v4728
  %4739 = vmatprep.subr.bf16.mxu0 0
  %4740 = vmatpush1.bf16.msra.mxu0 %v4727
  %4741 = vmatprep.subr.bf16.mxu0 0
  %4742 = vmatpush1.bf16.msra.mxu0 %v4726
  %4743 = vmatprep.subr.bf16.mxu0 0
  %4744 = vmatpush1.bf16.msra.mxu0 %v4725
  %4745 = vmatprep.subr.bf16.mxu0 0
  %4746 = vmatpush1.bf16.msra.mxu0 %v4724
  %4747 = vmatprep.subr.bf16.mxu0 0
  %4748 = vmatpush1.bf16.msra.mxu0 %v4723
  %4749 = vmatprep.subr.bf16.mxu0 0
  %4750 = vmatpush1.bf16.msra.mxu0 %v4722
  %4751 = vmatprep.subr.bf16.mxu0 0
  %4752 = vmatpush1.bf16.msra.mxu0 %v4721
  %4753 = vmatprep.subr.bf16.mxu0 0
  %4754 = vmatpush2.bf16.msra.mxu0 0
  %4755 = vmatprep.subr.bf16.mxu0 0
  %4756 = vmatpush2.bf16.msra.mxu0 0
  %4757 = vmatprep.subr.bf16.mxu0 0
  %4758 = vmatpush2.bf16.msra.mxu0 0
  %4759 = vmatprep.subr.bf16.mxu0 0
  %4760 = vmatpush2.bf16.msra.mxu0 0
  %4761 = vmatprep.subr.bf16.mxu0 0
  %4762 = vmatpush2.bf16.msra.mxu0 0
  %4763 = vmatprep.subr.bf16.mxu0 0
  %4764 = vmatpush2.bf16.msra.mxu0 0
  %4765 = vmatprep.subr.bf16.mxu0 0
  %4766 = vmatpush2.bf16.msra.mxu0 0
  %4767 = vmatprep.subr.bf16.mxu0 0
  %4768 = vmatpush2.bf16.msra.mxu0 0
  %4769 = vmatprep.mubr.bf16.mxu0 0
  %4770 = vmatmul.mubr.bf16.gmra.mxu0 %v4686
  %v4771 = vpop.f32.mrf.mxu0
  %v4772 = vadd.f32 0.0, %v4771
  %v4773 = vpop.f32.mrf.mxu0
  %v4774 = vpop.f32.mrf.mxu0
  %v4775 = vadd.f32 0.0, %v4774
  %v4776 = vpop.f32.mrf.mxu0
  %4777 = vmatprep.mubr.bf16.mxu0 0
  %4778 = vmatmul.mubr.bf16.gmra.mxu0 %v4685
  %v4779 = vpop.f32.mrf.mxu0
  %v4780 = vadd.f32 0.0, %v4779
  %v4781 = vpop.f32.mrf.mxu0
  %v4782 = vpop.f32.mrf.mxu0
  %v4783 = vpop.f32.mrf.mxu0
  %4784 = vdwg.mxu0
  %v4785 = vadd.f32 %v4661, %v4772
  %v4786 = vadd.f32 %v4662, %v4775
  %v4787 = vadd.f32 %v4663, %v4780
  %4788 = vst [vmem:[%s3604] sm:$0xff] %v4785
  %4789 = vst [vmem:[%s3604 + $0x8] sm:$0xff] %v4786
  %4790 = vst [vmem:[%s3604 + $0x10] sm:$0xff] %v4787
  // Predicated region
  $region18: #{roi_box_feature_extractor.12} parent=0 // pred_check
    %p4791 = pneg %p15
  $region19: #{roi_box_feature_extractor.12} parent=0 // pred_check_branch
    %4793 = sbr.rel (%p4791) target = $region21
  $region20: #{roi_box_feature_extractor.12} parent=0 // pred_region
    %v4794 = vld [vmem:[#allocation2] sm:$0xff]
    %v4795 = vld [vmem:[#allocation2 + $0x8] sm:$0xff]
    %v4796 = vld [vmem:[#allocation2 + $0x10] sm:$0xff]
    %v4797 = vld [vmem:[#allocation2 + $0x18] sm:$0xff]
    %v4798 = vld [vmem:[#allocation2 + $0x20] sm:$0xff]
    %v4799 = vld [vmem:[#allocation2 + $0x28] sm:$0xff]
    %v4800 = vld [vmem:[#allocation2 + $0x30] sm:$0xff]
    %v4801 = vld [vmem:[#allocation2 + $0x38] sm:$0xff]
    %v4802 = vld [vmem:[#allocation2 + $0x40] sm:$0xff]
    %v4803 = vld [vmem:[#allocation2 + $0x48] sm:$0xff]
    %v4804 = vld [vmem:[#allocation2 + $0x50] sm:$0xff]
    %v4805 = vld [vmem:[#allocation2 + $0x58] sm:$0xff]
    %v4806 = vld [vmem:[%s2] sm:$0x1]
    %v4808 = vlaneseq
    %v4809 = vshrl.u32 %v4808, 7
    %v4810 = vsub.s32 0, %v4809
    %v4811 = vrot.slane %v4806, %v4810
    %v4813 = vadd.f32 %v4794, %v4811
    %v4814 = vadd.f32 %v4795, %v4811
    %v4815 = vadd.f32 %v4796, %v4811
    %v4816 = vadd.f32 %v4797, %v4811
    %v4817 = vadd.f32 %v4798, %v4811
    %v4818 = vadd.f32 %v4799, %v4811
    %v4819 = vadd.f32 %v4800, %v4811
    %v4820 = vadd.f32 %v4801, %v4811
    %v4821 = vadd.f32 %v4802, %v4811
    %v4822 = vadd.f32 %v4803, %v4811
    %v4823 = vadd.f32 %v4804, %v4811
    %v4824 = vadd.f32 %v4805, %v4811
    %v4825 = vmax.f32 %v4813, 0.0
    %v4826 = vmax.f32 %v4814, 0.0
    %v4827 = vmax.f32 %v4815, 0.0
    %v4828 = vmax.f32 %v4816, 0.0
    %v4829 = vmax.f32 %v4817, 0.0
    %v4830 = vmax.f32 %v4818, 0.0
    %v4831 = vmax.f32 %v4819, 0.0
    %v4832 = vmax.f32 %v4820, 0.0
    %v4833 = vmax.f32 %v4821, 0.0
    %v4834 = vmax.f32 %v4822, 0.0
    %v4835 = vmax.f32 %v4823, 0.0
    %v4836 = vmax.f32 %v4824, 0.0
    %v4837 = vpack.c.bf16 %v4826, %v4825
    %v4838 = vpack.c.bf16 %v4827, %v4827
    %v4839 = vpack.c.bf16 %v4829, %v4828
    %v4840 = vpack.c.bf16 %v4830, %v4830
    %v4841 = vpack.c.bf16 %v4832, %v4831
    %v4842 = vpack.c.bf16 %v4833, %v4833
    %v4843 = vpack.c.bf16 %v4835, %v4834
    %v4844 = vpack.c.bf16 %v4836, %v4836
    %v4853 = vunpack.c.l.b16 %v4837
    %v4854 = vunpack.c.h.b16 %v4837
    %v4855 = vunpack.c.l.b16 %v4838
    %v4856 = vunpack.c.l.b16 %v4839
    %v4857 = vunpack.c.h.b16 %v4839
    %v4858 = vunpack.c.l.b16 %v4840
    %v4859 = vunpack.c.l.b16 %v4841
    %v4860 = vunpack.c.h.b16 %v4841
    %v4861 = vunpack.c.l.b16 %v4842
    %v4862 = vunpack.c.l.b16 %v4843
    %v4863 = vunpack.c.h.b16 %v4843
    %v4864 = vunpack.c.l.b16 %v4844
    %v4865 = vpack.c.b16 %v4853, %v4853
    %v4866 = vpack.c.b16 %v4854, %v4854
    %v4867 = vpack.c.b16 %v4855, %v4855
    %v4868 = vpack.c.b16 %v4856, %v4856
    %v4869 = vpack.c.b16 %v4857, %v4857
    %v4870 = vpack.c.b16 %v4858, %v4858
    %v4871 = vpack.c.b16 %v4859, %v4859
    %v4872 = vpack.c.b16 %v4860, %v4860
    %v4873 = vpack.c.b16 %v4861, %v4861
    %v4874 = vpack.c.b16 %v4862, %v4862
    %v4875 = vpack.c.b16 %v4863, %v4863
    %v4876 = vpack.c.b16 %v4864, %v4864
    %4889 = vst [vmem:[%s3] sm:$0xf] %v4865
    %4890 = vst [vmem:[%s3 + $0x4] sm:$0xf] %v4866
    %4891 = vst [vmem:[%s3 + $0x8] sm:$0xf] %v4867
    %4892 = vst [vmem:[%s3 + $0xc] sm:$0xf] %v4868
    %4893 = vst [vmem:[%s3 + $0x10] sm:$0xf] %v4869
    %4894 = vst [vmem:[%s3 + $0x14] sm:$0xf] %v4870
    %4895 = vst [vmem:[%s3 + $0x18] sm:$0xf] %v4871
    %4896 = vst [vmem:[%s3 + $0x1c] sm:$0xf] %v4872
    %4897 = vst [vmem:[%s3 + $0x20] sm:$0xf] %v4873
    %4898 = vst [vmem:[%s3 + $0x24] sm:$0xf] %v4874
    %4899 = vst [vmem:[%s3 + $0x28] sm:$0xf] %v4875
    %4900 = vst [vmem:[%s3 + $0x2c] sm:$0xf] %v4876
  $region21: #{roi_box_feature_extractor.12} parent=0 // pred_fallthru
    _
  // Predicated region
  $region22: #{roi_box_feature_extractor.12} parent=0 // pred_check
    _
  $region23: #{roi_box_feature_extractor.12} parent=0 // pred_check_branch
    %4902 = sbr.rel (0) target = $region25
  $region24: #{roi_box_feature_extractor.12} parent=0 // pred_region
    _
  $region25: #{roi_box_feature_extractor.12} parent=0 // pred_fallthru
    _
  // Predicated region
  $region26: #{roi_box_feature_extractor.12} parent=0 // pred_check
    _
  $region27: #{roi_box_feature_extractor.12} parent=0 // pred_check_branch
    %4904 = sbr.rel (0) target = $region29
  $region28: #{roi_box_feature_extractor.12} parent=0 // pred_region
    _
  $region29: #{roi_box_feature_extractor.12} parent=0 // pred_fallthru
    _

</llo_original>
